<compile_context>
chip_gen: v6e
topology: v6e:2x2x1
jax: 0.10.0
libtpu: 0.0.40
codegen_flags: <defaults>
</compile_context>

<pallas_src>
import numpy as np
import jax
import jax.numpy as jnp
from jax import lax
from jax.experimental import pallas as pl
from jax.experimental.pallas import tpu as pltpu

# ---------------- config (small, consistent with the module) ----------------
B = 2
DIM = (8, 8, 8)                 # dimension_size (D, H, W)
MATERIALS = (0, 1, 2, 3)        # len(materials) = in-channels of first conv
HIDDEN = 32                     # hidden_dim
NUM_OUTPUTS = 8
INITIAL_STD_BIAS_IN_VOXELS = 2
NORMALIZE_MODE = "clip"

D, H, W = DIM
M = len(MATERIALS)
DHW = D * H * W                                  # 512
POOLED = tuple((s + 1) // 2 for s in DIM)        # conv2 output spatial dims (4,4,4)
FLAT = int(np.prod(POOLED))                      # Linear input size = 64

if INITIAL_STD_BIAS_IN_VOXELS > 0 and NORMALIZE_MODE == "clip":
    INITIAL_STD_BIAS = [float(np.log(INITIAL_STD_BIAS_IN_VOXELS / (s * 3) * 4)) for s in DIM]
elif INITIAL_STD_BIAS_IN_VOXELS > 0 and NORMALIZE_MODE == "clip1":
    INITIAL_STD_BIAS = [float(np.log(INITIAL_STD_BIAS_IN_VOXELS / (s * 3) * 2)) for s in DIM]
else:
    INITIAL_STD_BIAS = [0.0, 0.0, 0.0]


# ---------------- fused kernel ----------------
def actor_fused_kernel(obs_ref, w1m_ref, w2m_ref, w0_ref, b0_ref,
                       wh_ref, bh_ref, wo_ref, bo_ref, bconv_ref,
                       act_ref, val_ref):
    f32 = jnp.float32
    vox = obs_ref[...]                                        # (B, DHW) flat voxel ids

    # ---- conv1 (3x3x3, pad 1) over the one-hot encoding, as M MXU matmuls ----
    # onehot_m = (vox == material_m); conv folded at pack time into W1mat[m]: (DHW, DHW)
    acc = jnp.zeros((B, DHW), f32)
    for mi, mat in enumerate(MATERIALS):
        mask = (vox == float(mat)).astype(f32)                # (B, DHW)
        acc = acc + jnp.dot(mask, w1m_ref[mi], preferred_element_type=f32)
    y1 = jnp.maximum(acc + bconv_ref[0], 0.0)                 # (B, DHW)

    # ---- conv2 (5x5x5, stride 2, pad 2) + Flatten folded into one matmul ----
    y2 = jnp.maximum(jnp.dot(y1, w2m_ref[...], preferred_element_type=f32)
                     + bconv_ref[1], 0.0)                     # (B, FLAT)

    # ---- fused MLP: Linear -> [action|value] hidden -> joint head ----
    h = jnp.dot(y2, w0_ref[...], preferred_element_type=f32) + b0_ref[...]     # (B, HIDDEN)
    z = jnp.maximum(jnp.dot(h, wh_ref[...], preferred_element_type=f32)
                    + bh_ref[...], 0.0)                                          # (B, 2*HIDDEN)
    out = jnp.dot(z, wo_ref[...], preferred_element_type=f32) + bo_ref[...]      # (B, 9)
    act_ref[...] = out[:, :NUM_OUTPUTS]
    val_ref[...] = out[:, NUM_OUTPUTS:NUM_OUTPUTS + 1]


# ---------------- wrapper ----------------
def actor_forward(obs, packed):
    f32 = jnp.float32
    vmem = pl.BlockSpec(memory_space=pltpu.MemorySpace.VMEM)
    smem = pl.BlockSpec(memory_space=pltpu.MemorySpace.SMEM)
    act, val = pl.pallas_call(
        actor_fused_kernel,
        out_shape=(jax.ShapeDtypeStruct((B, NUM_OUTPUTS), f32),
                   jax.ShapeDtypeStruct((B, 1), f32)),
        in_specs=[vmem] * 9 + [smem],
        out_specs=(vmem, vmem),
        compiler_params=pltpu.CompilerParams(vmem_limit_bytes=32 * 1024 * 1024),
    )(obs, packed["w1m"], packed["w2m"], packed["w0"], packed["b0"],
      packed["wh"], packed["bh"], packed["wo"], packed["bo"], packed["bconv"])
    return act, val


# ---------------- deterministic parameter init (raw, PyTorch-style layout) ----------------
def init_params(key):
    ks = jax.random.split(key, 14)

    def rnd(k, shape, scale=0.1):
        return scale * jax.random.normal(k, shape, dtype=jnp.float32)

    p = {
        "w1": rnd(ks[0], (M * 27,)),          # Conv3d(M,1,3,3,3) weight, flat (m,kd,kh,kw)
        "b1": rnd(ks[1], (1,)),
        "w2": rnd(ks[2], (125,)),             # Conv3d(1,1,5,5,5) weight, flat (kd,kh,kw)
        "b2": rnd(ks[3], (1,)),
        "w0": rnd(ks[4], (FLAT, HIDDEN)),     # input_layer Linear
        "b0": rnd(ks[5], (1, HIDDEN)),
        "wa1": rnd(ks[6], (HIDDEN, HIDDEN)),  # action_out SlimFC 1
        "ba1": rnd(ks[7], (1, HIDDEN)),
        "wa2": rnd(ks[8], (HIDDEN, NUM_OUTPUTS)),
        "ba2": rnd(ks[9], (1, NUM_OUTPUTS)),
        "wv1": rnd(ks[10], (HIDDEN, HIDDEN)),  # value_out SlimFC 1
        "bv1": rnd(ks[11], (1, HIDDEN)),
        "wv2": rnd(ks[12], (HIDDEN, 1)),
        "bv2": rnd(ks[13], (1, 1)),
    }
    stdb = np.zeros((1, NUM_OUTPUTS), np.float32)
    offset = NUM_OUTPUTS // 2
    for i in range(3):
        stdb[0, offset + i] += INITIAL_STD_BIAS[i]
    p["stdb"] = jnp.asarray(stdb)
    return p


# ---------------- one-time weight repacking for the fused kernel ----------------
def _conv1_matrix(w1_flat):
    """Fold Conv3d(M,1,3,3,3, pad=1) into per-material (DHW, DHW) matmul weights."""
    w1 = np.asarray(w1_flat, dtype=np.float32).reshape(M, 3, 3, 3)
    Wm = np.zeros((M, DHW, DHW), np.float32)
    di, hi, wi = np.meshgrid(np.arange(D), np.arange(H), np.arange(W), indexing="ij")
    p = (di * H * W + hi * W + wi).reshape(-1)
    for kd in range(3):
        for kh in range(3):
            for kw in range(3):
                qd, qh, qw = di + kd - 1, hi + kh - 1, wi + kw - 1
                ok = ((qd >= 0) & (qd < D) & (qh >= 0) & (qh < H)
                      & (qw >= 0) & (qw < W)).reshape(-1)
                q = (qd * H * W + qh * W + qw).reshape(-1)
                Wm[:, q[ok], p[ok]] += w1[:, kd, kh, kw, None]
    return jnp.asarray(Wm)


def _conv2_matrix(w2_flat):
    """Fold Conv3d(1,1,5,5,5, stride=2, pad=2) + Flatten into a (DHW, FLAT) matrix."""
    w2 = np.asarray(w2_flat, dtype=np.float32).reshape(5, 5, 5)
    Do, Ho, Wo = POOLED
    Wm = np.zeros((DHW, FLAT), np.float32)
    od, oh, ow = np.meshgrid(np.arange(Do), np.arange(Ho), np.arange(Wo), indexing="ij")
    pcol = (od * Ho * Wo + oh * Wo + ow).reshape(-1)
    for kd in range(5):
        for kh in range(5):
            for kw in range(5):
                qd, qh, qw = 2 * od + kd - 2, 2 * oh + kh - 2, 2 * ow + kw - 2
                ok = ((qd >= 0) & (qd < D) & (qh >= 0) & (qh < H)
                      & (qw >= 0) & (qw < W)).reshape(-1)
                q = (qd * H * W + qh * W + qw).reshape(-1)
                Wm[q[ok], pcol[ok]] += w2[kd, kh, kw]
    return jnp.asarray(Wm)


def pack_params(p):
    f32 = jnp.float32
    w1m = _conv1_matrix(p["w1"])                                  # (M, DHW, DHW)
    w2m = _conv2_matrix(p["w2"])                                  # (DHW, FLAT)

    # fuse action/value branches into single matmuls; fold initial_std_bias into bias
    wh = jnp.concatenate([p["wa1"], p["wv1"]], axis=1)            # (HIDDEN, 2H)
    bh = jnp.concatenate([p["ba1"], p["bv1"]], axis=1)            # (1, 2H)
    wo = jnp.zeros((2 * HIDDEN, NUM_OUTPUTS + 1), f32)
    wo = wo.at[:HIDDEN, :NUM_OUTPUTS].set(p["wa2"])
    wo = wo.at[HIDDEN:, NUM_OUTPUTS:].set(p["wv2"])
    bo = jnp.concatenate([p["ba2"] + p["stdb"], p["bv2"]], axis=1)  # (1, 9)

    bconv = jnp.concatenate([p["b1"], p["b2"]]).astype(f32)       # (2,) scalars -> SMEM
    return dict(w1m=w1m, w2m=w2m, w0=p["w0"], b0=p["b0"],
                wh=wh, bh=bh, wo=wo, bo=bo, bconv=bconv)


# ---------------- pure-JAX reference for verification ----------------
def reference_forward(obs, p):
    vox = obs.reshape((obs.shape[0],) + DIM)
    onehot = jnp.stack([(vox == float(m)).astype(jnp.float32) for m in MATERIALS], axis=1)
    w1 = p["w1"].reshape(1, M, 3, 3, 3)
    y1 = lax.conv_general_dilated(onehot, w1, (1, 1, 1), [(1, 1)] * 3,
                                  dimension_numbers=("NCDHW", "OIDHW", "NCDHW")) + p["b1"][0]
    y1 = jnp.maximum(y1, 0.0)
    w2 = p["w2"].reshape(1, 1, 5, 5, 5)
    y2 = lax.conv_general_dilated(y1, w2, (2, 2, 2), [(2, 2)] * 3,
                                  dimension_numbers=("NCDHW", "OIDHW", "NCDHW")) + p["b2"][0]
    y2 = jnp.maximum(y2, 0.0)
    feat = y2.reshape((obs.shape[0], -1))
    h = feat @ p["w0"] + p["b0"]
    a1 = jnp.maximum(h @ p["wa1"] + p["ba1"], 0.0)
    act = a1 @ p["wa2"] + p["ba2"] + p["stdb"]
    v1 = jnp.maximum(h @ p["wv1"] + p["bv1"], 0.0)
    val = v1 @ p["wv2"] + p["bv2"]
    return act, val


if __name__ == "__main__":
    key = jax.random.PRNGKey(0)
    kobs, kparam = jax.random.split(key)
    params = init_params(kparam)
    packed = pack_params(params)
    obs = jax.random.randint(kobs, (B, DHW), 0, len(MATERIALS)).astype(jnp.float32)

    fwd = jax.jit(actor_forward)
    action, value = fwd(obs, packed)
    jax.block_until_ready((action, value))

    ref_action, ref_value = reference_forward(obs, params)
    assert action.shape == (B, NUM_OUTPUTS) and value.shape == (B, 1)
    assert jnp.allclose(action, ref_action, atol=1e-3, rtol=1e-3)
    assert jnp.allclose(value, ref_value, atol=1e-3, rtol=1e-3)
    print("KERNEL_OK")
</pallas_src>

<mosaic_0001>
module attributes {stable_mosaic.version = 11 : i64} {
  func.func @actor_fused_kernel(%arg0: memref<2x512xf32, #tpu.memory_space<vmem>>, %arg1: memref<4x512x512xf32, #tpu.memory_space<vmem>>, %arg2: memref<512x64xf32, #tpu.memory_space<vmem>>, %arg3: memref<64x32xf32, #tpu.memory_space<vmem>>, %arg4: memref<1x32xf32, #tpu.memory_space<vmem>>, %arg5: memref<32x64xf32, #tpu.memory_space<vmem>>, %arg6: memref<1x64xf32, #tpu.memory_space<vmem>>, %arg7: memref<64x9xf32, #tpu.memory_space<vmem>>, %arg8: memref<1x9xf32, #tpu.memory_space<vmem>>, %arg9: memref<2xf32, #tpu.memory_space<smem>>, %arg10: memref<2x8xf32, #tpu.memory_space<vmem>>, %arg11: memref<2x1xf32, #tpu.memory_space<vmem>>) attributes {dimension_semantics = [], scalar_prefetch = 0 : i64, scratch_operands = 0 : i64, tpu.core_type = #tpu.core_type<tc>} {
    %c0 = arith.constant 0 : index
    %c0_0 = arith.constant 0 : index
    %0 = vector.load %arg0[%c0, %c0_0] : memref<2x512xf32, #tpu.memory_space<vmem>>, vector<2x512xf32>
    %cst = arith.constant 0.000000e+00 : f32
    %1 = vector.broadcast %cst : f32 to vector<2x512xf32>
    %cst_1 = arith.constant 0.000000e+00 : f32
    %2 = vector.broadcast %cst_1 : f32 to vector<2x512xf32>
    %3 = arith.cmpf oeq, %0, %2 : vector<2x512xf32>
    %4 = arith.extui %3 : vector<2x512xi1> to vector<2x512xi32>
    %5 = arith.sitofp %4 : vector<2x512xi32> to vector<2x512xf32>
    %c0_2 = arith.constant 0 : index
    %c0_3 = arith.constant 0 : index
    %c0_4 = arith.constant 0 : index
    %6 = vector.load %arg1[%c0_2, %c0_3, %c0_4] : memref<4x512x512xf32, #tpu.memory_space<vmem>>, vector<1x512x512xf32>
    %7 = vector.shape_cast %6 : vector<1x512x512xf32> to vector<512x512xf32>
    %cst_5 = arith.constant dense<0.000000e+00> : vector<2x512xf32>
    %8 = tpu.matmul %5, %7, %cst_5 {dimension_numbers = #tpu.dot_dimension_numbers<[1], [0], [0], [1], [0, 0, 1, 1], [], []>} : vector<2x512xf32>, vector<512x512xf32>, vector<2x512xf32> -> vector<2x512xf32>
    %9 = arith.addf %1, %8 : vector<2x512xf32>
    %cst_6 = arith.constant 1.000000e+00 : f32
    %10 = vector.broadcast %cst_6 : f32 to vector<2x512xf32>
    %11 = arith.cmpf oeq, %0, %10 : vector<2x512xf32>
    %12 = arith.extui %11 : vector<2x512xi1> to vector<2x512xi32>
    %13 = arith.sitofp %12 : vector<2x512xi32> to vector<2x512xf32>
    %c1 = arith.constant 1 : index
    %c0_7 = arith.constant 0 : index
    %c0_8 = arith.constant 0 : index
    %14 = vector.load %arg1[%c1, %c0_7, %c0_8] : memref<4x512x512xf32, #tpu.memory_space<vmem>>, vector<1x512x512xf32>
    %15 = vector.shape_cast %14 : vector<1x512x512xf32> to vector<512x512xf32>
    %cst_9 = arith.constant dense<0.000000e+00> : vector<2x512xf32>
    %16 = tpu.matmul %13, %15, %cst_9 {dimension_numbers = #tpu.dot_dimension_numbers<[1], [0], [0], [1], [0, 0, 1, 1], [], []>} : vector<2x512xf32>, vector<512x512xf32>, vector<2x512xf32> -> vector<2x512xf32>
    %17 = arith.addf %9, %16 : vector<2x512xf32>
    %cst_10 = arith.constant 2.000000e+00 : f32
    %18 = vector.broadcast %cst_10 : f32 to vector<2x512xf32>
    %19 = arith.cmpf oeq, %0, %18 : vector<2x512xf32>
    %20 = arith.extui %19 : vector<2x512xi1> to vector<2x512xi32>
    %21 = arith.sitofp %20 : vector<2x512xi32> to vector<2x512xf32>
    %c2 = arith.constant 2 : index
    %c0_11 = arith.constant 0 : index
    %c0_12 = arith.constant 0 : index
    %22 = vector.load %arg1[%c2, %c0_11, %c0_12] : memref<4x512x512xf32, #tpu.memory_space<vmem>>, vector<1x512x512xf32>
    %23 = vector.shape_cast %22 : vector<1x512x512xf32> to vector<512x512xf32>
    %cst_13 = arith.constant dense<0.000000e+00> : vector<2x512xf32>
    %24 = tpu.matmul %21, %23, %cst_13 {dimension_numbers = #tpu.dot_dimension_numbers<[1], [0], [0], [1], [0, 0, 1, 1], [], []>} : vector<2x512xf32>, vector<512x512xf32>, vector<2x512xf32> -> vector<2x512xf32>
    %25 = arith.addf %17, %24 : vector<2x512xf32>
    %cst_14 = arith.constant 3.000000e+00 : f32
    %26 = vector.broadcast %cst_14 : f32 to vector<2x512xf32>
    %27 = arith.cmpf oeq, %0, %26 : vector<2x512xf32>
    %28 = arith.extui %27 : vector<2x512xi1> to vector<2x512xi32>
    %29 = arith.sitofp %28 : vector<2x512xi32> to vector<2x512xf32>
    %c3 = arith.constant 3 : index
    %c0_15 = arith.constant 0 : index
    %c0_16 = arith.constant 0 : index
    %30 = vector.load %arg1[%c3, %c0_15, %c0_16] : memref<4x512x512xf32, #tpu.memory_space<vmem>>, vector<1x512x512xf32>
    %31 = vector.shape_cast %30 : vector<1x512x512xf32> to vector<512x512xf32>
    %cst_17 = arith.constant dense<0.000000e+00> : vector<2x512xf32>
    %32 = tpu.matmul %29, %31, %cst_17 {dimension_numbers = #tpu.dot_dimension_numbers<[1], [0], [0], [1], [0, 0, 1, 1], [], []>} : vector<2x512xf32>, vector<512x512xf32>, vector<2x512xf32> -> vector<2x512xf32>
    %33 = arith.addf %25, %32 : vector<2x512xf32>
    %c0_18 = arith.constant 0 : index
    %34 = memref.load %arg9[%c0_18] : memref<2xf32, #tpu.memory_space<smem>>
    %35 = vector.broadcast %34 : f32 to vector<2x512xf32>
    %36 = arith.addf %33, %35 : vector<2x512xf32>
    %cst_19 = arith.constant 0.000000e+00 : f32
    %37 = vector.broadcast %cst_19 : f32 to vector<2x512xf32>
    %38 = arith.maximumf %36, %37 : vector<2x512xf32>
    %c0_20 = arith.constant 0 : index
    %c0_21 = arith.constant 0 : index
    %39 = vector.load %arg2[%c0_20, %c0_21] : memref<512x64xf32, #tpu.memory_space<vmem>>, vector<512x64xf32>
    %cst_22 = arith.constant dense<0.000000e+00> : vector<2x64xf32>
    %40 = tpu.matmul %38, %39, %cst_22 {dimension_numbers = #tpu.dot_dimension_numbers<[1], [0], [0], [1], [0, 0, 1, 1], [], []>} : vector<2x512xf32>, vector<512x64xf32>, vector<2x64xf32> -> vector<2x64xf32>
    %c1_23 = arith.constant 1 : index
    %41 = memref.load %arg9[%c1_23] : memref<2xf32, #tpu.memory_space<smem>>
    %42 = vector.broadcast %41 : f32 to vector<2x64xf32>
    %43 = arith.addf %40, %42 : vector<2x64xf32>
    %cst_24 = arith.constant 0.000000e+00 : f32
    %44 = vector.broadcast %cst_24 : f32 to vector<2x64xf32>
    %45 = arith.maximumf %43, %44 : vector<2x64xf32>
    %c0_25 = arith.constant 0 : index
    %c0_26 = arith.constant 0 : index
    %46 = vector.load %arg3[%c0_25, %c0_26] : memref<64x32xf32, #tpu.memory_space<vmem>>, vector<64x32xf32>
    %cst_27 = arith.constant dense<0.000000e+00> : vector<2x32xf32>
    %47 = tpu.matmul %45, %46, %cst_27 {dimension_numbers = #tpu.dot_dimension_numbers<[1], [0], [0], [1], [0, 0, 1, 1], [], []>} : vector<2x64xf32>, vector<64x32xf32>, vector<2x32xf32> -> vector<2x32xf32>
    %c0_28 = arith.constant 0 : index
    %c0_29 = arith.constant 0 : index
    %48 = vector.load %arg4[%c0_28, %c0_29] : memref<1x32xf32, #tpu.memory_space<vmem>>, vector<1x32xf32>
    %49 = vector.broadcast %48 : vector<1x32xf32> to vector<2x32xf32>
    %50 = arith.addf %47, %49 : vector<2x32xf32>
    %c0_30 = arith.constant 0 : index
    %c0_31 = arith.constant 0 : index
    %51 = vector.load %arg5[%c0_30, %c0_31] : memref<32x64xf32, #tpu.memory_space<vmem>>, vector<32x64xf32>
    %cst_32 = arith.constant dense<0.000000e+00> : vector<2x64xf32>
    %52 = tpu.matmul %50, %51, %cst_32 {dimension_numbers = #tpu.dot_dimension_numbers<[1], [0], [0], [1], [0, 0, 1, 1], [], []>} : vector<2x32xf32>, vector<32x64xf32>, vector<2x64xf32> -> vector<2x64xf32>
    %c0_33 = arith.constant 0 : index
    %c0_34 = arith.constant 0 : index
    %53 = vector.load %arg6[%c0_33, %c0_34] : memref<1x64xf32, #tpu.memory_space<vmem>>, vector<1x64xf32>
    %54 = vector.broadcast %53 : vector<1x64xf32> to vector<2x64xf32>
    %55 = arith.addf %52, %54 : vector<2x64xf32>
    %cst_35 = arith.constant 0.000000e+00 : f32
    %56 = vector.broadcast %cst_35 : f32 to vector<2x64xf32>
    %57 = arith.maximumf %55, %56 : vector<2x64xf32>
    %c0_36 = arith.constant 0 : index
    %c0_37 = arith.constant 0 : index
    %58 = vector.load %arg7[%c0_36, %c0_37] : memref<64x9xf32, #tpu.memory_space<vmem>>, vector<64x9xf32>
    %cst_38 = arith.constant dense<0.000000e+00> : vector<2x9xf32>
    %59 = tpu.matmul %57, %58, %cst_38 {dimension_numbers = #tpu.dot_dimension_numbers<[1], [0], [0], [1], [0, 0, 1, 1], [], []>} : vector<2x64xf32>, vector<64x9xf32>, vector<2x9xf32> -> vector<2x9xf32>
    %c0_39 = arith.constant 0 : index
    %c0_40 = arith.constant 0 : index
    %60 = vector.load %arg8[%c0_39, %c0_40] : memref<1x9xf32, #tpu.memory_space<vmem>>, vector<1x9xf32>
    %61 = vector.broadcast %60 : vector<1x9xf32> to vector<2x9xf32>
    %62 = arith.addf %59, %61 : vector<2x9xf32>
    %63 = vector.extract_strided_slice %62 {offsets = [0, 0], sizes = [2, 8], strides = [1, 1]} : vector<2x9xf32> to vector<2x8xf32>
    %c0_41 = arith.constant 0 : index
    %c0_42 = arith.constant 0 : index
    %64 = vector.load %arg10[%c0_41, %c0_42] : memref<2x8xf32, #tpu.memory_space<vmem>>, vector<2x8xf32>
    tpu.vector_store %arg10[%c0_41, %c0_42], %63 {strides = array<i32>} : memref<2x8xf32, #tpu.memory_space<vmem>>, vector<2x8xf32>,
    %65 = vector.extract_strided_slice %62 {offsets = [0, 8], sizes = [2, 1], strides = [1, 1]} : vector<2x9xf32> to vector<2x1xf32>
    %c0_43 = arith.constant 0 : index
    %c0_44 = arith.constant 0 : index
    %66 = vector.load %arg11[%c0_43, %c0_44] : memref<2x1xf32, #tpu.memory_space<vmem>>, vector<2x1xf32>
    tpu.vector_store %arg11[%c0_43, %c0_44], %65 {strides = array<i32>} : memref<2x1xf32, #tpu.memory_space<vmem>>, vector<2x1xf32>,
    return
  }
}

</mosaic_0001>

<llo_original>
// kernel: actor_forward.1
$region0: #{actor_forward.1}
  #allocation0 [shape = 'u32[]', space=smem, size = 0x4, offset = 0x4, fixed_abs, tag = 'smem constant byte address 0x4 - core index']
  #allocation1 [shape = 'u32[144,128]{1,0:T(1,128)}', space=vmem, size = 0x12000, scoped, tag = 'internal scratch']
  %s0 = inlined_call_operand.hbm [shape: f32[2,512], index: 0, kind: input, shape index: {}]
  %s1 = inlined_call_operand.hbm [shape: f32[4,512,512], index: 1, kind: input, shape index: {}]
  %s2 = inlined_call_operand.vmem [shape: f32[512,64], index: 2, kind: input, shape index: {}]
  %s3 = inlined_call_operand.vmem [shape: f32[64,32], index: 3, kind: input, shape index: {}]
  %s4 = inlined_call_operand.hbm [shape: f32[1,32], index: 4, kind: input, shape index: {}]
  %s5 = inlined_call_operand.hbm [shape: f32[32,64], index: 5, kind: input, shape index: {}]
  %s6 = inlined_call_operand.hbm [shape: f32[1,64], index: 6, kind: input, shape index: {}]
  %s7 = inlined_call_operand.vmem [shape: f32[64,9], index: 7, kind: input, shape index: {}]
  %s8 = inlined_call_operand.hbm [shape: f32[1,9], index: 8, kind: input, shape index: {}]
  %s9 = inlined_call_operand.hbm [shape: f32[2], index: 9, kind: input, shape index: {}]
  %s10 = inlined_call_operand.hbm [shape: f32[2,8], index: 10, kind: output, shape index: {0}]
  %s11 = inlined_call_operand.vmem [shape: f32[2,1], index: 11, kind: output, shape index: {1}]
  %12 = xla_tuple %s10, %s11
  %s13 = sld [smem:[#allocation0]]
  $region86: #{actor_forward.1} parent=0
    _
  %s15 = ssub.s32 1, %s13
  %s16 = scalar_select 0, %s15, %s13
  $region1: #{actor_forward.1} parent=0
    #allocation2 [shape = 'u8[4096]{0}', space=vmem, size = 0x1000, scoped, tag = 'input window, operand 0, single buffered']
    #allocation3 [shape = 's32[1]{0}', space=sflag, size = 0x4, scoped, tag = 'scoped memory for actor_forward.1']
    #allocation4 [shape = 's32[1]{0}', space=sflag, size = 0x4, scoped, tag = 'scoped memory for actor_forward.1']
    #allocation5 [shape = 's32[1]{0}', space=sflag, size = 0x4, scoped, tag = 'scoped memory for actor_forward.1']
    #allocation6 [shape = 'u8[4194304]{0}', space=vmem, size = 0x400000, scoped, tag = 'input window, operand 1, single buffered']
    #allocation7 [shape = 's32[1]{0}', space=sflag, size = 0x4, scoped, tag = 'scoped memory for actor_forward.1']
    #allocation8 [shape = 'u8[512]{0}', space=vmem, size = 0x400, scoped, tag = 'input window, operand 4, single buffered']
    #allocation9 [shape = 'u8[16384]{0}', space=vmem, size = 0x4000, scoped, tag = 'input window, operand 5, single buffered']
    #allocation10 [shape = 's32[1]{0}', space=sflag, size = 0x4, scoped, tag = 'scoped memory for actor_forward.1']
    #allocation11 [shape = 'u8[512]{0}', space=vmem, size = 0x400, scoped, tag = 'input window, operand 6, single buffered']
    #allocation12 [shape = 'u8[512]{0}', space=vmem, size = 0x400, scoped, tag = 'input window, operand 8, single buffered']
    #allocation13 [shape = 's32[1]{0}', space=sflag, size = 0x4, scoped, tag = 'scoped memory for actor_forward.1']
    #allocation14 [shape = 'u8[512]{0}', space=smem, size = 0x200, scoped, tag = 'input window, operand 9, single buffered']
    #allocation15 [shape = 'u8[1024]{0}', space=vmem, size = 0x400, scoped, tag = 'output window, operand 0, single buffered']
    %17 = vsyncpa [#allocation3], 0
    %18 = vsyncpa [#allocation7], 0
    %19 = vsyncpa [#allocation10], 0
    %20 = vsyncpa [#allocation13], 0
    %21 = vsyncpa [#allocation5], 0
    %22 = vsyncpa [#allocation4], 0
    // Predicated region
    $region2: #{actor_forward.1} parent=1 // pred_check
      _
    $region3: #{actor_forward.1} parent=1 // pred_check_branch
      %24 = sbr.rel (0) target = $region5
    $region4: #{actor_forward.1} parent=1 // pred_region
      %s26 = ssub.s32 128, 128
      %27 = vsyncadd [#allocation3], %s26
      %s29 = sshll.u32 [#allocation2], 4
      %s30 = int_to_ptr.vmem [resolvable:$true] %s29
      %32 = dma.hbm_to_vmem [thread:$0]  %s0, 128, %s30, [#allocation3]
    $region5: #{actor_forward.1} parent=1 // pred_fallthru
      _
    // Predicated region
    $region6: #{actor_forward.1} parent=1 // pred_check
      _
    $region7: #{actor_forward.1} parent=1 // pred_check_branch
      %34 = sbr.rel (0) target = $region9
    $region8: #{actor_forward.1} parent=1 // pred_region
      %s36 = ssub.s32 131072, 131072
      %37 = vsyncadd [#allocation7], %s36
      %s38 = sshll.u32 [#allocation6], 4
      %s39 = int_to_ptr.vmem [resolvable:$true] %s38
      %44 = dma.hbm_to_vmem [thread:$0]  %s1, 131072, %s39, [#allocation7], 512, 512, 32
    $region9: #{actor_forward.1} parent=1 // pred_fallthru
      _
    // Predicated region
    $region10: #{actor_forward.1} parent=1 // pred_check
      _
    $region11: #{actor_forward.1} parent=1 // pred_check_branch
      %46 = sbr.rel (0) target = $region13
    $region12: #{actor_forward.1} parent=1 // pred_region
      _
    $region13: #{actor_forward.1} parent=1 // pred_fallthru
      _
    // Predicated region
    $region14: #{actor_forward.1} parent=1 // pred_check
      _
    $region15: #{actor_forward.1} parent=1 // pred_check_branch
      %48 = sbr.rel (0) target = $region17
    $region16: #{actor_forward.1} parent=1 // pred_region
      _
    $region17: #{actor_forward.1} parent=1 // pred_fallthru
      _
    // Predicated region
    $region18: #{actor_forward.1} parent=1 // pred_check
      _
    $region19: #{actor_forward.1} parent=1 // pred_check_branch
      %50 = sbr.rel (0) target = $region21
    $region20: #{actor_forward.1} parent=1 // pred_region
      %s52 = ssub.s32 16, 16
      %53 = vsyncadd [#allocation7], %s52
      %s55 = sshll.u32 [#allocation8], 4
      %s56 = int_to_ptr.vmem [resolvable:$true] %s55
      %58 = dma.hbm_to_vmem [thread:$0]  %s4, 16, %s56, [#allocation7]
    $region21: #{actor_forward.1} parent=1 // pred_fallthru
      _
    // Predicated region
    $region22: #{actor_forward.1} parent=1 // pred_check
      _
    $region23: #{actor_forward.1} parent=1 // pred_check_branch
      %60 = sbr.rel (0) target = $region25
    $region24: #{actor_forward.1} parent=1 // pred_region
      %s62 = ssub.s32 512, 512
      %63 = vsyncadd [#allocation10], %s62
      %s64 = sshll.u32 [#allocation9], 4
      %s65 = int_to_ptr.vmem [resolvable:$true] %s64
      %70 = dma.hbm_to_vmem [thread:$0]  %s5, 512, %s65, [#allocation10], 128, 128, 8
    $region25: #{actor_forward.1} parent=1 // pred_fallthru
      _
    // Predicated region
    $region26: #{actor_forward.1} parent=1 // pred_check
      _
    $region27: #{actor_forward.1} parent=1 // pred_check_branch
      %72 = sbr.rel (0) target = $region29
    $region28: #{actor_forward.1} parent=1 // pred_region
      %s74 = ssub.s32 16, 16
      %75 = vsyncadd [#allocation10], %s74
      %s77 = sshll.u32 [#allocation11], 4
      %s78 = int_to_ptr.vmem [resolvable:$true] %s77
      %80 = dma.hbm_to_vmem [thread:$0]  %s6, 16, %s78, [#allocation10]
    $region29: #{actor_forward.1} parent=1 // pred_fallthru
      _
    // Predicated region
    $region30: #{actor_forward.1} parent=1 // pred_check
      _
    $region31: #{actor_forward.1} parent=1 // pred_check_branch
      %82 = sbr.rel (0) target = $region33
    $region32: #{actor_forward.1} parent=1 // pred_region
      _
    $region33: #{actor_forward.1} parent=1 // pred_fallthru
      _
    // Predicated region
    $region34: #{actor_forward.1} parent=1 // pred_check
      _
    $region35: #{actor_forward.1} parent=1 // pred_check_branch
      %84 = sbr.rel (0) target = $region37
    $region36: #{actor_forward.1} parent=1 // pred_region
      %s86 = ssub.s32 16, 16
      %87 = vsyncadd [#allocation13], %s86
      %s89 = sshll.u32 [#allocation12], 4
      %s90 = int_to_ptr.vmem [resolvable:$true] %s89
      %92 = dma.hbm_to_vmem [thread:$0]  %s8, 16, %s90, [#allocation13]
    $region37: #{actor_forward.1} parent=1 // pred_fallthru
      _
    // Predicated region
    $region38: #{actor_forward.1} parent=1 // pred_check
      _
    $region39: #{actor_forward.1} parent=1 // pred_check_branch
      %94 = sbr.rel (0) target = $region41
    $region40: #{actor_forward.1} parent=1 // pred_region
      %s96 = ssub.s32 16, 16
      %97 = vsyncadd [#allocation5], %s96
      %100 = dma.hbm_to_smem %s9, 16, [#allocation14], [#allocation5]
    $region41: #{actor_forward.1} parent=1 // pred_fallthru
      _
    // Predicated region
    $region42: #{actor_forward.1} parent=1 // pred_check
      _
    $region43: #{actor_forward.1} parent=1 // pred_check_branch
      %102 = sbr.rel (0) target = $region45
    $region44: #{actor_forward.1} parent=1 // pred_region
      %103 = dma.done [#allocation3], 128
    $region45: #{actor_forward.1} parent=1 // pred_fallthru
      _
    // Predicated region
    $region46: #{actor_forward.1} parent=1 // pred_check
      _
    $region47: #{actor_forward.1} parent=1 // pred_check_branch
      %105 = sbr.rel (0) target = $region49
    $region48: #{actor_forward.1} parent=1 // pred_region
      %106 = dma.done [#allocation7], 131072
    $region49: #{actor_forward.1} parent=1 // pred_fallthru
      _
    // Predicated region
    $region50: #{actor_forward.1} parent=1 // pred_check
      _
    $region51: #{actor_forward.1} parent=1 // pred_check_branch
      %108 = sbr.rel (0) target = $region53
    $region52: #{actor_forward.1} parent=1 // pred_region
      %109 = dma.done [#allocation7], 16
    $region53: #{actor_forward.1} parent=1 // pred_fallthru
      _
    // Predicated region
    $region54: #{actor_forward.1} parent=1 // pred_check
      _
    $region55: #{actor_forward.1} parent=1 // pred_check_branch
      %111 = sbr.rel (0) target = $region57
    $region56: #{actor_forward.1} parent=1 // pred_region
      %112 = dma.done [#allocation10], 512
    $region57: #{actor_forward.1} parent=1 // pred_fallthru
      _
    // Predicated region
    $region58: #{actor_forward.1} parent=1 // pred_check
      _
    $region59: #{actor_forward.1} parent=1 // pred_check_branch
      %114 = sbr.rel (0) target = $region61
    $region60: #{actor_forward.1} parent=1 // pred_region
      %115 = dma.done [#allocation10], 16
    $region61: #{actor_forward.1} parent=1 // pred_fallthru
      _
    // Predicated region
    $region62: #{actor_forward.1} parent=1 // pred_check
      _
    $region63: #{actor_forward.1} parent=1 // pred_check_branch
      %117 = sbr.rel (0) target = $region65
    $region64: #{actor_forward.1} parent=1 // pred_region
      %118 = dma.done [#allocation13], 16
    $region65: #{actor_forward.1} parent=1 // pred_fallthru
      _
    // Predicated region
    $region66: #{actor_forward.1} parent=1 // pred_check
      _
    $region67: #{actor_forward.1} parent=1 // pred_check_branch
      %120 = sbr.rel (0) target = $region69
    $region68: #{actor_forward.1} parent=1 // pred_region
      %121 = dma.done [#allocation5], 16
    $region69: #{actor_forward.1} parent=1 // pred_fallthru
      _
    %122 = sfence
    %v123 = vld [vmem:[#allocation2] sm:$0xff]
    %vm124 = vcmp.eq.f32.partialorder %v123, 0.0
    %v125 = vsel %vm124, 1, 0
    %v126 = vcvt.s32.f32 %v125
    %v127 = vld [vmem:[#allocation6] sm:$0xff]
    %v128 = vld [vmem:[#allocation6 + $0x8] sm:$0xff]
    %v129 = vld [vmem:[#allocation6 + $0x10] sm:$0xff]
    %v130 = vld [vmem:[#allocation6 + $0x18] sm:$0xff]
    %v131 = vld [vmem:[#allocation6 + $0x20] sm:$0xff]
    %v132 = vld [vmem:[#allocation6 + $0x28] sm:$0xff]
    %v133 = vld [vmem:[#allocation6 + $0x30] sm:$0xff]
    %v134 = vld [vmem:[#allocation6 + $0x38] sm:$0xff]
    %v135 = vld [vmem:[#allocation6 + $0x40] sm:$0xff]
    %v136 = vld [vmem:[#allocation6 + $0x48] sm:$0xff]
    %v137 = vld [vmem:[#allocation6 + $0x50] sm:$0xff]
    %v138 = vld [vmem:[#allocation6 + $0x58] sm:$0xff]
    %v139 = vld [vmem:[#allocation6 + $0x60] sm:$0xff]
    %v140 = vld [vmem:[#allocation6 + $0x68] sm:$0xff]
    %v141 = vld [vmem:[#allocation6 + $0x70] sm:$0xff]
    %v142 = vld [vmem:[#allocation6 + $0x78] sm:$0xff]
    %v143 = vld [vmem:[#allocation6 + $0x80] sm:$0xff]
    %v144 = vld [vmem:[#allocation6 + $0x88] sm:$0xff]
    %v145 = vld [vmem:[#allocation6 + $0x90] sm:$0xff]
    %v146 = vld [vmem:[#allocation6 + $0x98] sm:$0xff]
    %v147 = vld [vmem:[#allocation6 + $0xa0] sm:$0xff]
    %v148 = vld [vmem:[#allocation6 + $0xa8] sm:$0xff]
    %v149 = vld [vmem:[#allocation6 + $0xb0] sm:$0xff]
    %v150 = vld [vmem:[#allocation6 + $0xb8] sm:$0xff]
    %v151 = vld [vmem:[#allocation6 + $0xc0] sm:$0xff]
    %v152 = vld [vmem:[#allocation6 + $0xc8] sm:$0xff]
    %v153 = vld [vmem:[#allocation6 + $0xd0] sm:$0xff]
    %v154 = vld [vmem:[#allocation6 + $0xd8] sm:$0xff]
    %v155 = vld [vmem:[#allocation6 + $0xe0] sm:$0xff]
    %v156 = vld [vmem:[#allocation6 + $0xe8] sm:$0xff]
    %v157 = vld [vmem:[#allocation6 + $0xf0] sm:$0xff]
    %v158 = vld [vmem:[#allocation6 + $0xf8] sm:$0xff]
    %v159 = vld [vmem:[#allocation6 + $0x100] sm:$0xff]
    %v160 = vld [vmem:[#allocation6 + $0x108] sm:$0xff]
    %v161 = vld [vmem:[#allocation6 + $0x110] sm:$0xff]
    %v162 = vld [vmem:[#allocation6 + $0x118] sm:$0xff]
    %v163 = vld [vmem:[#allocation6 + $0x120] sm:$0xff]
    %v164 = vld [vmem:[#allocation6 + $0x128] sm:$0xff]
    %v165 = vld [vmem:[#allocation6 + $0x130] sm:$0xff]
    %v166 = vld [vmem:[#allocation6 + $0x138] sm:$0xff]
    %v167 = vld [vmem:[#allocation6 + $0x140] sm:$0xff]
    %v168 = vld [vmem:[#allocation6 + $0x148] sm:$0xff]
    %v169 = vld [vmem:[#allocation6 + $0x150] sm:$0xff]
    %v170 = vld [vmem:[#allocation6 + $0x158] sm:$0xff]
    %v171 = vld [vmem:[#allocation6 + $0x160] sm:$0xff]
    %v172 = vld [vmem:[#allocation6 + $0x168] sm:$0xff]
    %v173 = vld [vmem:[#allocation6 + $0x170] sm:$0xff]
    %v174 = vld [vmem:[#allocation6 + $0x178] sm:$0xff]
    %v175 = vld [vmem:[#allocation6 + $0x180] sm:$0xff]
    %v176 = vld [vmem:[#allocation6 + $0x188] sm:$0xff]
    %v177 = vld [vmem:[#allocation6 + $0x190] sm:$0xff]
    %v178 = vld [vmem:[#allocation6 + $0x198] sm:$0xff]
    %v179 = vld [vmem:[#allocation6 + $0x1a0] sm:$0xff]
    %v180 = vld [vmem:[#allocation6 + $0x1a8] sm:$0xff]
    %v181 = vld [vmem:[#allocation6 + $0x1b0] sm:$0xff]
    %v182 = vld [vmem:[#allocation6 + $0x1b8] sm:$0xff]
    %v183 = vld [vmem:[#allocation6 + $0x1c0] sm:$0xff]
    %v184 = vld [vmem:[#allocation6 + $0x1c8] sm:$0xff]
    %v185 = vld [vmem:[#allocation6 + $0x1d0] sm:$0xff]
    %v186 = vld [vmem:[#allocation6 + $0x1d8] sm:$0xff]
    %v187 = vld [vmem:[#allocation6 + $0x1e0] sm:$0xff]
    %v188 = vld [vmem:[#allocation6 + $0x1e8] sm:$0xff]
    %v189 = vld [vmem:[#allocation6 + $0x1f0] sm:$0xff]
    %v190 = vld [vmem:[#allocation6 + $0x1f8] sm:$0xff]
    %v191 = vld [vmem:[#allocation6 + $0x200] sm:$0xff]
    %v192 = vld [vmem:[#allocation6 + $0x208] sm:$0xff]
    %v193 = vld [vmem:[#allocation6 + $0x210] sm:$0xff]
    %v194 = vld [vmem:[#allocation6 + $0x218] sm:$0xff]
    %v195 = vld [vmem:[#allocation6 + $0x220] sm:$0xff]
    %v196 = vld [vmem:[#allocation6 + $0x228] sm:$0xff]
    %v197 = vld [vmem:[#allocation6 + $0x230] sm:$0xff]
    %v198 = vld [vmem:[#allocation6 + $0x238] sm:$0xff]
    %v199 = vld [vmem:[#allocation6 + $0x240] sm:$0xff]
    %v200 = vld [vmem:[#allocation6 + $0x248] sm:$0xff]
    %v201 = vld [vmem:[#allocation6 + $0x250] sm:$0xff]
    %v202 = vld [vmem:[#allocation6 + $0x258] sm:$0xff]
    %v203 = vld [vmem:[#allocation6 + $0x260] sm:$0xff]
    %v204 = vld [vmem:[#allocation6 + $0x268] sm:$0xff]
    %v205 = vld [vmem:[#allocation6 + $0x270] sm:$0xff]
    %v206 = vld [vmem:[#allocation6 + $0x278] sm:$0xff]
    %v207 = vld [vmem:[#allocation6 + $0x280] sm:$0xff]
    %v208 = vld [vmem:[#allocation6 + $0x288] sm:$0xff]
    %v209 = vld [vmem:[#allocation6 + $0x290] sm:$0xff]
    %v210 = vld [vmem:[#allocation6 + $0x298] sm:$0xff]
    %v211 = vld [vmem:[#allocation6 + $0x2a0] sm:$0xff]
    %v212 = vld [vmem:[#allocation6 + $0x2a8] sm:$0xff]
    %v213 = vld [vmem:[#allocation6 + $0x2b0] sm:$0xff]
    %v214 = vld [vmem:[#allocation6 + $0x2b8] sm:$0xff]
    %v215 = vld [vmem:[#allocation6 + $0x2c0] sm:$0xff]
    %v216 = vld [vmem:[#allocation6 + $0x2c8] sm:$0xff]
    %v217 = vld [vmem:[#allocation6 + $0x2d0] sm:$0xff]
    %v218 = vld [vmem:[#allocation6 + $0x2d8] sm:$0xff]
    %v219 = vld [vmem:[#allocation6 + $0x2e0] sm:$0xff]
    %v220 = vld [vmem:[#allocation6 + $0x2e8] sm:$0xff]
    %v221 = vld [vmem:[#allocation6 + $0x2f0] sm:$0xff]
    %v222 = vld [vmem:[#allocation6 + $0x2f8] sm:$0xff]
    %v223 = vld [vmem:[#allocation6 + $0x300] sm:$0xff]
    %v224 = vld [vmem:[#allocation6 + $0x308] sm:$0xff]
    %v225 = vld [vmem:[#allocation6 + $0x310] sm:$0xff]
    %v226 = vld [vmem:[#allocation6 + $0x318] sm:$0xff]
    %v227 = vld [vmem:[#allocation6 + $0x320] sm:$0xff]
    %v228 = vld [vmem:[#allocation6 + $0x328] sm:$0xff]
    %v229 = vld [vmem:[#allocation6 + $0x330] sm:$0xff]
    %v230 = vld [vmem:[#allocation6 + $0x338] sm:$0xff]
    %v231 = vld [vmem:[#allocation6 + $0x340] sm:$0xff]
    %v232 = vld [vmem:[#allocation6 + $0x348] sm:$0xff]
    %v233 = vld [vmem:[#allocation6 + $0x350] sm:$0xff]
    %v234 = vld [vmem:[#allocation6 + $0x358] sm:$0xff]
    %v235 = vld [vmem:[#allocation6 + $0x360] sm:$0xff]
    %v236 = vld [vmem:[#allocation6 + $0x368] sm:$0xff]
    %v237 = vld [vmem:[#allocation6 + $0x370] sm:$0xff]
    %v238 = vld [vmem:[#allocation6 + $0x378] sm:$0xff]
    %v239 = vld [vmem:[#allocation6 + $0x380] sm:$0xff]
    %v240 = vld [vmem:[#allocation6 + $0x388] sm:$0xff]
    %v241 = vld [vmem:[#allocation6 + $0x390] sm:$0xff]
    %v242 = vld [vmem:[#allocation6 + $0x398] sm:$0xff]
    %v243 = vld [vmem:[#allocation6 + $0x3a0] sm:$0xff]
    %v244 = vld [vmem:[#allocation6 + $0x3a8] sm:$0xff]
    %v245 = vld [vmem:[#allocation6 + $0x3b0] sm:$0xff]
    %v246 = vld [vmem:[#allocation6 + $0x3b8] sm:$0xff]
    %v247 = vld [vmem:[#allocation6 + $0x3c0] sm:$0xff]
    %v248 = vld [vmem:[#allocation6 + $0x3c8] sm:$0xff]
    %v249 = vld [vmem:[#allocation6 + $0x3d0] sm:$0xff]
    %v250 = vld [vmem:[#allocation6 + $0x3d8] sm:$0xff]
    %v251 = vld [vmem:[#allocation6 + $0x3e0] sm:$0xff]
    %v252 = vld [vmem:[#allocation6 + $0x3e8] sm:$0xff]
    %v253 = vld [vmem:[#allocation6 + $0x3f0] sm:$0xff]
    %v254 = vld [vmem:[#allocation6 + $0x3f8] sm:$0xff]
    %v255 = vld [vmem:[#allocation6 + $0x400] sm:$0xff]
    %v256 = vld [vmem:[#allocation6 + $0x408] sm:$0xff]
    %v257 = vld [vmem:[#allocation6 + $0x410] sm:$0xff]
    %v258 = vld [vmem:[#allocation6 + $0x418] sm:$0xff]
    %v259 = vld [vmem:[#allocation6 + $0x420] sm:$0xff]
    %v260 = vld [vmem:[#allocation6 + $0x428] sm:$0xff]
    %v261 = vld [vmem:[#allocation6 + $0x430] sm:$0xff]
    %v262 = vld [vmem:[#allocation6 + $0x438] sm:$0xff]
    %v263 = vld [vmem:[#allocation6 + $0x440] sm:$0xff]
    %v264 = vld [vmem:[#allocation6 + $0x448] sm:$0xff]
    %v265 = vld [vmem:[#allocation6 + $0x450] sm:$0xff]
    %v266 = vld [vmem:[#allocation6 + $0x458] sm:$0xff]
    %v267 = vld [vmem:[#allocation6 + $0x460] sm:$0xff]
    %v268 = vld [vmem:[#allocation6 + $0x468] sm:$0xff]
    %v269 = vld [vmem:[#allocation6 + $0x470] sm:$0xff]
    %v270 = vld [vmem:[#allocation6 + $0x478] sm:$0xff]
    %v271 = vld [vmem:[#allocation6 + $0x480] sm:$0xff]
    %v272 = vld [vmem:[#allocation6 + $0x488] sm:$0xff]
    %v273 = vld [vmem:[#allocation6 + $0x490] sm:$0xff]
    %v274 = vld [vmem:[#allocation6 + $0x498] sm:$0xff]
    %v275 = vld [vmem:[#allocation6 + $0x4a0] sm:$0xff]
    %v276 = vld [vmem:[#allocation6 + $0x4a8] sm:$0xff]
    %v277 = vld [vmem:[#allocation6 + $0x4b0] sm:$0xff]
    %v278 = vld [vmem:[#allocation6 + $0x4b8] sm:$0xff]
    %v279 = vld [vmem:[#allocation6 + $0x4c0] sm:$0xff]
    %v280 = vld [vmem:[#allocation6 + $0x4c8] sm:$0xff]
    %v281 = vld [vmem:[#allocation6 + $0x4d0] sm:$0xff]
    %v282 = vld [vmem:[#allocation6 + $0x4d8] sm:$0xff]
    %v283 = vld [vmem:[#allocation6 + $0x4e0] sm:$0xff]
    %v284 = vld [vmem:[#allocation6 + $0x4e8] sm:$0xff]
    %v285 = vld [vmem:[#allocation6 + $0x4f0] sm:$0xff]
    %v286 = vld [vmem:[#allocation6 + $0x4f8] sm:$0xff]
    %v287 = vld [vmem:[#allocation6 + $0x500] sm:$0xff]
    %v288 = vld [vmem:[#allocation6 + $0x508] sm:$0xff]
    %v289 = vld [vmem:[#allocation6 + $0x510] sm:$0xff]
    %v290 = vld [vmem:[#allocation6 + $0x518] sm:$0xff]
    %v291 = vld [vmem:[#allocation6 + $0x520] sm:$0xff]
    %v292 = vld [vmem:[#allocation6 + $0x528] sm:$0xff]
    %v293 = vld [vmem:[#allocation6 + $0x530] sm:$0xff]
    %v294 = vld [vmem:[#allocation6 + $0x538] sm:$0xff]
    %v295 = vld [vmem:[#allocation6 + $0x540] sm:$0xff]
    %v296 = vld [vmem:[#allocation6 + $0x548] sm:$0xff]
    %v297 = vld [vmem:[#allocation6 + $0x550] sm:$0xff]
    %v298 = vld [vmem:[#allocation6 + $0x558] sm:$0xff]
    %v299 = vld [vmem:[#allocation6 + $0x560] sm:$0xff]
    %v300 = vld [vmem:[#allocation6 + $0x568] sm:$0xff]
    %v301 = vld [vmem:[#allocation6 + $0x570] sm:$0xff]
    %v302 = vld [vmem:[#allocation6 + $0x578] sm:$0xff]
    %v303 = vld [vmem:[#allocation6 + $0x580] sm:$0xff]
    %v304 = vld [vmem:[#allocation6 + $0x588] sm:$0xff]
    %v305 = vld [vmem:[#allocation6 + $0x590] sm:$0xff]
    %v306 = vld [vmem:[#allocation6 + $0x598] sm:$0xff]
    %v307 = vld [vmem:[#allocation6 + $0x5a0] sm:$0xff]
    %v308 = vld [vmem:[#allocation6 + $0x5a8] sm:$0xff]
    %v309 = vld [vmem:[#allocation6 + $0x5b0] sm:$0xff]
    %v310 = vld [vmem:[#allocation6 + $0x5b8] sm:$0xff]
    %v311 = vld [vmem:[#allocation6 + $0x5c0] sm:$0xff]
    %v312 = vld [vmem:[#allocation6 + $0x5c8] sm:$0xff]
    %v313 = vld [vmem:[#allocation6 + $0x5d0] sm:$0xff]
    %v314 = vld [vmem:[#allocation6 + $0x5d8] sm:$0xff]
    %v315 = vld [vmem:[#allocation6 + $0x5e0] sm:$0xff]
    %v316 = vld [vmem:[#allocation6 + $0x5e8] sm:$0xff]
    %v317 = vld [vmem:[#allocation6 + $0x5f0] sm:$0xff]
    %v318 = vld [vmem:[#allocation6 + $0x5f8] sm:$0xff]
    %v319 = vld [vmem:[#allocation6 + $0x600] sm:$0xff]
    %v320 = vld [vmem:[#allocation6 + $0x608] sm:$0xff]
    %v321 = vld [vmem:[#allocation6 + $0x610] sm:$0xff]
    %v322 = vld [vmem:[#allocation6 + $0x618] sm:$0xff]
    %v323 = vld [vmem:[#allocation6 + $0x620] sm:$0xff]
    %v324 = vld [vmem:[#allocation6 + $0x628] sm:$0xff]
    %v325 = vld [vmem:[#allocation6 + $0x630] sm:$0xff]
    %v326 = vld [vmem:[#allocation6 + $0x638] sm:$0xff]
    %v327 = vld [vmem:[#allocation6 + $0x640] sm:$0xff]
    %v328 = vld [vmem:[#allocation6 + $0x648] sm:$0xff]
    %v329 = vld [vmem:[#allocation6 + $0x650] sm:$0xff]
    %v330 = vld [vmem:[#allocation6 + $0x658] sm:$0xff]
    %v331 = vld [vmem:[#allocation6 + $0x660] sm:$0xff]
    %v332 = vld [vmem:[#allocation6 + $0x668] sm:$0xff]
    %v333 = vld [vmem:[#allocation6 + $0x670] sm:$0xff]
    %v334 = vld [vmem:[#allocation6 + $0x678] sm:$0xff]
    %v335 = vld [vmem:[#allocation6 + $0x680] sm:$0xff]
    %v336 = vld [vmem:[#allocation6 + $0x688] sm:$0xff]
    %v337 = vld [vmem:[#allocation6 + $0x690] sm:$0xff]
    %v338 = vld [vmem:[#allocation6 + $0x698] sm:$0xff]
    %v339 = vld [vmem:[#allocation6 + $0x6a0] sm:$0xff]
    %v340 = vld [vmem:[#allocation6 + $0x6a8] sm:$0xff]
    %v341 = vld [vmem:[#allocation6 + $0x6b0] sm:$0xff]
    %v342 = vld [vmem:[#allocation6 + $0x6b8] sm:$0xff]
    %v343 = vld [vmem:[#allocation6 + $0x6c0] sm:$0xff]
    %v344 = vld [vmem:[#allocation6 + $0x6c8] sm:$0xff]
    %v345 = vld [vmem:[#allocation6 + $0x6d0] sm:$0xff]
    %v346 = vld [vmem:[#allocation6 + $0x6d8] sm:$0xff]
    %v347 = vld [vmem:[#allocation6 + $0x6e0] sm:$0xff]
    %v348 = vld [vmem:[#allocation6 + $0x6e8] sm:$0xff]
    %v349 = vld [vmem:[#allocation6 + $0x6f0] sm:$0xff]
    %v350 = vld [vmem:[#allocation6 + $0x6f8] sm:$0xff]
    %v351 = vld [vmem:[#allocation6 + $0x700] sm:$0xff]
    %v352 = vld [vmem:[#allocation6 + $0x708] sm:$0xff]
    %v353 = vld [vmem:[#allocation6 + $0x710] sm:$0xff]
    %v354 = vld [vmem:[#allocation6 + $0x718] sm:$0xff]
    %v355 = vld [vmem:[#allocation6 + $0x720] sm:$0xff]
    %v356 = vld [vmem:[#allocation6 + $0x728] sm:$0xff]
    %v357 = vld [vmem:[#allocation6 + $0x730] sm:$0xff]
    %v358 = vld [vmem:[#allocation6 + $0x738] sm:$0xff]
    %v359 = vld [vmem:[#allocation6 + $0x740] sm:$0xff]
    %v360 = vld [vmem:[#allocation6 + $0x748] sm:$0xff]
    %v361 = vld [vmem:[#allocation6 + $0x750] sm:$0xff]
    %v362 = vld [vmem:[#allocation6 + $0x758] sm:$0xff]
    %v363 = vld [vmem:[#allocation6 + $0x760] sm:$0xff]
    %v364 = vld [vmem:[#allocation6 + $0x768] sm:$0xff]
    %v365 = vld [vmem:[#allocation6 + $0x770] sm:$0xff]
    %v366 = vld [vmem:[#allocation6 + $0x778] sm:$0xff]
    %v367 = vld [vmem:[#allocation6 + $0x780] sm:$0xff]
    %v368 = vld [vmem:[#allocation6 + $0x788] sm:$0xff]
    %v369 = vld [vmem:[#allocation6 + $0x790] sm:$0xff]
    %v370 = vld [vmem:[#allocation6 + $0x798] sm:$0xff]
    %v371 = vld [vmem:[#allocation6 + $0x7a0] sm:$0xff]
    %v372 = vld [vmem:[#allocation6 + $0x7a8] sm:$0xff]
    %v373 = vld [vmem:[#allocation6 + $0x7b0] sm:$0xff]
    %v374 = vld [vmem:[#allocation6 + $0x7b8] sm:$0xff]
    %v375 = vld [vmem:[#allocation6 + $0x7c0] sm:$0xff]
    %v376 = vld [vmem:[#allocation6 + $0x7c8] sm:$0xff]
    %v377 = vld [vmem:[#allocation6 + $0x7d0] sm:$0xff]
    %v378 = vld [vmem:[#allocation6 + $0x7d8] sm:$0xff]
    %v379 = vld [vmem:[#allocation6 + $0x7e0] sm:$0xff]
    %v380 = vld [vmem:[#allocation6 + $0x7e8] sm:$0xff]
    %v381 = vld [vmem:[#allocation6 + $0x7f0] sm:$0xff]
    %v382 = vld [vmem:[#allocation6 + $0x7f8] sm:$0xff]
    %vm383 = vcmp.eq.f32.partialorder %v123, 1.0
    %v384 = vsel %vm383, 1, 0
    %v385 = vcvt.s32.f32 %v384
    %s386 = scalar_lea.vmem [#allocation6], 2048
    %v387 = vld [vmem:[%s386] sm:$0xff]
    %v388 = vld [vmem:[%s386 + $0x8] sm:$0xff]
    %v389 = vld [vmem:[%s386 + $0x10] sm:$0xff]
    %v390 = vld [vmem:[%s386 + $0x18] sm:$0xff]
    %v391 = vld [vmem:[%s386 + $0x20] sm:$0xff]
    %v392 = vld [vmem:[%s386 + $0x28] sm:$0xff]
    %v393 = vld [vmem:[%s386 + $0x30] sm:$0xff]
    %v394 = vld [vmem:[%s386 + $0x38] sm:$0xff]
    %v395 = vld [vmem:[%s386 + $0x40] sm:$0xff]
    %v396 = vld [vmem:[%s386 + $0x48] sm:$0xff]
    %v397 = vld [vmem:[%s386 + $0x50] sm:$0xff]
    %v398 = vld [vmem:[%s386 + $0x58] sm:$0xff]
    %v399 = vld [vmem:[%s386 + $0x60] sm:$0xff]
    %v400 = vld [vmem:[%s386 + $0x68] sm:$0xff]
    %v401 = vld [vmem:[%s386 + $0x70] sm:$0xff]
    %v402 = vld [vmem:[%s386 + $0x78] sm:$0xff]
    %v403 = vld [vmem:[%s386 + $0x80] sm:$0xff]
    %v404 = vld [vmem:[%s386 + $0x88] sm:$0xff]
    %v405 = vld [vmem:[%s386 + $0x90] sm:$0xff]
    %v406 = vld [vmem:[%s386 + $0x98] sm:$0xff]
    %v407 = vld [vmem:[%s386 + $0xa0] sm:$0xff]
    %v408 = vld [vmem:[%s386 + $0xa8] sm:$0xff]
    %v409 = vld [vmem:[%s386 + $0xb0] sm:$0xff]
    %v410 = vld [vmem:[%s386 + $0xb8] sm:$0xff]
    %v411 = vld [vmem:[%s386 + $0xc0] sm:$0xff]
    %v412 = vld [vmem:[%s386 + $0xc8] sm:$0xff]
    %v413 = vld [vmem:[%s386 + $0xd0] sm:$0xff]
    %v414 = vld [vmem:[%s386 + $0xd8] sm:$0xff]
    %v415 = vld [vmem:[%s386 + $0xe0] sm:$0xff]
    %v416 = vld [vmem:[%s386 + $0xe8] sm:$0xff]
    %v417 = vld [vmem:[%s386 + $0xf0] sm:$0xff]
    %v418 = vld [vmem:[%s386 + $0xf8] sm:$0xff]
    %v419 = vld [vmem:[%s386 + $0x100] sm:$0xff]
    %v420 = vld [vmem:[%s386 + $0x108] sm:$0xff]
    %v421 = vld [vmem:[%s386 + $0x110] sm:$0xff]
    %v422 = vld [vmem:[%s386 + $0x118] sm:$0xff]
    %v423 = vld [vmem:[%s386 + $0x120] sm:$0xff]
    %v424 = vld [vmem:[%s386 + $0x128] sm:$0xff]
    %v425 = vld [vmem:[%s386 + $0x130] sm:$0xff]
    %v426 = vld [vmem:[%s386 + $0x138] sm:$0xff]
    %v427 = vld [vmem:[%s386 + $0x140] sm:$0xff]
    %v428 = vld [vmem:[%s386 + $0x148] sm:$0xff]
    %v429 = vld [vmem:[%s386 + $0x150] sm:$0xff]
    %v430 = vld [vmem:[%s386 + $0x158] sm:$0xff]
    %v431 = vld [vmem:[%s386 + $0x160] sm:$0xff]
    %v432 = vld [vmem:[%s386 + $0x168] sm:$0xff]
    %v433 = vld [vmem:[%s386 + $0x170] sm:$0xff]
    %v434 = vld [vmem:[%s386 + $0x178] sm:$0xff]
    %v435 = vld [vmem:[%s386 + $0x180] sm:$0xff]
    %v436 = vld [vmem:[%s386 + $0x188] sm:$0xff]
    %v437 = vld [vmem:[%s386 + $0x190] sm:$0xff]
    %v438 = vld [vmem:[%s386 + $0x198] sm:$0xff]
    %v439 = vld [vmem:[%s386 + $0x1a0] sm:$0xff]
    %v440 = vld [vmem:[%s386 + $0x1a8] sm:$0xff]
    %v441 = vld [vmem:[%s386 + $0x1b0] sm:$0xff]
    %v442 = vld [vmem:[%s386 + $0x1b8] sm:$0xff]
    %v443 = vld [vmem:[%s386 + $0x1c0] sm:$0xff]
    %v444 = vld [vmem:[%s386 + $0x1c8] sm:$0xff]
    %v445 = vld [vmem:[%s386 + $0x1d0] sm:$0xff]
    %v446 = vld [vmem:[%s386 + $0x1d8] sm:$0xff]
    %v447 = vld [vmem:[%s386 + $0x1e0] sm:$0xff]
    %v448 = vld [vmem:[%s386 + $0x1e8] sm:$0xff]
    %v449 = vld [vmem:[%s386 + $0x1f0] sm:$0xff]
    %v450 = vld [vmem:[%s386 + $0x1f8] sm:$0xff]
    %v451 = vld [vmem:[%s386 + $0x200] sm:$0xff]
    %v452 = vld [vmem:[%s386 + $0x208] sm:$0xff]
    %v453 = vld [vmem:[%s386 + $0x210] sm:$0xff]
    %v454 = vld [vmem:[%s386 + $0x218] sm:$0xff]
    %v455 = vld [vmem:[%s386 + $0x220] sm:$0xff]
    %v456 = vld [vmem:[%s386 + $0x228] sm:$0xff]
    %v457 = vld [vmem:[%s386 + $0x230] sm:$0xff]
    %v458 = vld [vmem:[%s386 + $0x238] sm:$0xff]
    %v459 = vld [vmem:[%s386 + $0x240] sm:$0xff]
    %v460 = vld [vmem:[%s386 + $0x248] sm:$0xff]
    %v461 = vld [vmem:[%s386 + $0x250] sm:$0xff]
    %v462 = vld [vmem:[%s386 + $0x258] sm:$0xff]
    %v463 = vld [vmem:[%s386 + $0x260] sm:$0xff]
    %v464 = vld [vmem:[%s386 + $0x268] sm:$0xff]
    %v465 = vld [vmem:[%s386 + $0x270] sm:$0xff]
    %v466 = vld [vmem:[%s386 + $0x278] sm:$0xff]
    %v467 = vld [vmem:[%s386 + $0x280] sm:$0xff]
    %v468 = vld [vmem:[%s386 + $0x288] sm:$0xff]
    %v469 = vld [vmem:[%s386 + $0x290] sm:$0xff]
    %v470 = vld [vmem:[%s386 + $0x298] sm:$0xff]
    %v471 = vld [vmem:[%s386 + $0x2a0] sm:$0xff]
    %v472 = vld [vmem:[%s386 + $0x2a8] sm:$0xff]
    %v473 = vld [vmem:[%s386 + $0x2b0] sm:$0xff]
    %v474 = vld [vmem:[%s386 + $0x2b8] sm:$0xff]
    %v475 = vld [vmem:[%s386 + $0x2c0] sm:$0xff]
    %v476 = vld [vmem:[%s386 + $0x2c8] sm:$0xff]
    %v477 = vld [vmem:[%s386 + $0x2d0] sm:$0xff]
    %v478 = vld [vmem:[%s386 + $0x2d8] sm:$0xff]
    %v479 = vld [vmem:[%s386 + $0x2e0] sm:$0xff]
    %v480 = vld [vmem:[%s386 + $0x2e8] sm:$0xff]
    %v481 = vld [vmem:[%s386 + $0x2f0] sm:$0xff]
    %v482 = vld [vmem:[%s386 + $0x2f8] sm:$0xff]
    %v483 = vld [vmem:[%s386 + $0x300] sm:$0xff]
    %v484 = vld [vmem:[%s386 + $0x308] sm:$0xff]
    %v485 = vld [vmem:[%s386 + $0x310] sm:$0xff]
    %v486 = vld [vmem:[%s386 + $0x318] sm:$0xff]
    %v487 = vld [vmem:[%s386 + $0x320] sm:$0xff]
    %v488 = vld [vmem:[%s386 + $0x328] sm:$0xff]
    %v489 = vld [vmem:[%s386 + $0x330] sm:$0xff]
    %v490 = vld [vmem:[%s386 + $0x338] sm:$0xff]
    %v491 = vld [vmem:[%s386 + $0x340] sm:$0xff]
    %v492 = vld [vmem:[%s386 + $0x348] sm:$0xff]
    %v493 = vld [vmem:[%s386 + $0x350] sm:$0xff]
    %v494 = vld [vmem:[%s386 + $0x358] sm:$0xff]
    %v495 = vld [vmem:[%s386 + $0x360] sm:$0xff]
    %v496 = vld [vmem:[%s386 + $0x368] sm:$0xff]
    %v497 = vld [vmem:[%s386 + $0x370] sm:$0xff]
    %v498 = vld [vmem:[%s386 + $0x378] sm:$0xff]
    %v499 = vld [vmem:[%s386 + $0x380] sm:$0xff]
    %v500 = vld [vmem:[%s386 + $0x388] sm:$0xff]
    %v501 = vld [vmem:[%s386 + $0x390] sm:$0xff]
    %v502 = vld [vmem:[%s386 + $0x398] sm:$0xff]
    %v503 = vld [vmem:[%s386 + $0x3a0] sm:$0xff]
    %v504 = vld [vmem:[%s386 + $0x3a8] sm:$0xff]
    %v505 = vld [vmem:[%s386 + $0x3b0] sm:$0xff]
    %v506 = vld [vmem:[%s386 + $0x3b8] sm:$0xff]
    %v507 = vld [vmem:[%s386 + $0x3c0] sm:$0xff]
    %v508 = vld [vmem:[%s386 + $0x3c8] sm:$0xff]
    %v509 = vld [vmem:[%s386 + $0x3d0] sm:$0xff]
    %v510 = vld [vmem:[%s386 + $0x3d8] sm:$0xff]
    %v511 = vld [vmem:[%s386 + $0x3e0] sm:$0xff]
    %v512 = vld [vmem:[%s386 + $0x3e8] sm:$0xff]
    %v513 = vld [vmem:[%s386 + $0x3f0] sm:$0xff]
    %v514 = vld [vmem:[%s386 + $0x3f8] sm:$0xff]
    %v515 = vld [vmem:[%s386 + $0x400] sm:$0xff]
    %v516 = vld [vmem:[%s386 + $0x408] sm:$0xff]
    %v517 = vld [vmem:[%s386 + $0x410] sm:$0xff]
    %v518 = vld [vmem:[%s386 + $0x418] sm:$0xff]
    %v519 = vld [vmem:[%s386 + $0x420] sm:$0xff]
    %v520 = vld [vmem:[%s386 + $0x428] sm:$0xff]
    %v521 = vld [vmem:[%s386 + $0x430] sm:$0xff]
    %v522 = vld [vmem:[%s386 + $0x438] sm:$0xff]
    %v523 = vld [vmem:[%s386 + $0x440] sm:$0xff]
    %v524 = vld [vmem:[%s386 + $0x448] sm:$0xff]
    %v525 = vld [vmem:[%s386 + $0x450] sm:$0xff]
    %v526 = vld [vmem:[%s386 + $0x458] sm:$0xff]
    %v527 = vld [vmem:[%s386 + $0x460] sm:$0xff]
    %v528 = vld [vmem:[%s386 + $0x468] sm:$0xff]
    %v529 = vld [vmem:[%s386 + $0x470] sm:$0xff]
    %v530 = vld [vmem:[%s386 + $0x478] sm:$0xff]
    %v531 = vld [vmem:[%s386 + $0x480] sm:$0xff]
    %v532 = vld [vmem:[%s386 + $0x488] sm:$0xff]
    %v533 = vld [vmem:[%s386 + $0x490] sm:$0xff]
    %v534 = vld [vmem:[%s386 + $0x498] sm:$0xff]
    %v535 = vld [vmem:[%s386 + $0x4a0] sm:$0xff]
    %v536 = vld [vmem:[%s386 + $0x4a8] sm:$0xff]
    %v537 = vld [vmem:[%s386 + $0x4b0] sm:$0xff]
    %v538 = vld [vmem:[%s386 + $0x4b8] sm:$0xff]
    %v539 = vld [vmem:[%s386 + $0x4c0] sm:$0xff]
    %v540 = vld [vmem:[%s386 + $0x4c8] sm:$0xff]
    %v541 = vld [vmem:[%s386 + $0x4d0] sm:$0xff]
    %v542 = vld [vmem:[%s386 + $0x4d8] sm:$0xff]
    %v543 = vld [vmem:[%s386 + $0x4e0] sm:$0xff]
    %v544 = vld [vmem:[%s386 + $0x4e8] sm:$0xff]
    %v545 = vld [vmem:[%s386 + $0x4f0] sm:$0xff]
    %v546 = vld [vmem:[%s386 + $0x4f8] sm:$0xff]
    %v547 = vld [vmem:[%s386 + $0x500] sm:$0xff]
    %v548 = vld [vmem:[%s386 + $0x508] sm:$0xff]
    %v549 = vld [vmem:[%s386 + $0x510] sm:$0xff]
    %v550 = vld [vmem:[%s386 + $0x518] sm:$0xff]
    %v551 = vld [vmem:[%s386 + $0x520] sm:$0xff]
    %v552 = vld [vmem:[%s386 + $0x528] sm:$0xff]
    %v553 = vld [vmem:[%s386 + $0x530] sm:$0xff]
    %v554 = vld [vmem:[%s386 + $0x538] sm:$0xff]
    %v555 = vld [vmem:[%s386 + $0x540] sm:$0xff]
    %v556 = vld [vmem:[%s386 + $0x548] sm:$0xff]
    %v557 = vld [vmem:[%s386 + $0x550] sm:$0xff]
    %v558 = vld [vmem:[%s386 + $0x558] sm:$0xff]
    %v559 = vld [vmem:[%s386 + $0x560] sm:$0xff]
    %v560 = vld [vmem:[%s386 + $0x568] sm:$0xff]
    %v561 = vld [vmem:[%s386 + $0x570] sm:$0xff]
    %v562 = vld [vmem:[%s386 + $0x578] sm:$0xff]
    %v563 = vld [vmem:[%s386 + $0x580] sm:$0xff]
    %v564 = vld [vmem:[%s386 + $0x588] sm:$0xff]
    %v565 = vld [vmem:[%s386 + $0x590] sm:$0xff]
    %v566 = vld [vmem:[%s386 + $0x598] sm:$0xff]
    %v567 = vld [vmem:[%s386 + $0x5a0] sm:$0xff]
    %v568 = vld [vmem:[%s386 + $0x5a8] sm:$0xff]
    %v569 = vld [vmem:[%s386 + $0x5b0] sm:$0xff]
    %v570 = vld [vmem:[%s386 + $0x5b8] sm:$0xff]
    %v571 = vld [vmem:[%s386 + $0x5c0] sm:$0xff]
    %v572 = vld [vmem:[%s386 + $0x5c8] sm:$0xff]
    %v573 = vld [vmem:[%s386 + $0x5d0] sm:$0xff]
    %v574 = vld [vmem:[%s386 + $0x5d8] sm:$0xff]
    %v575 = vld [vmem:[%s386 + $0x5e0] sm:$0xff]
    %v576 = vld [vmem:[%s386 + $0x5e8] sm:$0xff]
    %v577 = vld [vmem:[%s386 + $0x5f0] sm:$0xff]
    %v578 = vld [vmem:[%s386 + $0x5f8] sm:$0xff]
    %v579 = vld [vmem:[%s386 + $0x600] sm:$0xff]
    %v580 = vld [vmem:[%s386 + $0x608] sm:$0xff]
    %v581 = vld [vmem:[%s386 + $0x610] sm:$0xff]
    %v582 = vld [vmem:[%s386 + $0x618] sm:$0xff]
    %v583 = vld [vmem:[%s386 + $0x620] sm:$0xff]
    %v584 = vld [vmem:[%s386 + $0x628] sm:$0xff]
    %v585 = vld [vmem:[%s386 + $0x630] sm:$0xff]
    %v586 = vld [vmem:[%s386 + $0x638] sm:$0xff]
    %v587 = vld [vmem:[%s386 + $0x640] sm:$0xff]
    %v588 = vld [vmem:[%s386 + $0x648] sm:$0xff]
    %v589 = vld [vmem:[%s386 + $0x650] sm:$0xff]
    %v590 = vld [vmem:[%s386 + $0x658] sm:$0xff]
    %v591 = vld [vmem:[%s386 + $0x660] sm:$0xff]
    %v592 = vld [vmem:[%s386 + $0x668] sm:$0xff]
    %v593 = vld [vmem:[%s386 + $0x670] sm:$0xff]
    %v594 = vld [vmem:[%s386 + $0x678] sm:$0xff]
    %v595 = vld [vmem:[%s386 + $0x680] sm:$0xff]
    %v596 = vld [vmem:[%s386 + $0x688] sm:$0xff]
    %v597 = vld [vmem:[%s386 + $0x690] sm:$0xff]
    %v598 = vld [vmem:[%s386 + $0x698] sm:$0xff]
    %v599 = vld [vmem:[%s386 + $0x6a0] sm:$0xff]
    %v600 = vld [vmem:[%s386 + $0x6a8] sm:$0xff]
    %v601 = vld [vmem:[%s386 + $0x6b0] sm:$0xff]
    %v602 = vld [vmem:[%s386 + $0x6b8] sm:$0xff]
    %v603 = vld [vmem:[%s386 + $0x6c0] sm:$0xff]
    %v604 = vld [vmem:[%s386 + $0x6c8] sm:$0xff]
    %v605 = vld [vmem:[%s386 + $0x6d0] sm:$0xff]
    %v606 = vld [vmem:[%s386 + $0x6d8] sm:$0xff]
    %v607 = vld [vmem:[%s386 + $0x6e0] sm:$0xff]
    %v608 = vld [vmem:[%s386 + $0x6e8] sm:$0xff]
    %v609 = vld [vmem:[%s386 + $0x6f0] sm:$0xff]
    %v610 = vld [vmem:[%s386 + $0x6f8] sm:$0xff]
    %v611 = vld [vmem:[%s386 + $0x700] sm:$0xff]
    %v612 = vld [vmem:[%s386 + $0x708] sm:$0xff]
    %v613 = vld [vmem:[%s386 + $0x710] sm:$0xff]
    %v614 = vld [vmem:[%s386 + $0x718] sm:$0xff]
    %v615 = vld [vmem:[%s386 + $0x720] sm:$0xff]
    %v616 = vld [vmem:[%s386 + $0x728] sm:$0xff]
    %v617 = vld [vmem:[%s386 + $0x730] sm:$0xff]
    %v618 = vld [vmem:[%s386 + $0x738] sm:$0xff]
    %v619 = vld [vmem:[%s386 + $0x740] sm:$0xff]
    %v620 = vld [vmem:[%s386 + $0x748] sm:$0xff]
    %v621 = vld [vmem:[%s386 + $0x750] sm:$0xff]
    %v622 = vld [vmem:[%s386 + $0x758] sm:$0xff]
    %v623 = vld [vmem:[%s386 + $0x760] sm:$0xff]
    %v624 = vld [vmem:[%s386 + $0x768] sm:$0xff]
    %v625 = vld [vmem:[%s386 + $0x770] sm:$0xff]
    %v626 = vld [vmem:[%s386 + $0x778] sm:$0xff]
    %v627 = vld [vmem:[%s386 + $0x780] sm:$0xff]
    %v628 = vld [vmem:[%s386 + $0x788] sm:$0xff]
    %v629 = vld [vmem:[%s386 + $0x790] sm:$0xff]
    %v630 = vld [vmem:[%s386 + $0x798] sm:$0xff]
    %v631 = vld [vmem:[%s386 + $0x7a0] sm:$0xff]
    %v632 = vld [vmem:[%s386 + $0x7a8] sm:$0xff]
    %v633 = vld [vmem:[%s386 + $0x7b0] sm:$0xff]
    %v634 = vld [vmem:[%s386 + $0x7b8] sm:$0xff]
    %v635 = vld [vmem:[%s386 + $0x7c0] sm:$0xff]
    %v636 = vld [vmem:[%s386 + $0x7c8] sm:$0xff]
    %v637 = vld [vmem:[%s386 + $0x7d0] sm:$0xff]
    %v638 = vld [vmem:[%s386 + $0x7d8] sm:$0xff]
    %v639 = vld [vmem:[%s386 + $0x7e0] sm:$0xff]
    %v640 = vld [vmem:[%s386 + $0x7e8] sm:$0xff]
    %v641 = vld [vmem:[%s386 + $0x7f0] sm:$0xff]
    %v642 = vld [vmem:[%s386 + $0x7f8] sm:$0xff]
    %v644 = vcombine.high %v385, %v385
    %v646 = vunpack.c.l.s4 1983009808
    %v647 = vunpack.c.0.s8 %v646
    %v648 = vlaneseq
    %v649 = vshrl.u32 %v648, 7
    %v650 = vsub.s32 %v647, %v649
    %v651 = vrot.slane %v385, %v650
    %v653 = vunpack.c.l.s4 1983009808
    %v654 = vunpack.c.0.s8 %v653
    %v655 = vlaneseq
    %v656 = vshrl.u32 %v655, 7
    %v657 = vsub.s32 %v654, %v656
    %v658 = vrot.slane %v644, %v657
    %v659 = vcombine.high %v651, %v651
    %v660 = vcombine.high %v658, %v658
    %665 = vmatprep.subr.mxu0 %v448
    %666 = vmatpush1.msra.mxu0 %v447
    %667 = vmatprep.subr.mxu0 %v444
    %668 = vmatpush1.msra.mxu0 %v443
    %669 = vmatprep.subr.mxu0 %v440
    %670 = vmatpush1.msra.mxu0 %v439
    %671 = vmatprep.subr.mxu0 %v436
    %672 = vmatpush1.msra.mxu0 %v435
    %673 = vmatprep.subr.mxu0 %v432
    %674 = vmatpush1.msra.mxu0 %v431
    %675 = vmatprep.subr.mxu0 %v428
    %676 = vmatpush1.msra.mxu0 %v427
    %677 = vmatprep.subr.mxu0 %v424
    %678 = vmatpush1.msra.mxu0 %v423
    %679 = vmatprep.subr.mxu0 %v420
    %680 = vmatpush1.msra.mxu0 %v419
    %681 = vmatprep.subr.mxu0 %v416
    %682 = vmatpush1.msra.mxu0 %v415
    %683 = vmatprep.subr.mxu0 %v412
    %684 = vmatpush1.msra.mxu0 %v411
    %685 = vmatprep.subr.mxu0 %v408
    %686 = vmatpush1.msra.mxu0 %v407
    %687 = vmatprep.subr.mxu0 %v404
    %688 = vmatpush1.msra.mxu0 %v403
    %689 = vmatprep.subr.mxu0 %v400
    %690 = vmatpush1.msra.mxu0 %v399
    %691 = vmatprep.subr.mxu0 %v396
    %692 = vmatpush1.msra.mxu0 %v395
    %693 = vmatprep.subr.mxu0 %v392
    %694 = vmatpush1.msra.mxu0 %v391
    %695 = vmatprep.subr.mxu0 %v388
    %696 = vmatpush1.msra.mxu0 %v387
    %697 = vmatprep.subr.mxu0 %v512
    %698 = vmatpush2.msra.mxu0 %v511
    %699 = vmatprep.subr.mxu0 %v508
    %700 = vmatpush2.msra.mxu0 %v507
    %701 = vmatprep.subr.mxu0 %v504
    %702 = vmatpush2.msra.mxu0 %v503
    %703 = vmatprep.subr.mxu0 %v500
    %704 = vmatpush2.msra.mxu0 %v499
    %705 = vmatprep.subr.mxu0 %v496
    %706 = vmatpush2.msra.mxu0 %v495
    %707 = vmatprep.subr.mxu0 %v492
    %708 = vmatpush2.msra.mxu0 %v491
    %709 = vmatprep.subr.mxu0 %v488
    %710 = vmatpush2.msra.mxu0 %v487
    %711 = vmatprep.subr.mxu0 %v484
    %712 = vmatpush2.msra.mxu0 %v483
    %713 = vmatprep.subr.mxu0 %v480
    %714 = vmatpush2.msra.mxu0 %v479
    %715 = vmatprep.subr.mxu0 %v476
    %716 = vmatpush2.msra.mxu0 %v475
    %717 = vmatprep.subr.mxu0 %v472
    %718 = vmatpush2.msra.mxu0 %v471
    %719 = vmatprep.subr.mxu0 %v468
    %720 = vmatpush2.msra.mxu0 %v467
    %721 = vmatprep.subr.mxu0 %v464
    %722 = vmatpush2.msra.mxu0 %v463
    %723 = vmatprep.subr.mxu0 %v460
    %724 = vmatpush2.msra.mxu0 %v459
    %725 = vmatprep.subr.mxu0 %v456
    %726 = vmatpush2.msra.mxu0 %v455
    %727 = vmatprep.subr.mxu0 %v452
    %728 = vmatpush2.msra.mxu0 %v451
    %729 = vmatprep.mubr.f32.mxu0 %v659
    %730 = vmatmul.mubr.f32.gmra.mxu0 %v651
    %v731 = vpop.f32.mrf.mxu0
    %v732 = vadd.f32 0.0, %v731
    %v733 = vpop.f32.mrf.mxu0
    %v734 = vadd.f32 0.0, %v733
    %735 = vdwg.mxu0
    %736 = vmatprep.subr.mxu0 %v576
    %737 = vmatpush1.msra.mxu0 %v575
    %738 = vmatprep.subr.mxu0 %v572
    %739 = vmatpush1.msra.mxu0 %v571
    %740 = vmatprep.subr.mxu0 %v568
    %741 = vmatpush1.msra.mxu0 %v567
    %742 = vmatprep.subr.mxu0 %v564
    %743 = vmatpush1.msra.mxu0 %v563
    %744 = vmatprep.subr.mxu0 %v560
    %745 = vmatpush1.msra.mxu0 %v559
    %746 = vmatprep.subr.mxu0 %v556
    %747 = vmatpush1.msra.mxu0 %v555
    %748 = vmatprep.subr.mxu0 %v552
    %749 = vmatpush1.msra.mxu0 %v551
    %750 = vmatprep.subr.mxu0 %v548
    %751 = vmatpush1.msra.mxu0 %v547
    %752 = vmatprep.subr.mxu0 %v544
    %753 = vmatpush1.msra.mxu0 %v543
    %754 = vmatprep.subr.mxu0 %v540
    %755 = vmatpush1.msra.mxu0 %v539
    %756 = vmatprep.subr.mxu0 %v536
    %757 = vmatpush1.msra.mxu0 %v535
    %758 = vmatprep.subr.mxu0 %v532
    %759 = vmatpush1.msra.mxu0 %v531
    %760 = vmatprep.subr.mxu0 %v528
    %761 = vmatpush1.msra.mxu0 %v527
    %762 = vmatprep.subr.mxu0 %v524
    %763 = vmatpush1.msra.mxu0 %v523
    %764 = vmatprep.subr.mxu0 %v520
    %765 = vmatpush1.msra.mxu0 %v519
    %766 = vmatprep.subr.mxu0 %v516
    %767 = vmatpush1.msra.mxu0 %v515
    %768 = vmatprep.subr.mxu0 %v640
    %769 = vmatpush2.msra.mxu0 %v639
    %770 = vmatprep.subr.mxu0 %v636
    %771 = vmatpush2.msra.mxu0 %v635
    %772 = vmatprep.subr.mxu0 %v632
    %773 = vmatpush2.msra.mxu0 %v631
    %774 = vmatprep.subr.mxu0 %v628
    %775 = vmatpush2.msra.mxu0 %v627
    %776 = vmatprep.subr.mxu0 %v624
    %777 = vmatpush2.msra.mxu0 %v623
    %778 = vmatprep.subr.mxu0 %v620
    %779 = vmatpush2.msra.mxu0 %v619
    %780 = vmatprep.subr.mxu0 %v616
    %781 = vmatpush2.msra.mxu0 %v615
    %782 = vmatprep.subr.mxu0 %v612
    %783 = vmatpush2.msra.mxu0 %v611
    %784 = vmatprep.subr.mxu0 %v608
    %785 = vmatpush2.msra.mxu0 %v607
    %786 = vmatprep.subr.mxu0 %v604
    %787 = vmatpush2.msra.mxu0 %v603
    %788 = vmatprep.subr.mxu0 %v600
    %789 = vmatpush2.msra.mxu0 %v599
    %790 = vmatprep.subr.mxu0 %v596
    %791 = vmatpush2.msra.mxu0 %v595
    %792 = vmatprep.subr.mxu0 %v592
    %793 = vmatpush2.msra.mxu0 %v591
    %794 = vmatprep.subr.mxu0 %v588
    %795 = vmatpush2.msra.mxu0 %v587
    %796 = vmatprep.subr.mxu0 %v584
    %797 = vmatpush2.msra.mxu0 %v583
    %798 = vmatprep.subr.mxu0 %v580
    %799 = vmatpush2.msra.mxu0 %v579
    %800 = vmatprep.mubr.f32.mxu0 %v660
    %801 = vmatmul.mubr.f32.gmra.mxu0 %v658
    %v802 = vpop.f32.mrf.mxu0
    %v803 = vadd.f32 %v732, %v802
    %v804 = vpop.f32.mrf.mxu0
    %v805 = vadd.f32 %v734, %v804
    %806 = vdwg.mxu0
    %807 = vmatprep.subr.mxu0 %v450
    %808 = vmatpush1.msra.mxu0 %v449
    %809 = vmatprep.subr.mxu0 %v446
    %810 = vmatpush1.msra.mxu0 %v445
    %811 = vmatprep.subr.mxu0 %v442
    %812 = vmatpush1.msra.mxu0 %v441
    %813 = vmatprep.subr.mxu0 %v438
    %814 = vmatpush1.msra.mxu0 %v437
    %815 = vmatprep.subr.mxu0 %v434
    %816 = vmatpush1.msra.mxu0 %v433
    %817 = vmatprep.subr.mxu0 %v430
    %818 = vmatpush1.msra.mxu0 %v429
    %819 = vmatprep.subr.mxu0 %v426
    %820 = vmatpush1.msra.mxu0 %v425
    %821 = vmatprep.subr.mxu0 %v422
    %822 = vmatpush1.msra.mxu0 %v421
    %823 = vmatprep.subr.mxu0 %v418
    %824 = vmatpush1.msra.mxu0 %v417
    %825 = vmatprep.subr.mxu0 %v414
    %826 = vmatpush1.msra.mxu0 %v413
    %827 = vmatprep.subr.mxu0 %v410
    %828 = vmatpush1.msra.mxu0 %v409
    %829 = vmatprep.subr.mxu0 %v406
    %830 = vmatpush1.msra.mxu0 %v405
    %831 = vmatprep.subr.mxu0 %v402
    %832 = vmatpush1.msra.mxu0 %v401
    %833 = vmatprep.subr.mxu0 %v398
    %834 = vmatpush1.msra.mxu0 %v397
    %835 = vmatprep.subr.mxu0 %v394
    %836 = vmatpush1.msra.mxu0 %v393
    %837 = vmatprep.subr.mxu0 %v390
    %838 = vmatpush1.msra.mxu0 %v389
    %839 = vmatprep.subr.mxu0 %v514
    %840 = vmatpush2.msra.mxu0 %v513
    %841 = vmatprep.subr.mxu0 %v510
    %842 = vmatpush2.msra.mxu0 %v509
    %843 = vmatprep.subr.mxu0 %v506
    %844 = vmatpush2.msra.mxu0 %v505
    %845 = vmatprep.subr.mxu0 %v502
    %846 = vmatpush2.msra.mxu0 %v501
    %847 = vmatprep.subr.mxu0 %v498
    %848 = vmatpush2.msra.mxu0 %v497
    %849 = vmatprep.subr.mxu0 %v494
    %850 = vmatpush2.msra.mxu0 %v493
    %851 = vmatprep.subr.mxu0 %v490
    %852 = vmatpush2.msra.mxu0 %v489
    %853 = vmatprep.subr.mxu0 %v486
    %854 = vmatpush2.msra.mxu0 %v485
    %855 = vmatprep.subr.mxu0 %v482
    %856 = vmatpush2.msra.mxu0 %v481
    %857 = vmatprep.subr.mxu0 %v478
    %858 = vmatpush2.msra.mxu0 %v477
    %859 = vmatprep.subr.mxu0 %v474
    %860 = vmatpush2.msra.mxu0 %v473
    %861 = vmatprep.subr.mxu0 %v470
    %862 = vmatpush2.msra.mxu0 %v469
    %863 = vmatprep.subr.mxu0 %v466
    %864 = vmatpush2.msra.mxu0 %v465
    %865 = vmatprep.subr.mxu0 %v462
    %866 = vmatpush2.msra.mxu0 %v461
    %867 = vmatprep.subr.mxu0 %v458
    %868 = vmatpush2.msra.mxu0 %v457
    %869 = vmatprep.subr.mxu0 %v454
    %870 = vmatpush2.msra.mxu0 %v453
    %871 = vmatprep.mubr.f32.mxu0 %v659
    %872 = vmatmul.mubr.f32.gmra.mxu0 %v651
    %v873 = vpop.f32.mrf.mxu0
    %v874 = vadd.f32 0.0, %v873
    %v875 = vpop.f32.mrf.mxu0
    %v876 = vadd.f32 0.0, %v875
    %877 = vdwg.mxu0
    %878 = vmatprep.subr.mxu0 %v578
    %879 = vmatpush1.msra.mxu0 %v577
    %880 = vmatprep.subr.mxu0 %v574
    %881 = vmatpush1.msra.mxu0 %v573
    %882 = vmatprep.subr.mxu0 %v570
    %883 = vmatpush1.msra.mxu0 %v569
    %884 = vmatprep.subr.mxu0 %v566
    %885 = vmatpush1.msra.mxu0 %v565
    %886 = vmatprep.subr.mxu0 %v562
    %887 = vmatpush1.msra.mxu0 %v561
    %888 = vmatprep.subr.mxu0 %v558
    %889 = vmatpush1.msra.mxu0 %v557
    %890 = vmatprep.subr.mxu0 %v554
    %891 = vmatpush1.msra.mxu0 %v553
    %892 = vmatprep.subr.mxu0 %v550
    %893 = vmatpush1.msra.mxu0 %v549
    %894 = vmatprep.subr.mxu0 %v546
    %895 = vmatpush1.msra.mxu0 %v545
    %896 = vmatprep.subr.mxu0 %v542
    %897 = vmatpush1.msra.mxu0 %v541
    %898 = vmatprep.subr.mxu0 %v538
    %899 = vmatpush1.msra.mxu0 %v537
    %900 = vmatprep.subr.mxu0 %v534
    %901 = vmatpush1.msra.mxu0 %v533
    %902 = vmatprep.subr.mxu0 %v530
    %903 = vmatpush1.msra.mxu0 %v529
    %904 = vmatprep.subr.mxu0 %v526
    %905 = vmatpush1.msra.mxu0 %v525
    %906 = vmatprep.subr.mxu0 %v522
    %907 = vmatpush1.msra.mxu0 %v521
    %908 = vmatprep.subr.mxu0 %v518
    %909 = vmatpush1.msra.mxu0 %v517
    %910 = vmatprep.subr.mxu0 %v642
    %911 = vmatpush2.msra.mxu0 %v641
    %912 = vmatprep.subr.mxu0 %v638
    %913 = vmatpush2.msra.mxu0 %v637
    %914 = vmatprep.subr.mxu0 %v634
    %915 = vmatpush2.msra.mxu0 %v633
    %916 = vmatprep.subr.mxu0 %v630
    %917 = vmatpush2.msra.mxu0 %v629
    %918 = vmatprep.subr.mxu0 %v626
    %919 = vmatpush2.msra.mxu0 %v625
    %920 = vmatprep.subr.mxu0 %v622
    %921 = vmatpush2.msra.mxu0 %v621
    %922 = vmatprep.subr.mxu0 %v618
    %923 = vmatpush2.msra.mxu0 %v617
    %924 = vmatprep.subr.mxu0 %v614
    %925 = vmatpush2.msra.mxu0 %v613
    %926 = vmatprep.subr.mxu0 %v610
    %927 = vmatpush2.msra.mxu0 %v609
    %928 = vmatprep.subr.mxu0 %v606
    %929 = vmatpush2.msra.mxu0 %v605
    %930 = vmatprep.subr.mxu0 %v602
    %931 = vmatpush2.msra.mxu0 %v601
    %932 = vmatprep.subr.mxu0 %v598
    %933 = vmatpush2.msra.mxu0 %v597
    %934 = vmatprep.subr.mxu0 %v594
    %935 = vmatpush2.msra.mxu0 %v593
    %936 = vmatprep.subr.mxu0 %v590
    %937 = vmatpush2.msra.mxu0 %v589
    %938 = vmatprep.subr.mxu0 %v586
    %939 = vmatpush2.msra.mxu0 %v585
    %940 = vmatprep.subr.mxu0 %v582
    %941 = vmatpush2.msra.mxu0 %v581
    %942 = vmatprep.mubr.f32.mxu0 %v660
    %943 = vmatmul.mubr.f32.gmra.mxu0 %v658
    %v944 = vpop.f32.mrf.mxu0
    %v945 = vadd.f32 %v874, %v944
    %v946 = vpop.f32.mrf.mxu0
    %v947 = vadd.f32 %v876, %v946
    %948 = vdwg.mxu0
    %v950 = vcombine.high %v126, %v126
    %v952 = vunpack.c.l.s4 1983009808
    %v953 = vunpack.c.0.s8 %v952
    %v954 = vlaneseq
    %v955 = vshrl.u32 %v954, 7
    %v956 = vsub.s32 %v953, %v955
    %v957 = vrot.slane %v126, %v956
    %v959 = vunpack.c.l.s4 1983009808
    %v960 = vunpack.c.0.s8 %v959
    %v961 = vlaneseq
    %v962 = vshrl.u32 %v961, 7
    %v963 = vsub.s32 %v960, %v962
    %v964 = vrot.slane %v950, %v963
    %v965 = vcombine.high %v957, %v957
    %v966 = vcombine.high %v964, %v964
    %971 = vmatprep.subr.mxu0 %v188
    %972 = vmatpush1.msra.mxu0 %v187
    %973 = vmatprep.subr.mxu0 %v184
    %974 = vmatpush1.msra.mxu0 %v183
    %975 = vmatprep.subr.mxu0 %v180
    %976 = vmatpush1.msra.mxu0 %v179
    %977 = vmatprep.subr.mxu0 %v176
    %978 = vmatpush1.msra.mxu0 %v175
    %979 = vmatprep.subr.mxu0 %v172
    %980 = vmatpush1.msra.mxu0 %v171
    %981 = vmatprep.subr.mxu0 %v168
    %982 = vmatpush1.msra.mxu0 %v167
    %983 = vmatprep.subr.mxu0 %v164
    %984 = vmatpush1.msra.mxu0 %v163
    %985 = vmatprep.subr.mxu0 %v160
    %986 = vmatpush1.msra.mxu0 %v159
    %987 = vmatprep.subr.mxu0 %v156
    %988 = vmatpush1.msra.mxu0 %v155
    %989 = vmatprep.subr.mxu0 %v152
    %990 = vmatpush1.msra.mxu0 %v151
    %991 = vmatprep.subr.mxu0 %v148
    %992 = vmatpush1.msra.mxu0 %v147
    %993 = vmatprep.subr.mxu0 %v144
    %994 = vmatpush1.msra.mxu0 %v143
    %995 = vmatprep.subr.mxu0 %v140
    %996 = vmatpush1.msra.mxu0 %v139
    %997 = vmatprep.subr.mxu0 %v136
    %998 = vmatpush1.msra.mxu0 %v135
    %999 = vmatprep.subr.mxu0 %v132
    %1000 = vmatpush1.msra.mxu0 %v131
    %1001 = vmatprep.subr.mxu0 %v128
    %1002 = vmatpush1.msra.mxu0 %v127
    %1003 = vmatprep.subr.mxu0 %v252
    %1004 = vmatpush2.msra.mxu0 %v251
    %1005 = vmatprep.subr.mxu0 %v248
    %1006 = vmatpush2.msra.mxu0 %v247
    %1007 = vmatprep.subr.mxu0 %v244
    %1008 = vmatpush2.msra.mxu0 %v243
    %1009 = vmatprep.subr.mxu0 %v240
    %1010 = vmatpush2.msra.mxu0 %v239
    %1011 = vmatprep.subr.mxu0 %v236
    %1012 = vmatpush2.msra.mxu0 %v235
    %1013 = vmatprep.subr.mxu0 %v232
    %1014 = vmatpush2.msra.mxu0 %v231
    %1015 = vmatprep.subr.mxu0 %v228
    %1016 = vmatpush2.msra.mxu0 %v227
    %1017 = vmatprep.subr.mxu0 %v224
    %1018 = vmatpush2.msra.mxu0 %v223
    %1019 = vmatprep.subr.mxu0 %v220
    %1020 = vmatpush2.msra.mxu0 %v219
    %1021 = vmatprep.subr.mxu0 %v216
    %1022 = vmatpush2.msra.mxu0 %v215
    %1023 = vmatprep.subr.mxu0 %v212
    %1024 = vmatpush2.msra.mxu0 %v211
    %1025 = vmatprep.subr.mxu0 %v208
    %1026 = vmatpush2.msra.mxu0 %v207
    %1027 = vmatprep.subr.mxu0 %v204
    %1028 = vmatpush2.msra.mxu0 %v203
    %1029 = vmatprep.subr.mxu0 %v200
    %1030 = vmatpush2.msra.mxu0 %v199
    %1031 = vmatprep.subr.mxu0 %v196
    %1032 = vmatpush2.msra.mxu0 %v195
    %1033 = vmatprep.subr.mxu0 %v192
    %1034 = vmatpush2.msra.mxu0 %v191
    %1035 = vmatprep.mubr.f32.mxu0 %v965
    %1036 = vmatmul.mubr.f32.gmra.mxu0 %v957
    %v1037 = vpop.f32.mrf.mxu0
    %v1038 = vadd.f32 %v803, %v1037
    %v1039 = vpop.f32.mrf.mxu0
    %v1040 = vadd.f32 %v805, %v1039
    %1041 = vdwg.mxu0
    %1042 = vmatprep.subr.mxu0 %v316
    %1043 = vmatpush1.msra.mxu0 %v315
    %1044 = vmatprep.subr.mxu0 %v312
    %1045 = vmatpush1.msra.mxu0 %v311
    %1046 = vmatprep.subr.mxu0 %v308
    %1047 = vmatpush1.msra.mxu0 %v307
    %1048 = vmatprep.subr.mxu0 %v304
    %1049 = vmatpush1.msra.mxu0 %v303
    %1050 = vmatprep.subr.mxu0 %v300
    %1051 = vmatpush1.msra.mxu0 %v299
    %1052 = vmatprep.subr.mxu0 %v296
    %1053 = vmatpush1.msra.mxu0 %v295
    %1054 = vmatprep.subr.mxu0 %v292
    %1055 = vmatpush1.msra.mxu0 %v291
    %1056 = vmatprep.subr.mxu0 %v288
    %1057 = vmatpush1.msra.mxu0 %v287
    %1058 = vmatprep.subr.mxu0 %v284
    %1059 = vmatpush1.msra.mxu0 %v283
    %1060 = vmatprep.subr.mxu0 %v280
    %1061 = vmatpush1.msra.mxu0 %v279
    %1062 = vmatprep.subr.mxu0 %v276
    %1063 = vmatpush1.msra.mxu0 %v275
    %1064 = vmatprep.subr.mxu0 %v272
    %1065 = vmatpush1.msra.mxu0 %v271
    %1066 = vmatprep.subr.mxu0 %v268
    %1067 = vmatpush1.msra.mxu0 %v267
    %1068 = vmatprep.subr.mxu0 %v264
    %1069 = vmatpush1.msra.mxu0 %v263
    %1070 = vmatprep.subr.mxu0 %v260
    %1071 = vmatpush1.msra.mxu0 %v259
    %1072 = vmatprep.subr.mxu0 %v256
    %1073 = vmatpush1.msra.mxu0 %v255
    %1074 = vmatprep.subr.mxu0 %v380
    %1075 = vmatpush2.msra.mxu0 %v379
    %1076 = vmatprep.subr.mxu0 %v376
    %1077 = vmatpush2.msra.mxu0 %v375
    %1078 = vmatprep.subr.mxu0 %v372
    %1079 = vmatpush2.msra.mxu0 %v371
    %1080 = vmatprep.subr.mxu0 %v368
    %1081 = vmatpush2.msra.mxu0 %v367
    %1082 = vmatprep.subr.mxu0 %v364
    %1083 = vmatpush2.msra.mxu0 %v363
    %1084 = vmatprep.subr.mxu0 %v360
    %1085 = vmatpush2.msra.mxu0 %v359
    %1086 = vmatprep.subr.mxu0 %v356
    %1087 = vmatpush2.msra.mxu0 %v355
    %1088 = vmatprep.subr.mxu0 %v352
    %1089 = vmatpush2.msra.mxu0 %v351
    %1090 = vmatprep.subr.mxu0 %v348
    %1091 = vmatpush2.msra.mxu0 %v347
    %1092 = vmatprep.subr.mxu0 %v344
    %1093 = vmatpush2.msra.mxu0 %v343
    %1094 = vmatprep.subr.mxu0 %v340
    %1095 = vmatpush2.msra.mxu0 %v339
    %1096 = vmatprep.subr.mxu0 %v336
    %1097 = vmatpush2.msra.mxu0 %v335
    %1098 = vmatprep.subr.mxu0 %v332
    %1099 = vmatpush2.msra.mxu0 %v331
    %1100 = vmatprep.subr.mxu0 %v328
    %1101 = vmatpush2.msra.mxu0 %v327
    %1102 = vmatprep.subr.mxu0 %v324
    %1103 = vmatpush2.msra.mxu0 %v323
    %1104 = vmatprep.subr.mxu0 %v320
    %1105 = vmatpush2.msra.mxu0 %v319
    %1106 = vmatprep.mubr.f32.mxu0 %v966
    %1107 = vmatmul.mubr.f32.gmra.mxu0 %v964
    %v1108 = vpop.f32.mrf.mxu0
    %v1109 = vadd.f32 %v1038, %v1108
    %v1110 = vpop.f32.mrf.mxu0
    %v1111 = vadd.f32 %v1040, %v1110
    %1112 = vdwg.mxu0
    %1113 = vmatprep.subr.mxu0 %v190
    %1114 = vmatpush1.msra.mxu0 %v189
    %1115 = vmatprep.subr.mxu0 %v186
    %1116 = vmatpush1.msra.mxu0 %v185
    %1117 = vmatprep.subr.mxu0 %v182
    %1118 = vmatpush1.msra.mxu0 %v181
    %1119 = vmatprep.subr.mxu0 %v178
    %1120 = vmatpush1.msra.mxu0 %v177
    %1121 = vmatprep.subr.mxu0 %v174
    %1122 = vmatpush1.msra.mxu0 %v173
    %1123 = vmatprep.subr.mxu0 %v170
    %1124 = vmatpush1.msra.mxu0 %v169
    %1125 = vmatprep.subr.mxu0 %v166
    %1126 = vmatpush1.msra.mxu0 %v165
    %1127 = vmatprep.subr.mxu0 %v162
    %1128 = vmatpush1.msra.mxu0 %v161
    %1129 = vmatprep.subr.mxu0 %v158
    %1130 = vmatpush1.msra.mxu0 %v157
    %1131 = vmatprep.subr.mxu0 %v154
    %1132 = vmatpush1.msra.mxu0 %v153
    %1133 = vmatprep.subr.mxu0 %v150
    %1134 = vmatpush1.msra.mxu0 %v149
    %1135 = vmatprep.subr.mxu0 %v146
    %1136 = vmatpush1.msra.mxu0 %v145
    %1137 = vmatprep.subr.mxu0 %v142
    %1138 = vmatpush1.msra.mxu0 %v141
    %1139 = vmatprep.subr.mxu0 %v138
    %1140 = vmatpush1.msra.mxu0 %v137
    %1141 = vmatprep.subr.mxu0 %v134
    %1142 = vmatpush1.msra.mxu0 %v133
    %1143 = vmatprep.subr.mxu0 %v130
    %1144 = vmatpush1.msra.mxu0 %v129
    %1145 = vmatprep.subr.mxu0 %v254
    %1146 = vmatpush2.msra.mxu0 %v253
    %1147 = vmatprep.subr.mxu0 %v250
    %1148 = vmatpush2.msra.mxu0 %v249
    %1149 = vmatprep.subr.mxu0 %v246
    %1150 = vmatpush2.msra.mxu0 %v245
    %1151 = vmatprep.subr.mxu0 %v242
    %1152 = vmatpush2.msra.mxu0 %v241
    %1153 = vmatprep.subr.mxu0 %v238
    %1154 = vmatpush2.msra.mxu0 %v237
    %1155 = vmatprep.subr.mxu0 %v234
    %1156 = vmatpush2.msra.mxu0 %v233
    %1157 = vmatprep.subr.mxu0 %v230
    %1158 = vmatpush2.msra.mxu0 %v229
    %1159 = vmatprep.subr.mxu0 %v226
    %1160 = vmatpush2.msra.mxu0 %v225
    %1161 = vmatprep.subr.mxu0 %v222
    %1162 = vmatpush2.msra.mxu0 %v221
    %1163 = vmatprep.subr.mxu0 %v218
    %1164 = vmatpush2.msra.mxu0 %v217
    %1165 = vmatprep.subr.mxu0 %v214
    %1166 = vmatpush2.msra.mxu0 %v213
    %1167 = vmatprep.subr.mxu0 %v210
    %1168 = vmatpush2.msra.mxu0 %v209
    %1169 = vmatprep.subr.mxu0 %v206
    %1170 = vmatpush2.msra.mxu0 %v205
    %1171 = vmatprep.subr.mxu0 %v202
    %1172 = vmatpush2.msra.mxu0 %v201
    %1173 = vmatprep.subr.mxu0 %v198
    %1174 = vmatpush2.msra.mxu0 %v197
    %1175 = vmatprep.subr.mxu0 %v194
    %1176 = vmatpush2.msra.mxu0 %v193
    %1177 = vmatprep.mubr.f32.mxu0 %v965
    %1178 = vmatmul.mubr.f32.gmra.mxu0 %v957
    %v1179 = vpop.f32.mrf.mxu0
    %v1180 = vadd.f32 %v945, %v1179
    %v1181 = vpop.f32.mrf.mxu0
    %v1182 = vadd.f32 %v947, %v1181
    %1183 = vdwg.mxu0
    %1184 = vmatprep.subr.mxu0 %v318
    %1185 = vmatpush1.msra.mxu0 %v317
    %1186 = vmatprep.subr.mxu0 %v314
    %1187 = vmatpush1.msra.mxu0 %v313
    %1188 = vmatprep.subr.mxu0 %v310
    %1189 = vmatpush1.msra.mxu0 %v309
    %1190 = vmatprep.subr.mxu0 %v306
    %1191 = vmatpush1.msra.mxu0 %v305
    %1192 = vmatprep.subr.mxu0 %v302
    %1193 = vmatpush1.msra.mxu0 %v301
    %1194 = vmatprep.subr.mxu0 %v298
    %1195 = vmatpush1.msra.mxu0 %v297
    %1196 = vmatprep.subr.mxu0 %v294
    %1197 = vmatpush1.msra.mxu0 %v293
    %1198 = vmatprep.subr.mxu0 %v290
    %1199 = vmatpush1.msra.mxu0 %v289
    %1200 = vmatprep.subr.mxu0 %v286
    %1201 = vmatpush1.msra.mxu0 %v285
    %1202 = vmatprep.subr.mxu0 %v282
    %1203 = vmatpush1.msra.mxu0 %v281
    %1204 = vmatprep.subr.mxu0 %v278
    %1205 = vmatpush1.msra.mxu0 %v277
    %1206 = vmatprep.subr.mxu0 %v274
    %1207 = vmatpush1.msra.mxu0 %v273
    %1208 = vmatprep.subr.mxu0 %v270
    %1209 = vmatpush1.msra.mxu0 %v269
    %1210 = vmatprep.subr.mxu0 %v266
    %1211 = vmatpush1.msra.mxu0 %v265
    %1212 = vmatprep.subr.mxu0 %v262
    %1213 = vmatpush1.msra.mxu0 %v261
    %1214 = vmatprep.subr.mxu0 %v258
    %1215 = vmatpush1.msra.mxu0 %v257
    %1216 = vmatprep.subr.mxu0 %v382
    %1217 = vmatpush2.msra.mxu0 %v381
    %1218 = vmatprep.subr.mxu0 %v378
    %1219 = vmatpush2.msra.mxu0 %v377
    %1220 = vmatprep.subr.mxu0 %v374
    %1221 = vmatpush2.msra.mxu0 %v373
    %1222 = vmatprep.subr.mxu0 %v370
    %1223 = vmatpush2.msra.mxu0 %v369
    %1224 = vmatprep.subr.mxu0 %v366
    %1225 = vmatpush2.msra.mxu0 %v365
    %1226 = vmatprep.subr.mxu0 %v362
    %1227 = vmatpush2.msra.mxu0 %v361
    %1228 = vmatprep.subr.mxu0 %v358
    %1229 = vmatpush2.msra.mxu0 %v357
    %1230 = vmatprep.subr.mxu0 %v354
    %1231 = vmatpush2.msra.mxu0 %v353
    %1232 = vmatprep.subr.mxu0 %v350
    %1233 = vmatpush2.msra.mxu0 %v349
    %1234 = vmatprep.subr.mxu0 %v346
    %1235 = vmatpush2.msra.mxu0 %v345
    %1236 = vmatprep.subr.mxu0 %v342
    %1237 = vmatpush2.msra.mxu0 %v341
    %1238 = vmatprep.subr.mxu0 %v338
    %1239 = vmatpush2.msra.mxu0 %v337
    %1240 = vmatprep.subr.mxu0 %v334
    %1241 = vmatpush2.msra.mxu0 %v333
    %1242 = vmatprep.subr.mxu0 %v330
    %1243 = vmatpush2.msra.mxu0 %v329
    %1244 = vmatprep.subr.mxu0 %v326
    %1245 = vmatpush2.msra.mxu0 %v325
    %1246 = vmatprep.subr.mxu0 %v322
    %1247 = vmatpush2.msra.mxu0 %v321
    %1248 = vmatprep.mubr.f32.mxu0 %v966
    %1249 = vmatmul.mubr.f32.gmra.mxu0 %v964
    %v1250 = vpop.f32.mrf.mxu0
    %v1251 = vadd.f32 %v1180, %v1250
    %v1252 = vpop.f32.mrf.mxu0
    %v1253 = vadd.f32 %v1182, %v1252
    %1254 = vdwg.mxu0
    %vm1255 = vcmp.eq.f32.partialorder %v123, 2.0
    %v1256 = vsel %vm1255, 1, 0
    %v1257 = vcvt.s32.f32 %v1256
    %s1258 = scalar_lea.vmem [#allocation6], 4096
    %v1259 = vld [vmem:[%s1258] sm:$0xff]
    %v1260 = vld [vmem:[%s1258 + $0x8] sm:$0xff]
    %v1261 = vld [vmem:[%s1258 + $0x10] sm:$0xff]
    %v1262 = vld [vmem:[%s1258 + $0x18] sm:$0xff]
    %v1263 = vld [vmem:[%s1258 + $0x20] sm:$0xff]
    %v1264 = vld [vmem:[%s1258 + $0x28] sm:$0xff]
    %v1265 = vld [vmem:[%s1258 + $0x30] sm:$0xff]
    %v1266 = vld [vmem:[%s1258 + $0x38] sm:$0xff]
    %v1267 = vld [vmem:[%s1258 + $0x40] sm:$0xff]
    %v1268 = vld [vmem:[%s1258 + $0x48] sm:$0xff]
    %v1269 = vld [vmem:[%s1258 + $0x50] sm:$0xff]
    %v1270 = vld [vmem:[%s1258 + $0x58] sm:$0xff]
    %v1271 = vld [vmem:[%s1258 + $0x60] sm:$0xff]
    %v1272 = vld [vmem:[%s1258 + $0x68] sm:$0xff]
    %v1273 = vld [vmem:[%s1258 + $0x70] sm:$0xff]
    %v1274 = vld [vmem:[%s1258 + $0x78] sm:$0xff]
    %v1275 = vld [vmem:[%s1258 + $0x80] sm:$0xff]
    %v1276 = vld [vmem:[%s1258 + $0x88] sm:$0xff]
    %v1277 = vld [vmem:[%s1258 + $0x90] sm:$0xff]
    %v1278 = vld [vmem:[%s1258 + $0x98] sm:$0xff]
    %v1279 = vld [vmem:[%s1258 + $0xa0] sm:$0xff]
    %v1280 = vld [vmem:[%s1258 + $0xa8] sm:$0xff]
    %v1281 = vld [vmem:[%s1258 + $0xb0] sm:$0xff]
    %v1282 = vld [vmem:[%s1258 + $0xb8] sm:$0xff]
    %v1283 = vld [vmem:[%s1258 + $0xc0] sm:$0xff]
    %v1284 = vld [vmem:[%s1258 + $0xc8] sm:$0xff]
    %v1285 = vld [vmem:[%s1258 + $0xd0] sm:$0xff]
    %v1286 = vld [vmem:[%s1258 + $0xd8] sm:$0xff]
    %v1287 = vld [vmem:[%s1258 + $0xe0] sm:$0xff]
    %v1288 = vld [vmem:[%s1258 + $0xe8] sm:$0xff]
    %v1289 = vld [vmem:[%s1258 + $0xf0] sm:$0xff]
    %v1290 = vld [vmem:[%s1258 + $0xf8] sm:$0xff]
    %v1291 = vld [vmem:[%s1258 + $0x100] sm:$0xff]
    %v1292 = vld [vmem:[%s1258 + $0x108] sm:$0xff]
    %v1293 = vld [vmem:[%s1258 + $0x110] sm:$0xff]
    %v1294 = vld [vmem:[%s1258 + $0x118] sm:$0xff]
    %v1295 = vld [vmem:[%s1258 + $0x120] sm:$0xff]
    %v1296 = vld [vmem:[%s1258 + $0x128] sm:$0xff]
    %v1297 = vld [vmem:[%s1258 + $0x130] sm:$0xff]
    %v1298 = vld [vmem:[%s1258 + $0x138] sm:$0xff]
    %v1299 = vld [vmem:[%s1258 + $0x140] sm:$0xff]
    %v1300 = vld [vmem:[%s1258 + $0x148] sm:$0xff]
    %v1301 = vld [vmem:[%s1258 + $0x150] sm:$0xff]
    %v1302 = vld [vmem:[%s1258 + $0x158] sm:$0xff]
    %v1303 = vld [vmem:[%s1258 + $0x160] sm:$0xff]
    %v1304 = vld [vmem:[%s1258 + $0x168] sm:$0xff]
    %v1305 = vld [vmem:[%s1258 + $0x170] sm:$0xff]
    %v1306 = vld [vmem:[%s1258 + $0x178] sm:$0xff]
    %v1307 = vld [vmem:[%s1258 + $0x180] sm:$0xff]
    %v1308 = vld [vmem:[%s1258 + $0x188] sm:$0xff]
    %v1309 = vld [vmem:[%s1258 + $0x190] sm:$0xff]
    %v1310 = vld [vmem:[%s1258 + $0x198] sm:$0xff]
    %v1311 = vld [vmem:[%s1258 + $0x1a0] sm:$0xff]
    %v1312 = vld [vmem:[%s1258 + $0x1a8] sm:$0xff]
    %v1313 = vld [vmem:[%s1258 + $0x1b0] sm:$0xff]
    %v1314 = vld [vmem:[%s1258 + $0x1b8] sm:$0xff]
    %v1315 = vld [vmem:[%s1258 + $0x1c0] sm:$0xff]
    %v1316 = vld [vmem:[%s1258 + $0x1c8] sm:$0xff]
    %v1317 = vld [vmem:[%s1258 + $0x1d0] sm:$0xff]
    %v1318 = vld [vmem:[%s1258 + $0x1d8] sm:$0xff]
    %v1319 = vld [vmem:[%s1258 + $0x1e0] sm:$0xff]
    %v1320 = vld [vmem:[%s1258 + $0x1e8] sm:$0xff]
    %v1321 = vld [vmem:[%s1258 + $0x1f0] sm:$0xff]
    %v1322 = vld [vmem:[%s1258 + $0x1f8] sm:$0xff]
    %v1323 = vld [vmem:[%s1258 + $0x200] sm:$0xff]
    %v1324 = vld [vmem:[%s1258 + $0x208] sm:$0xff]
    %v1325 = vld [vmem:[%s1258 + $0x210] sm:$0xff]
    %v1326 = vld [vmem:[%s1258 + $0x218] sm:$0xff]
    %v1327 = vld [vmem:[%s1258 + $0x220] sm:$0xff]
    %v1328 = vld [vmem:[%s1258 + $0x228] sm:$0xff]
    %v1329 = vld [vmem:[%s1258 + $0x230] sm:$0xff]
    %v1330 = vld [vmem:[%s1258 + $0x238] sm:$0xff]
    %v1331 = vld [vmem:[%s1258 + $0x240] sm:$0xff]
    %v1332 = vld [vmem:[%s1258 + $0x248] sm:$0xff]
    %v1333 = vld [vmem:[%s1258 + $0x250] sm:$0xff]
    %v1334 = vld [vmem:[%s1258 + $0x258] sm:$0xff]
    %v1335 = vld [vmem:[%s1258 + $0x260] sm:$0xff]
    %v1336 = vld [vmem:[%s1258 + $0x268] sm:$0xff]
    %v1337 = vld [vmem:[%s1258 + $0x270] sm:$0xff]
    %v1338 = vld [vmem:[%s1258 + $0x278] sm:$0xff]
    %v1339 = vld [vmem:[%s1258 + $0x280] sm:$0xff]
    %v1340 = vld [vmem:[%s1258 + $0x288] sm:$0xff]
    %v1341 = vld [vmem:[%s1258 + $0x290] sm:$0xff]
    %v1342 = vld [vmem:[%s1258 + $0x298] sm:$0xff]
    %v1343 = vld [vmem:[%s1258 + $0x2a0] sm:$0xff]
    %v1344 = vld [vmem:[%s1258 + $0x2a8] sm:$0xff]
    %v1345 = vld [vmem:[%s1258 + $0x2b0] sm:$0xff]
    %v1346 = vld [vmem:[%s1258 + $0x2b8] sm:$0xff]
    %v1347 = vld [vmem:[%s1258 + $0x2c0] sm:$0xff]
    %v1348 = vld [vmem:[%s1258 + $0x2c8] sm:$0xff]
    %v1349 = vld [vmem:[%s1258 + $0x2d0] sm:$0xff]
    %v1350 = vld [vmem:[%s1258 + $0x2d8] sm:$0xff]
    %v1351 = vld [vmem:[%s1258 + $0x2e0] sm:$0xff]
    %v1352 = vld [vmem:[%s1258 + $0x2e8] sm:$0xff]
    %v1353 = vld [vmem:[%s1258 + $0x2f0] sm:$0xff]
    %v1354 = vld [vmem:[%s1258 + $0x2f8] sm:$0xff]
    %v1355 = vld [vmem:[%s1258 + $0x300] sm:$0xff]
    %v1356 = vld [vmem:[%s1258 + $0x308] sm:$0xff]
    %v1357 = vld [vmem:[%s1258 + $0x310] sm:$0xff]
    %v1358 = vld [vmem:[%s1258 + $0x318] sm:$0xff]
    %v1359 = vld [vmem:[%s1258 + $0x320] sm:$0xff]
    %v1360 = vld [vmem:[%s1258 + $0x328] sm:$0xff]
    %v1361 = vld [vmem:[%s1258 + $0x330] sm:$0xff]
    %v1362 = vld [vmem:[%s1258 + $0x338] sm:$0xff]
    %v1363 = vld [vmem:[%s1258 + $0x340] sm:$0xff]
    %v1364 = vld [vmem:[%s1258 + $0x348] sm:$0xff]
    %v1365 = vld [vmem:[%s1258 + $0x350] sm:$0xff]
    %v1366 = vld [vmem:[%s1258 + $0x358] sm:$0xff]
    %v1367 = vld [vmem:[%s1258 + $0x360] sm:$0xff]
    %v1368 = vld [vmem:[%s1258 + $0x368] sm:$0xff]
    %v1369 = vld [vmem:[%s1258 + $0x370] sm:$0xff]
    %v1370 = vld [vmem:[%s1258 + $0x378] sm:$0xff]
    %v1371 = vld [vmem:[%s1258 + $0x380] sm:$0xff]
    %v1372 = vld [vmem:[%s1258 + $0x388] sm:$0xff]
    %v1373 = vld [vmem:[%s1258 + $0x390] sm:$0xff]
    %v1374 = vld [vmem:[%s1258 + $0x398] sm:$0xff]
    %v1375 = vld [vmem:[%s1258 + $0x3a0] sm:$0xff]
    %v1376 = vld [vmem:[%s1258 + $0x3a8] sm:$0xff]
    %v1377 = vld [vmem:[%s1258 + $0x3b0] sm:$0xff]
    %v1378 = vld [vmem:[%s1258 + $0x3b8] sm:$0xff]
    %v1379 = vld [vmem:[%s1258 + $0x3c0] sm:$0xff]
    %v1380 = vld [vmem:[%s1258 + $0x3c8] sm:$0xff]
    %v1381 = vld [vmem:[%s1258 + $0x3d0] sm:$0xff]
    %v1382 = vld [vmem:[%s1258 + $0x3d8] sm:$0xff]
    %v1383 = vld [vmem:[%s1258 + $0x3e0] sm:$0xff]
    %v1384 = vld [vmem:[%s1258 + $0x3e8] sm:$0xff]
    %v1385 = vld [vmem:[%s1258 + $0x3f0] sm:$0xff]
    %v1386 = vld [vmem:[%s1258 + $0x3f8] sm:$0xff]
    %v1387 = vld [vmem:[%s1258 + $0x400] sm:$0xff]
    %v1388 = vld [vmem:[%s1258 + $0x408] sm:$0xff]
    %v1389 = vld [vmem:[%s1258 + $0x410] sm:$0xff]
    %v1390 = vld [vmem:[%s1258 + $0x418] sm:$0xff]
    %v1391 = vld [vmem:[%s1258 + $0x420] sm:$0xff]
    %v1392 = vld [vmem:[%s1258 + $0x428] sm:$0xff]
    %v1393 = vld [vmem:[%s1258 + $0x430] sm:$0xff]
    %v1394 = vld [vmem:[%s1258 + $0x438] sm:$0xff]
    %v1395 = vld [vmem:[%s1258 + $0x440] sm:$0xff]
    %v1396 = vld [vmem:[%s1258 + $0x448] sm:$0xff]
    %v1397 = vld [vmem:[%s1258 + $0x450] sm:$0xff]
    %v1398 = vld [vmem:[%s1258 + $0x458] sm:$0xff]
    %v1399 = vld [vmem:[%s1258 + $0x460] sm:$0xff]
    %v1400 = vld [vmem:[%s1258 + $0x468] sm:$0xff]
    %v1401 = vld [vmem:[%s1258 + $0x470] sm:$0xff]
    %v1402 = vld [vmem:[%s1258 + $0x478] sm:$0xff]
    %v1403 = vld [vmem:[%s1258 + $0x480] sm:$0xff]
    %v1404 = vld [vmem:[%s1258 + $0x488] sm:$0xff]
    %v1405 = vld [vmem:[%s1258 + $0x490] sm:$0xff]
    %v1406 = vld [vmem:[%s1258 + $0x498] sm:$0xff]
    %v1407 = vld [vmem:[%s1258 + $0x4a0] sm:$0xff]
    %v1408 = vld [vmem:[%s1258 + $0x4a8] sm:$0xff]
    %v1409 = vld [vmem:[%s1258 + $0x4b0] sm:$0xff]
    %v1410 = vld [vmem:[%s1258 + $0x4b8] sm:$0xff]
    %v1411 = vld [vmem:[%s1258 + $0x4c0] sm:$0xff]
    %v1412 = vld [vmem:[%s1258 + $0x4c8] sm:$0xff]
    %v1413 = vld [vmem:[%s1258 + $0x4d0] sm:$0xff]
    %v1414 = vld [vmem:[%s1258 + $0x4d8] sm:$0xff]
    %v1415 = vld [vmem:[%s1258 + $0x4e0] sm:$0xff]
    %v1416 = vld [vmem:[%s1258 + $0x4e8] sm:$0xff]
    %v1417 = vld [vmem:[%s1258 + $0x4f0] sm:$0xff]
    %v1418 = vld [vmem:[%s1258 + $0x4f8] sm:$0xff]
    %v1419 = vld [vmem:[%s1258 + $0x500] sm:$0xff]
    %v1420 = vld [vmem:[%s1258 + $0x508] sm:$0xff]
    %v1421 = vld [vmem:[%s1258 + $0x510] sm:$0xff]
    %v1422 = vld [vmem:[%s1258 + $0x518] sm:$0xff]
    %v1423 = vld [vmem:[%s1258 + $0x520] sm:$0xff]
    %v1424 = vld [vmem:[%s1258 + $0x528] sm:$0xff]
    %v1425 = vld [vmem:[%s1258 + $0x530] sm:$0xff]
    %v1426 = vld [vmem:[%s1258 + $0x538] sm:$0xff]
    %v1427 = vld [vmem:[%s1258 + $0x540] sm:$0xff]
    %v1428 = vld [vmem:[%s1258 + $0x548] sm:$0xff]
    %v1429 = vld [vmem:[%s1258 + $0x550] sm:$0xff]
    %v1430 = vld [vmem:[%s1258 + $0x558] sm:$0xff]
    %v1431 = vld [vmem:[%s1258 + $0x560] sm:$0xff]
    %v1432 = vld [vmem:[%s1258 + $0x568] sm:$0xff]
    %v1433 = vld [vmem:[%s1258 + $0x570] sm:$0xff]
    %v1434 = vld [vmem:[%s1258 + $0x578] sm:$0xff]
    %v1435 = vld [vmem:[%s1258 + $0x580] sm:$0xff]
    %v1436 = vld [vmem:[%s1258 + $0x588] sm:$0xff]
    %v1437 = vld [vmem:[%s1258 + $0x590] sm:$0xff]
    %v1438 = vld [vmem:[%s1258 + $0x598] sm:$0xff]
    %v1439 = vld [vmem:[%s1258 + $0x5a0] sm:$0xff]
    %v1440 = vld [vmem:[%s1258 + $0x5a8] sm:$0xff]
    %v1441 = vld [vmem:[%s1258 + $0x5b0] sm:$0xff]
    %v1442 = vld [vmem:[%s1258 + $0x5b8] sm:$0xff]
    %v1443 = vld [vmem:[%s1258 + $0x5c0] sm:$0xff]
    %v1444 = vld [vmem:[%s1258 + $0x5c8] sm:$0xff]
    %v1445 = vld [vmem:[%s1258 + $0x5d0] sm:$0xff]
    %v1446 = vld [vmem:[%s1258 + $0x5d8] sm:$0xff]
    %v1447 = vld [vmem:[%s1258 + $0x5e0] sm:$0xff]
    %v1448 = vld [vmem:[%s1258 + $0x5e8] sm:$0xff]
    %v1449 = vld [vmem:[%s1258 + $0x5f0] sm:$0xff]
    %v1450 = vld [vmem:[%s1258 + $0x5f8] sm:$0xff]
    %v1451 = vld [vmem:[%s1258 + $0x600] sm:$0xff]
    %v1452 = vld [vmem:[%s1258 + $0x608] sm:$0xff]
    %v1453 = vld [vmem:[%s1258 + $0x610] sm:$0xff]
    %v1454 = vld [vmem:[%s1258 + $0x618] sm:$0xff]
    %v1455 = vld [vmem:[%s1258 + $0x620] sm:$0xff]
    %v1456 = vld [vmem:[%s1258 + $0x628] sm:$0xff]
    %v1457 = vld [vmem:[%s1258 + $0x630] sm:$0xff]
    %v1458 = vld [vmem:[%s1258 + $0x638] sm:$0xff]
    %v1459 = vld [vmem:[%s1258 + $0x640] sm:$0xff]
    %v1460 = vld [vmem:[%s1258 + $0x648] sm:$0xff]
    %v1461 = vld [vmem:[%s1258 + $0x650] sm:$0xff]
    %v1462 = vld [vmem:[%s1258 + $0x658] sm:$0xff]
    %v1463 = vld [vmem:[%s1258 + $0x660] sm:$0xff]
    %v1464 = vld [vmem:[%s1258 + $0x668] sm:$0xff]
    %v1465 = vld [vmem:[%s1258 + $0x670] sm:$0xff]
    %v1466 = vld [vmem:[%s1258 + $0x678] sm:$0xff]
    %v1467 = vld [vmem:[%s1258 + $0x680] sm:$0xff]
    %v1468 = vld [vmem:[%s1258 + $0x688] sm:$0xff]
    %v1469 = vld [vmem:[%s1258 + $0x690] sm:$0xff]
    %v1470 = vld [vmem:[%s1258 + $0x698] sm:$0xff]
    %v1471 = vld [vmem:[%s1258 + $0x6a0] sm:$0xff]
    %v1472 = vld [vmem:[%s1258 + $0x6a8] sm:$0xff]
    %v1473 = vld [vmem:[%s1258 + $0x6b0] sm:$0xff]
    %v1474 = vld [vmem:[%s1258 + $0x6b8] sm:$0xff]
    %v1475 = vld [vmem:[%s1258 + $0x6c0] sm:$0xff]
    %v1476 = vld [vmem:[%s1258 + $0x6c8] sm:$0xff]
    %v1477 = vld [vmem:[%s1258 + $0x6d0] sm:$0xff]
    %v1478 = vld [vmem:[%s1258 + $0x6d8] sm:$0xff]
    %v1479 = vld [vmem:[%s1258 + $0x6e0] sm:$0xff]
    %v1480 = vld [vmem:[%s1258 + $0x6e8] sm:$0xff]
    %v1481 = vld [vmem:[%s1258 + $0x6f0] sm:$0xff]
    %v1482 = vld [vmem:[%s1258 + $0x6f8] sm:$0xff]
    %v1483 = vld [vmem:[%s1258 + $0x700] sm:$0xff]
    %v1484 = vld [vmem:[%s1258 + $0x708] sm:$0xff]
    %v1485 = vld [vmem:[%s1258 + $0x710] sm:$0xff]
    %v1486 = vld [vmem:[%s1258 + $0x718] sm:$0xff]
    %v1487 = vld [vmem:[%s1258 + $0x720] sm:$0xff]
    %v1488 = vld [vmem:[%s1258 + $0x728] sm:$0xff]
    %v1489 = vld [vmem:[%s1258 + $0x730] sm:$0xff]
    %v1490 = vld [vmem:[%s1258 + $0x738] sm:$0xff]
    %v1491 = vld [vmem:[%s1258 + $0x740] sm:$0xff]
    %v1492 = vld [vmem:[%s1258 + $0x748] sm:$0xff]
    %v1493 = vld [vmem:[%s1258 + $0x750] sm:$0xff]
    %v1494 = vld [vmem:[%s1258 + $0x758] sm:$0xff]
    %v1495 = vld [vmem:[%s1258 + $0x760] sm:$0xff]
    %v1496 = vld [vmem:[%s1258 + $0x768] sm:$0xff]
    %v1497 = vld [vmem:[%s1258 + $0x770] sm:$0xff]
    %v1498 = vld [vmem:[%s1258 + $0x778] sm:$0xff]
    %v1499 = vld [vmem:[%s1258 + $0x780] sm:$0xff]
    %v1500 = vld [vmem:[%s1258 + $0x788] sm:$0xff]
    %v1501 = vld [vmem:[%s1258 + $0x790] sm:$0xff]
    %v1502 = vld [vmem:[%s1258 + $0x798] sm:$0xff]
    %v1503 = vld [vmem:[%s1258 + $0x7a0] sm:$0xff]
    %v1504 = vld [vmem:[%s1258 + $0x7a8] sm:$0xff]
    %v1505 = vld [vmem:[%s1258 + $0x7b0] sm:$0xff]
    %v1506 = vld [vmem:[%s1258 + $0x7b8] sm:$0xff]
    %v1507 = vld [vmem:[%s1258 + $0x7c0] sm:$0xff]
    %v1508 = vld [vmem:[%s1258 + $0x7c8] sm:$0xff]
    %v1509 = vld [vmem:[%s1258 + $0x7d0] sm:$0xff]
    %v1510 = vld [vmem:[%s1258 + $0x7d8] sm:$0xff]
    %v1511 = vld [vmem:[%s1258 + $0x7e0] sm:$0xff]
    %v1512 = vld [vmem:[%s1258 + $0x7e8] sm:$0xff]
    %v1513 = vld [vmem:[%s1258 + $0x7f0] sm:$0xff]
    %v1514 = vld [vmem:[%s1258 + $0x7f8] sm:$0xff]
    %v1516 = vcombine.high %v1257, %v1257
    %v1518 = vunpack.c.l.s4 1983009808
    %v1519 = vunpack.c.0.s8 %v1518
    %v1520 = vlaneseq
    %v1521 = vshrl.u32 %v1520, 7
    %v1522 = vsub.s32 %v1519, %v1521
    %v1523 = vrot.slane %v1257, %v1522
    %v1525 = vunpack.c.l.s4 1983009808
    %v1526 = vunpack.c.0.s8 %v1525
    %v1527 = vlaneseq
    %v1528 = vshrl.u32 %v1527, 7
    %v1529 = vsub.s32 %v1526, %v1528
    %v1530 = vrot.slane %v1516, %v1529
    %v1531 = vcombine.high %v1523, %v1523
    %v1532 = vcombine.high %v1530, %v1530
    %1537 = vmatprep.subr.mxu0 %v1320
    %1538 = vmatpush1.msra.mxu0 %v1319
    %1539 = vmatprep.subr.mxu0 %v1316
    %1540 = vmatpush1.msra.mxu0 %v1315
    %1541 = vmatprep.subr.mxu0 %v1312
    %1542 = vmatpush1.msra.mxu0 %v1311
    %1543 = vmatprep.subr.mxu0 %v1308
    %1544 = vmatpush1.msra.mxu0 %v1307
    %1545 = vmatprep.subr.mxu0 %v1304
    %1546 = vmatpush1.msra.mxu0 %v1303
    %1547 = vmatprep.subr.mxu0 %v1300
    %1548 = vmatpush1.msra.mxu0 %v1299
    %1549 = vmatprep.subr.mxu0 %v1296
    %1550 = vmatpush1.msra.mxu0 %v1295
    %1551 = vmatprep.subr.mxu0 %v1292
    %1552 = vmatpush1.msra.mxu0 %v1291
    %1553 = vmatprep.subr.mxu0 %v1288
    %1554 = vmatpush1.msra.mxu0 %v1287
    %1555 = vmatprep.subr.mxu0 %v1284
    %1556 = vmatpush1.msra.mxu0 %v1283
    %1557 = vmatprep.subr.mxu0 %v1280
    %1558 = vmatpush1.msra.mxu0 %v1279
    %1559 = vmatprep.subr.mxu0 %v1276
    %1560 = vmatpush1.msra.mxu0 %v1275
    %1561 = vmatprep.subr.mxu0 %v1272
    %1562 = vmatpush1.msra.mxu0 %v1271
    %1563 = vmatprep.subr.mxu0 %v1268
    %1564 = vmatpush1.msra.mxu0 %v1267
    %1565 = vmatprep.subr.mxu0 %v1264
    %1566 = vmatpush1.msra.mxu0 %v1263
    %1567 = vmatprep.subr.mxu0 %v1260
    %1568 = vmatpush1.msra.mxu0 %v1259
    %1569 = vmatprep.subr.mxu0 %v1384
    %1570 = vmatpush2.msra.mxu0 %v1383
    %1571 = vmatprep.subr.mxu0 %v1380
    %1572 = vmatpush2.msra.mxu0 %v1379
    %1573 = vmatprep.subr.mxu0 %v1376
    %1574 = vmatpush2.msra.mxu0 %v1375
    %1575 = vmatprep.subr.mxu0 %v1372
    %1576 = vmatpush2.msra.mxu0 %v1371
    %1577 = vmatprep.subr.mxu0 %v1368
    %1578 = vmatpush2.msra.mxu0 %v1367
    %1579 = vmatprep.subr.mxu0 %v1364
    %1580 = vmatpush2.msra.mxu0 %v1363
    %1581 = vmatprep.subr.mxu0 %v1360
    %1582 = vmatpush2.msra.mxu0 %v1359
    %1583 = vmatprep.subr.mxu0 %v1356
    %1584 = vmatpush2.msra.mxu0 %v1355
    %1585 = vmatprep.subr.mxu0 %v1352
    %1586 = vmatpush2.msra.mxu0 %v1351
    %1587 = vmatprep.subr.mxu0 %v1348
    %1588 = vmatpush2.msra.mxu0 %v1347
    %1589 = vmatprep.subr.mxu0 %v1344
    %1590 = vmatpush2.msra.mxu0 %v1343
    %1591 = vmatprep.subr.mxu0 %v1340
    %1592 = vmatpush2.msra.mxu0 %v1339
    %1593 = vmatprep.subr.mxu0 %v1336
    %1594 = vmatpush2.msra.mxu0 %v1335
    %1595 = vmatprep.subr.mxu0 %v1332
    %1596 = vmatpush2.msra.mxu0 %v1331
    %1597 = vmatprep.subr.mxu0 %v1328
    %1598 = vmatpush2.msra.mxu0 %v1327
    %1599 = vmatprep.subr.mxu0 %v1324
    %1600 = vmatpush2.msra.mxu0 %v1323
    %1601 = vmatprep.mubr.f32.mxu0 %v1531
    %1602 = vmatmul.mubr.f32.gmra.mxu0 %v1523
    %v1603 = vpop.f32.mrf.mxu0
    %v1604 = vadd.f32 0.0, %v1603
    %v1605 = vpop.f32.mrf.mxu0
    %v1606 = vadd.f32 0.0, %v1605
    %1607 = vdwg.mxu0
    %1608 = vmatprep.subr.mxu0 %v1448
    %1609 = vmatpush1.msra.mxu0 %v1447
    %1610 = vmatprep.subr.mxu0 %v1444
    %1611 = vmatpush1.msra.mxu0 %v1443
    %1612 = vmatprep.subr.mxu0 %v1440
    %1613 = vmatpush1.msra.mxu0 %v1439
    %1614 = vmatprep.subr.mxu0 %v1436
    %1615 = vmatpush1.msra.mxu0 %v1435
    %1616 = vmatprep.subr.mxu0 %v1432
    %1617 = vmatpush1.msra.mxu0 %v1431
    %1618 = vmatprep.subr.mxu0 %v1428
    %1619 = vmatpush1.msra.mxu0 %v1427
    %1620 = vmatprep.subr.mxu0 %v1424
    %1621 = vmatpush1.msra.mxu0 %v1423
    %1622 = vmatprep.subr.mxu0 %v1420
    %1623 = vmatpush1.msra.mxu0 %v1419
    %1624 = vmatprep.subr.mxu0 %v1416
    %1625 = vmatpush1.msra.mxu0 %v1415
    %1626 = vmatprep.subr.mxu0 %v1412
    %1627 = vmatpush1.msra.mxu0 %v1411
    %1628 = vmatprep.subr.mxu0 %v1408
    %1629 = vmatpush1.msra.mxu0 %v1407
    %1630 = vmatprep.subr.mxu0 %v1404
    %1631 = vmatpush1.msra.mxu0 %v1403
    %1632 = vmatprep.subr.mxu0 %v1400
    %1633 = vmatpush1.msra.mxu0 %v1399
    %1634 = vmatprep.subr.mxu0 %v1396
    %1635 = vmatpush1.msra.mxu0 %v1395
    %1636 = vmatprep.subr.mxu0 %v1392
    %1637 = vmatpush1.msra.mxu0 %v1391
    %1638 = vmatprep.subr.mxu0 %v1388
    %1639 = vmatpush1.msra.mxu0 %v1387
    %1640 = vmatprep.subr.mxu0 %v1512
    %1641 = vmatpush2.msra.mxu0 %v1511
    %1642 = vmatprep.subr.mxu0 %v1508
    %1643 = vmatpush2.msra.mxu0 %v1507
    %1644 = vmatprep.subr.mxu0 %v1504
    %1645 = vmatpush2.msra.mxu0 %v1503
    %1646 = vmatprep.subr.mxu0 %v1500
    %1647 = vmatpush2.msra.mxu0 %v1499
    %1648 = vmatprep.subr.mxu0 %v1496
    %1649 = vmatpush2.msra.mxu0 %v1495
    %1650 = vmatprep.subr.mxu0 %v1492
    %1651 = vmatpush2.msra.mxu0 %v1491
    %1652 = vmatprep.subr.mxu0 %v1488
    %1653 = vmatpush2.msra.mxu0 %v1487
    %1654 = vmatprep.subr.mxu0 %v1484
    %1655 = vmatpush2.msra.mxu0 %v1483
    %1656 = vmatprep.subr.mxu0 %v1480
    %1657 = vmatpush2.msra.mxu0 %v1479
    %1658 = vmatprep.subr.mxu0 %v1476
    %1659 = vmatpush2.msra.mxu0 %v1475
    %1660 = vmatprep.subr.mxu0 %v1472
    %1661 = vmatpush2.msra.mxu0 %v1471
    %1662 = vmatprep.subr.mxu0 %v1468
    %1663 = vmatpush2.msra.mxu0 %v1467
    %1664 = vmatprep.subr.mxu0 %v1464
    %1665 = vmatpush2.msra.mxu0 %v1463
    %1666 = vmatprep.subr.mxu0 %v1460
    %1667 = vmatpush2.msra.mxu0 %v1459
    %1668 = vmatprep.subr.mxu0 %v1456
    %1669 = vmatpush2.msra.mxu0 %v1455
    %1670 = vmatprep.subr.mxu0 %v1452
    %1671 = vmatpush2.msra.mxu0 %v1451
    %1672 = vmatprep.mubr.f32.mxu0 %v1532
    %1673 = vmatmul.mubr.f32.gmra.mxu0 %v1530
    %v1674 = vpop.f32.mrf.mxu0
    %v1675 = vadd.f32 %v1604, %v1674
    %v1676 = vpop.f32.mrf.mxu0
    %v1677 = vadd.f32 %v1606, %v1676
    %1678 = vdwg.mxu0
    %1679 = vmatprep.subr.mxu0 %v1322
    %1680 = vmatpush1.msra.mxu0 %v1321
    %1681 = vmatprep.subr.mxu0 %v1318
    %1682 = vmatpush1.msra.mxu0 %v1317
    %1683 = vmatprep.subr.mxu0 %v1314
    %1684 = vmatpush1.msra.mxu0 %v1313
    %1685 = vmatprep.subr.mxu0 %v1310
    %1686 = vmatpush1.msra.mxu0 %v1309
    %1687 = vmatprep.subr.mxu0 %v1306
    %1688 = vmatpush1.msra.mxu0 %v1305
    %1689 = vmatprep.subr.mxu0 %v1302
    %1690 = vmatpush1.msra.mxu0 %v1301
    %1691 = vmatprep.subr.mxu0 %v1298
    %1692 = vmatpush1.msra.mxu0 %v1297
    %1693 = vmatprep.subr.mxu0 %v1294
    %1694 = vmatpush1.msra.mxu0 %v1293
    %1695 = vmatprep.subr.mxu0 %v1290
    %1696 = vmatpush1.msra.mxu0 %v1289
    %1697 = vmatprep.subr.mxu0 %v1286
    %1698 = vmatpush1.msra.mxu0 %v1285
    %1699 = vmatprep.subr.mxu0 %v1282
    %1700 = vmatpush1.msra.mxu0 %v1281
    %1701 = vmatprep.subr.mxu0 %v1278
    %1702 = vmatpush1.msra.mxu0 %v1277
    %1703 = vmatprep.subr.mxu0 %v1274
    %1704 = vmatpush1.msra.mxu0 %v1273
    %1705 = vmatprep.subr.mxu0 %v1270
    %1706 = vmatpush1.msra.mxu0 %v1269
    %1707 = vmatprep.subr.mxu0 %v1266
    %1708 = vmatpush1.msra.mxu0 %v1265
    %1709 = vmatprep.subr.mxu0 %v1262
    %1710 = vmatpush1.msra.mxu0 %v1261
    %1711 = vmatprep.subr.mxu0 %v1386
    %1712 = vmatpush2.msra.mxu0 %v1385
    %1713 = vmatprep.subr.mxu0 %v1382
    %1714 = vmatpush2.msra.mxu0 %v1381
    %1715 = vmatprep.subr.mxu0 %v1378
    %1716 = vmatpush2.msra.mxu0 %v1377
    %1717 = vmatprep.subr.mxu0 %v1374
    %1718 = vmatpush2.msra.mxu0 %v1373
    %1719 = vmatprep.subr.mxu0 %v1370
    %1720 = vmatpush2.msra.mxu0 %v1369
    %1721 = vmatprep.subr.mxu0 %v1366
    %1722 = vmatpush2.msra.mxu0 %v1365
    %1723 = vmatprep.subr.mxu0 %v1362
    %1724 = vmatpush2.msra.mxu0 %v1361
    %1725 = vmatprep.subr.mxu0 %v1358
    %1726 = vmatpush2.msra.mxu0 %v1357
    %1727 = vmatprep.subr.mxu0 %v1354
    %1728 = vmatpush2.msra.mxu0 %v1353
    %1729 = vmatprep.subr.mxu0 %v1350
    %1730 = vmatpush2.msra.mxu0 %v1349
    %1731 = vmatprep.subr.mxu0 %v1346
    %1732 = vmatpush2.msra.mxu0 %v1345
    %1733 = vmatprep.subr.mxu0 %v1342
    %1734 = vmatpush2.msra.mxu0 %v1341
    %1735 = vmatprep.subr.mxu0 %v1338
    %1736 = vmatpush2.msra.mxu0 %v1337
    %1737 = vmatprep.subr.mxu0 %v1334
    %1738 = vmatpush2.msra.mxu0 %v1333
    %1739 = vmatprep.subr.mxu0 %v1330
    %1740 = vmatpush2.msra.mxu0 %v1329
    %1741 = vmatprep.subr.mxu0 %v1326
    %1742 = vmatpush2.msra.mxu0 %v1325
    %1743 = vmatprep.mubr.f32.mxu0 %v1531
    %1744 = vmatmul.mubr.f32.gmra.mxu0 %v1523
    %v1745 = vpop.f32.mrf.mxu0
    %v1746 = vadd.f32 0.0, %v1745
    %v1747 = vpop.f32.mrf.mxu0
    %v1748 = vadd.f32 0.0, %v1747
    %1749 = vdwg.mxu0
    %1750 = vmatprep.subr.mxu0 %v1450
    %1751 = vmatpush1.msra.mxu0 %v1449
    %1752 = vmatprep.subr.mxu0 %v1446
    %1753 = vmatpush1.msra.mxu0 %v1445
    %1754 = vmatprep.subr.mxu0 %v1442
    %1755 = vmatpush1.msra.mxu0 %v1441
    %1756 = vmatprep.subr.mxu0 %v1438
    %1757 = vmatpush1.msra.mxu0 %v1437
    %1758 = vmatprep.subr.mxu0 %v1434
    %1759 = vmatpush1.msra.mxu0 %v1433
    %1760 = vmatprep.subr.mxu0 %v1430
    %1761 = vmatpush1.msra.mxu0 %v1429
    %1762 = vmatprep.subr.mxu0 %v1426
    %1763 = vmatpush1.msra.mxu0 %v1425
    %1764 = vmatprep.subr.mxu0 %v1422
    %1765 = vmatpush1.msra.mxu0 %v1421
    %1766 = vmatprep.subr.mxu0 %v1418
    %1767 = vmatpush1.msra.mxu0 %v1417
    %1768 = vmatprep.subr.mxu0 %v1414
    %1769 = vmatpush1.msra.mxu0 %v1413
    %1770 = vmatprep.subr.mxu0 %v1410
    %1771 = vmatpush1.msra.mxu0 %v1409
    %1772 = vmatprep.subr.mxu0 %v1406
    %1773 = vmatpush1.msra.mxu0 %v1405
    %1774 = vmatprep.subr.mxu0 %v1402
    %1775 = vmatpush1.msra.mxu0 %v1401
    %1776 = vmatprep.subr.mxu0 %v1398
    %1777 = vmatpush1.msra.mxu0 %v1397
    %1778 = vmatprep.subr.mxu0 %v1394
    %1779 = vmatpush1.msra.mxu0 %v1393
    %1780 = vmatprep.subr.mxu0 %v1390
    %1781 = vmatpush1.msra.mxu0 %v1389
    %1782 = vmatprep.subr.mxu0 %v1514
    %1783 = vmatpush2.msra.mxu0 %v1513
    %1784 = vmatprep.subr.mxu0 %v1510
    %1785 = vmatpush2.msra.mxu0 %v1509
    %1786 = vmatprep.subr.mxu0 %v1506
    %1787 = vmatpush2.msra.mxu0 %v1505
    %1788 = vmatprep.subr.mxu0 %v1502
    %1789 = vmatpush2.msra.mxu0 %v1501
    %1790 = vmatprep.subr.mxu0 %v1498
    %1791 = vmatpush2.msra.mxu0 %v1497
    %1792 = vmatprep.subr.mxu0 %v1494
    %1793 = vmatpush2.msra.mxu0 %v1493
    %1794 = vmatprep.subr.mxu0 %v1490
    %1795 = vmatpush2.msra.mxu0 %v1489
    %1796 = vmatprep.subr.mxu0 %v1486
    %1797 = vmatpush2.msra.mxu0 %v1485
    %1798 = vmatprep.subr.mxu0 %v1482
    %1799 = vmatpush2.msra.mxu0 %v1481
    %1800 = vmatprep.subr.mxu0 %v1478
    %1801 = vmatpush2.msra.mxu0 %v1477
    %1802 = vmatprep.subr.mxu0 %v1474
    %1803 = vmatpush2.msra.mxu0 %v1473
    %1804 = vmatprep.subr.mxu0 %v1470
    %1805 = vmatpush2.msra.mxu0 %v1469
    %1806 = vmatprep.subr.mxu0 %v1466
    %1807 = vmatpush2.msra.mxu0 %v1465
    %1808 = vmatprep.subr.mxu0 %v1462
    %1809 = vmatpush2.msra.mxu0 %v1461
    %1810 = vmatprep.subr.mxu0 %v1458
    %1811 = vmatpush2.msra.mxu0 %v1457
    %1812 = vmatprep.subr.mxu0 %v1454
    %1813 = vmatpush2.msra.mxu0 %v1453
    %1814 = vmatprep.mubr.f32.mxu0 %v1532
    %1815 = vmatmul.mubr.f32.gmra.mxu0 %v1530
    %v1816 = vpop.f32.mrf.mxu0
    %v1817 = vadd.f32 %v1746, %v1816
    %v1818 = vpop.f32.mrf.mxu0
    %v1819 = vadd.f32 %v1748, %v1818
    %1820 = vdwg.mxu0
    %v1821 = vadd.f32 %v1109, %v1675
    %v1822 = vadd.f32 %v1111, %v1677
    %v1823 = vadd.f32 %v1251, %v1817
    %v1824 = vadd.f32 %v1253, %v1819
    %vm1825 = vcmp.eq.f32.partialorder %v123, 3.0
    %v1826 = vsel %vm1825, 1, 0
    %v1827 = vcvt.s32.f32 %v1826
    %s1828 = scalar_lea.vmem [#allocation6], 6144
    %v1829 = vld [vmem:[%s1828] sm:$0xff]
    %v1830 = vld [vmem:[%s1828 + $0x8] sm:$0xff]
    %v1831 = vld [vmem:[%s1828 + $0x10] sm:$0xff]
    %v1832 = vld [vmem:[%s1828 + $0x18] sm:$0xff]
    %v1833 = vld [vmem:[%s1828 + $0x20] sm:$0xff]
    %v1834 = vld [vmem:[%s1828 + $0x28] sm:$0xff]
    %v1835 = vld [vmem:[%s1828 + $0x30] sm:$0xff]
    %v1836 = vld [vmem:[%s1828 + $0x38] sm:$0xff]
    %v1837 = vld [vmem:[%s1828 + $0x40] sm:$0xff]
    %v1838 = vld [vmem:[%s1828 + $0x48] sm:$0xff]
    %v1839 = vld [vmem:[%s1828 + $0x50] sm:$0xff]
    %v1840 = vld [vmem:[%s1828 + $0x58] sm:$0xff]
    %v1841 = vld [vmem:[%s1828 + $0x60] sm:$0xff]
    %v1842 = vld [vmem:[%s1828 + $0x68] sm:$0xff]
    %v1843 = vld [vmem:[%s1828 + $0x70] sm:$0xff]
    %v1844 = vld [vmem:[%s1828 + $0x78] sm:$0xff]
    %v1845 = vld [vmem:[%s1828 + $0x80] sm:$0xff]
    %v1846 = vld [vmem:[%s1828 + $0x88] sm:$0xff]
    %v1847 = vld [vmem:[%s1828 + $0x90] sm:$0xff]
    %v1848 = vld [vmem:[%s1828 + $0x98] sm:$0xff]
    %v1849 = vld [vmem:[%s1828 + $0xa0] sm:$0xff]
    %v1850 = vld [vmem:[%s1828 + $0xa8] sm:$0xff]
    %v1851 = vld [vmem:[%s1828 + $0xb0] sm:$0xff]
    %v1852 = vld [vmem:[%s1828 + $0xb8] sm:$0xff]
    %v1853 = vld [vmem:[%s1828 + $0xc0] sm:$0xff]
    %v1854 = vld [vmem:[%s1828 + $0xc8] sm:$0xff]
    %v1855 = vld [vmem:[%s1828 + $0xd0] sm:$0xff]
    %v1856 = vld [vmem:[%s1828 + $0xd8] sm:$0xff]
    %v1857 = vld [vmem:[%s1828 + $0xe0] sm:$0xff]
    %v1858 = vld [vmem:[%s1828 + $0xe8] sm:$0xff]
    %v1859 = vld [vmem:[%s1828 + $0xf0] sm:$0xff]
    %v1860 = vld [vmem:[%s1828 + $0xf8] sm:$0xff]
    %v1861 = vld [vmem:[%s1828 + $0x100] sm:$0xff]
    %v1862 = vld [vmem:[%s1828 + $0x108] sm:$0xff]
    %v1863 = vld [vmem:[%s1828 + $0x110] sm:$0xff]
    %v1864 = vld [vmem:[%s1828 + $0x118] sm:$0xff]
    %v1865 = vld [vmem:[%s1828 + $0x120] sm:$0xff]
    %v1866 = vld [vmem:[%s1828 + $0x128] sm:$0xff]
    %v1867 = vld [vmem:[%s1828 + $0x130] sm:$0xff]
    %v1868 = vld [vmem:[%s1828 + $0x138] sm:$0xff]
    %v1869 = vld [vmem:[%s1828 + $0x140] sm:$0xff]
    %v1870 = vld [vmem:[%s1828 + $0x148] sm:$0xff]
    %v1871 = vld [vmem:[%s1828 + $0x150] sm:$0xff]
    %v1872 = vld [vmem:[%s1828 + $0x158] sm:$0xff]
    %v1873 = vld [vmem:[%s1828 + $0x160] sm:$0xff]
    %v1874 = vld [vmem:[%s1828 + $0x168] sm:$0xff]
    %v1875 = vld [vmem:[%s1828 + $0x170] sm:$0xff]
    %v1876 = vld [vmem:[%s1828 + $0x178] sm:$0xff]
    %v1877 = vld [vmem:[%s1828 + $0x180] sm:$0xff]
    %v1878 = vld [vmem:[%s1828 + $0x188] sm:$0xff]
    %v1879 = vld [vmem:[%s1828 + $0x190] sm:$0xff]
    %v1880 = vld [vmem:[%s1828 + $0x198] sm:$0xff]
    %v1881 = vld [vmem:[%s1828 + $0x1a0] sm:$0xff]
    %v1882 = vld [vmem:[%s1828 + $0x1a8] sm:$0xff]
    %v1883 = vld [vmem:[%s1828 + $0x1b0] sm:$0xff]
    %v1884 = vld [vmem:[%s1828 + $0x1b8] sm:$0xff]
    %v1885 = vld [vmem:[%s1828 + $0x1c0] sm:$0xff]
    %v1886 = vld [vmem:[%s1828 + $0x1c8] sm:$0xff]
    %v1887 = vld [vmem:[%s1828 + $0x1d0] sm:$0xff]
    %v1888 = vld [vmem:[%s1828 + $0x1d8] sm:$0xff]
    %v1889 = vld [vmem:[%s1828 + $0x1e0] sm:$0xff]
    %v1890 = vld [vmem:[%s1828 + $0x1e8] sm:$0xff]
    %v1891 = vld [vmem:[%s1828 + $0x1f0] sm:$0xff]
    %v1892 = vld [vmem:[%s1828 + $0x1f8] sm:$0xff]
    %v1893 = vld [vmem:[%s1828 + $0x200] sm:$0xff]
    %v1894 = vld [vmem:[%s1828 + $0x208] sm:$0xff]
    %v1895 = vld [vmem:[%s1828 + $0x210] sm:$0xff]
    %v1896 = vld [vmem:[%s1828 + $0x218] sm:$0xff]
    %v1897 = vld [vmem:[%s1828 + $0x220] sm:$0xff]
    %v1898 = vld [vmem:[%s1828 + $0x228] sm:$0xff]
    %v1899 = vld [vmem:[%s1828 + $0x230] sm:$0xff]
    %v1900 = vld [vmem:[%s1828 + $0x238] sm:$0xff]
    %v1901 = vld [vmem:[%s1828 + $0x240] sm:$0xff]
    %v1902 = vld [vmem:[%s1828 + $0x248] sm:$0xff]
    %v1903 = vld [vmem:[%s1828 + $0x250] sm:$0xff]
    %v1904 = vld [vmem:[%s1828 + $0x258] sm:$0xff]
    %v1905 = vld [vmem:[%s1828 + $0x260] sm:$0xff]
    %v1906 = vld [vmem:[%s1828 + $0x268] sm:$0xff]
    %v1907 = vld [vmem:[%s1828 + $0x270] sm:$0xff]
    %v1908 = vld [vmem:[%s1828 + $0x278] sm:$0xff]
    %v1909 = vld [vmem:[%s1828 + $0x280] sm:$0xff]
    %v1910 = vld [vmem:[%s1828 + $0x288] sm:$0xff]
    %v1911 = vld [vmem:[%s1828 + $0x290] sm:$0xff]
    %v1912 = vld [vmem:[%s1828 + $0x298] sm:$0xff]
    %v1913 = vld [vmem:[%s1828 + $0x2a0] sm:$0xff]
    %v1914 = vld [vmem:[%s1828 + $0x2a8] sm:$0xff]
    %v1915 = vld [vmem:[%s1828 + $0x2b0] sm:$0xff]
    %v1916 = vld [vmem:[%s1828 + $0x2b8] sm:$0xff]
    %v1917 = vld [vmem:[%s1828 + $0x2c0] sm:$0xff]
    %v1918 = vld [vmem:[%s1828 + $0x2c8] sm:$0xff]
    %v1919 = vld [vmem:[%s1828 + $0x2d0] sm:$0xff]
    %v1920 = vld [vmem:[%s1828 + $0x2d8] sm:$0xff]
    %v1921 = vld [vmem:[%s1828 + $0x2e0] sm:$0xff]
    %v1922 = vld [vmem:[%s1828 + $0x2e8] sm:$0xff]
    %v1923 = vld [vmem:[%s1828 + $0x2f0] sm:$0xff]
    %v1924 = vld [vmem:[%s1828 + $0x2f8] sm:$0xff]
    %v1925 = vld [vmem:[%s1828 + $0x300] sm:$0xff]
    %v1926 = vld [vmem:[%s1828 + $0x308] sm:$0xff]
    %v1927 = vld [vmem:[%s1828 + $0x310] sm:$0xff]
    %v1928 = vld [vmem:[%s1828 + $0x318] sm:$0xff]
    %v1929 = vld [vmem:[%s1828 + $0x320] sm:$0xff]
    %v1930 = vld [vmem:[%s1828 + $0x328] sm:$0xff]
    %v1931 = vld [vmem:[%s1828 + $0x330] sm:$0xff]
    %v1932 = vld [vmem:[%s1828 + $0x338] sm:$0xff]
    %v1933 = vld [vmem:[%s1828 + $0x340] sm:$0xff]
    %v1934 = vld [vmem:[%s1828 + $0x348] sm:$0xff]
    %v1935 = vld [vmem:[%s1828 + $0x350] sm:$0xff]
    %v1936 = vld [vmem:[%s1828 + $0x358] sm:$0xff]
    %v1937 = vld [vmem:[%s1828 + $0x360] sm:$0xff]
    %v1938 = vld [vmem:[%s1828 + $0x368] sm:$0xff]
    %v1939 = vld [vmem:[%s1828 + $0x370] sm:$0xff]
    %v1940 = vld [vmem:[%s1828 + $0x378] sm:$0xff]
    %v1941 = vld [vmem:[%s1828 + $0x380] sm:$0xff]
    %v1942 = vld [vmem:[%s1828 + $0x388] sm:$0xff]
    %v1943 = vld [vmem:[%s1828 + $0x390] sm:$0xff]
    %v1944 = vld [vmem:[%s1828 + $0x398] sm:$0xff]
    %v1945 = vld [vmem:[%s1828 + $0x3a0] sm:$0xff]
    %v1946 = vld [vmem:[%s1828 + $0x3a8] sm:$0xff]
    %v1947 = vld [vmem:[%s1828 + $0x3b0] sm:$0xff]
    %v1948 = vld [vmem:[%s1828 + $0x3b8] sm:$0xff]
    %v1949 = vld [vmem:[%s1828 + $0x3c0] sm:$0xff]
    %v1950 = vld [vmem:[%s1828 + $0x3c8] sm:$0xff]
    %v1951 = vld [vmem:[%s1828 + $0x3d0] sm:$0xff]
    %v1952 = vld [vmem:[%s1828 + $0x3d8] sm:$0xff]
    %v1953 = vld [vmem:[%s1828 + $0x3e0] sm:$0xff]
    %v1954 = vld [vmem:[%s1828 + $0x3e8] sm:$0xff]
    %v1955 = vld [vmem:[%s1828 + $0x3f0] sm:$0xff]
    %v1956 = vld [vmem:[%s1828 + $0x3f8] sm:$0xff]
    %v1957 = vld [vmem:[%s1828 + $0x400] sm:$0xff]
    %v1958 = vld [vmem:[%s1828 + $0x408] sm:$0xff]
    %v1959 = vld [vmem:[%s1828 + $0x410] sm:$0xff]
    %v1960 = vld [vmem:[%s1828 + $0x418] sm:$0xff]
    %v1961 = vld [vmem:[%s1828 + $0x420] sm:$0xff]
    %v1962 = vld [vmem:[%s1828 + $0x428] sm:$0xff]
    %v1963 = vld [vmem:[%s1828 + $0x430] sm:$0xff]
    %v1964 = vld [vmem:[%s1828 + $0x438] sm:$0xff]
    %v1965 = vld [vmem:[%s1828 + $0x440] sm:$0xff]
    %v1966 = vld [vmem:[%s1828 + $0x448] sm:$0xff]
    %v1967 = vld [vmem:[%s1828 + $0x450] sm:$0xff]
    %v1968 = vld [vmem:[%s1828 + $0x458] sm:$0xff]
    %v1969 = vld [vmem:[%s1828 + $0x460] sm:$0xff]
    %v1970 = vld [vmem:[%s1828 + $0x468] sm:$0xff]
    %v1971 = vld [vmem:[%s1828 + $0x470] sm:$0xff]
    %v1972 = vld [vmem:[%s1828 + $0x478] sm:$0xff]
    %v1973 = vld [vmem:[%s1828 + $0x480] sm:$0xff]
    %v1974 = vld [vmem:[%s1828 + $0x488] sm:$0xff]
    %v1975 = vld [vmem:[%s1828 + $0x490] sm:$0xff]
    %v1976 = vld [vmem:[%s1828 + $0x498] sm:$0xff]
    %v1977 = vld [vmem:[%s1828 + $0x4a0] sm:$0xff]
    %v1978 = vld [vmem:[%s1828 + $0x4a8] sm:$0xff]
    %v1979 = vld [vmem:[%s1828 + $0x4b0] sm:$0xff]
    %v1980 = vld [vmem:[%s1828 + $0x4b8] sm:$0xff]
    %v1981 = vld [vmem:[%s1828 + $0x4c0] sm:$0xff]
    %v1982 = vld [vmem:[%s1828 + $0x4c8] sm:$0xff]
    %v1983 = vld [vmem:[%s1828 + $0x4d0] sm:$0xff]
    %v1984 = vld [vmem:[%s1828 + $0x4d8] sm:$0xff]
    %v1985 = vld [vmem:[%s1828 + $0x4e0] sm:$0xff]
    %v1986 = vld [vmem:[%s1828 + $0x4e8] sm:$0xff]
    %v1987 = vld [vmem:[%s1828 + $0x4f0] sm:$0xff]
    %v1988 = vld [vmem:[%s1828 + $0x4f8] sm:$0xff]
    %v1989 = vld [vmem:[%s1828 + $0x500] sm:$0xff]
    %v1990 = vld [vmem:[%s1828 + $0x508] sm:$0xff]
    %v1991 = vld [vmem:[%s1828 + $0x510] sm:$0xff]
    %v1992 = vld [vmem:[%s1828 + $0x518] sm:$0xff]
    %v1993 = vld [vmem:[%s1828 + $0x520] sm:$0xff]
    %v1994 = vld [vmem:[%s1828 + $0x528] sm:$0xff]
    %v1995 = vld [vmem:[%s1828 + $0x530] sm:$0xff]
    %v1996 = vld [vmem:[%s1828 + $0x538] sm:$0xff]
    %v1997 = vld [vmem:[%s1828 + $0x540] sm:$0xff]
    %v1998 = vld [vmem:[%s1828 + $0x548] sm:$0xff]
    %v1999 = vld [vmem:[%s1828 + $0x550] sm:$0xff]
    %v2000 = vld [vmem:[%s1828 + $0x558] sm:$0xff]
    %v2001 = vld [vmem:[%s1828 + $0x560] sm:$0xff]
    %v2002 = vld [vmem:[%s1828 + $0x568] sm:$0xff]
    %v2003 = vld [vmem:[%s1828 + $0x570] sm:$0xff]
    %v2004 = vld [vmem:[%s1828 + $0x578] sm:$0xff]
    %v2005 = vld [vmem:[%s1828 + $0x580] sm:$0xff]
    %v2006 = vld [vmem:[%s1828 + $0x588] sm:$0xff]
    %v2007 = vld [vmem:[%s1828 + $0x590] sm:$0xff]
    %v2008 = vld [vmem:[%s1828 + $0x598] sm:$0xff]
    %v2009 = vld [vmem:[%s1828 + $0x5a0] sm:$0xff]
    %v2010 = vld [vmem:[%s1828 + $0x5a8] sm:$0xff]
    %v2011 = vld [vmem:[%s1828 + $0x5b0] sm:$0xff]
    %v2012 = vld [vmem:[%s1828 + $0x5b8] sm:$0xff]
    %v2013 = vld [vmem:[%s1828 + $0x5c0] sm:$0xff]
    %v2014 = vld [vmem:[%s1828 + $0x5c8] sm:$0xff]
    %v2015 = vld [vmem:[%s1828 + $0x5d0] sm:$0xff]
    %v2016 = vld [vmem:[%s1828 + $0x5d8] sm:$0xff]
    %v2017 = vld [vmem:[%s1828 + $0x5e0] sm:$0xff]
    %v2018 = vld [vmem:[%s1828 + $0x5e8] sm:$0xff]
    %v2019 = vld [vmem:[%s1828 + $0x5f0] sm:$0xff]
    %v2020 = vld [vmem:[%s1828 + $0x5f8] sm:$0xff]
    %v2021 = vld [vmem:[%s1828 + $0x600] sm:$0xff]
    %v2022 = vld [vmem:[%s1828 + $0x608] sm:$0xff]
    %v2023 = vld [vmem:[%s1828 + $0x610] sm:$0xff]
    %v2024 = vld [vmem:[%s1828 + $0x618] sm:$0xff]
    %v2025 = vld [vmem:[%s1828 + $0x620] sm:$0xff]
    %v2026 = vld [vmem:[%s1828 + $0x628] sm:$0xff]
    %v2027 = vld [vmem:[%s1828 + $0x630] sm:$0xff]
    %v2028 = vld [vmem:[%s1828 + $0x638] sm:$0xff]
    %v2029 = vld [vmem:[%s1828 + $0x640] sm:$0xff]
    %v2030 = vld [vmem:[%s1828 + $0x648] sm:$0xff]
    %v2031 = vld [vmem:[%s1828 + $0x650] sm:$0xff]
    %v2032 = vld [vmem:[%s1828 + $0x658] sm:$0xff]
    %v2033 = vld [vmem:[%s1828 + $0x660] sm:$0xff]
    %v2034 = vld [vmem:[%s1828 + $0x668] sm:$0xff]
    %v2035 = vld [vmem:[%s1828 + $0x670] sm:$0xff]
    %v2036 = vld [vmem:[%s1828 + $0x678] sm:$0xff]
    %v2037 = vld [vmem:[%s1828 + $0x680] sm:$0xff]
    %v2038 = vld [vmem:[%s1828 + $0x688] sm:$0xff]
    %v2039 = vld [vmem:[%s1828 + $0x690] sm:$0xff]
    %v2040 = vld [vmem:[%s1828 + $0x698] sm:$0xff]
    %v2041 = vld [vmem:[%s1828 + $0x6a0] sm:$0xff]
    %v2042 = vld [vmem:[%s1828 + $0x6a8] sm:$0xff]
    %v2043 = vld [vmem:[%s1828 + $0x6b0] sm:$0xff]
    %v2044 = vld [vmem:[%s1828 + $0x6b8] sm:$0xff]
    %v2045 = vld [vmem:[%s1828 + $0x6c0] sm:$0xff]
    %v2046 = vld [vmem:[%s1828 + $0x6c8] sm:$0xff]
    %v2047 = vld [vmem:[%s1828 + $0x6d0] sm:$0xff]
    %v2048 = vld [vmem:[%s1828 + $0x6d8] sm:$0xff]
    %v2049 = vld [vmem:[%s1828 + $0x6e0] sm:$0xff]
    %v2050 = vld [vmem:[%s1828 + $0x6e8] sm:$0xff]
    %v2051 = vld [vmem:[%s1828 + $0x6f0] sm:$0xff]
    %v2052 = vld [vmem:[%s1828 + $0x6f8] sm:$0xff]
    %v2053 = vld [vmem:[%s1828 + $0x700] sm:$0xff]
    %v2054 = vld [vmem:[%s1828 + $0x708] sm:$0xff]
    %v2055 = vld [vmem:[%s1828 + $0x710] sm:$0xff]
    %v2056 = vld [vmem:[%s1828 + $0x718] sm:$0xff]
    %v2057 = vld [vmem:[%s1828 + $0x720] sm:$0xff]
    %v2058 = vld [vmem:[%s1828 + $0x728] sm:$0xff]
    %v2059 = vld [vmem:[%s1828 + $0x730] sm:$0xff]
    %v2060 = vld [vmem:[%s1828 + $0x738] sm:$0xff]
    %v2061 = vld [vmem:[%s1828 + $0x740] sm:$0xff]
    %v2062 = vld [vmem:[%s1828 + $0x748] sm:$0xff]
    %v2063 = vld [vmem:[%s1828 + $0x750] sm:$0xff]
    %v2064 = vld [vmem:[%s1828 + $0x758] sm:$0xff]
    %v2065 = vld [vmem:[%s1828 + $0x760] sm:$0xff]
    %v2066 = vld [vmem:[%s1828 + $0x768] sm:$0xff]
    %v2067 = vld [vmem:[%s1828 + $0x770] sm:$0xff]
    %v2068 = vld [vmem:[%s1828 + $0x778] sm:$0xff]
    %v2069 = vld [vmem:[%s1828 + $0x780] sm:$0xff]
    %v2070 = vld [vmem:[%s1828 + $0x788] sm:$0xff]
    %v2071 = vld [vmem:[%s1828 + $0x790] sm:$0xff]
    %v2072 = vld [vmem:[%s1828 + $0x798] sm:$0xff]
    %v2073 = vld [vmem:[%s1828 + $0x7a0] sm:$0xff]
    %v2074 = vld [vmem:[%s1828 + $0x7a8] sm:$0xff]
    %v2075 = vld [vmem:[%s1828 + $0x7b0] sm:$0xff]
    %v2076 = vld [vmem:[%s1828 + $0x7b8] sm:$0xff]
    %v2077 = vld [vmem:[%s1828 + $0x7c0] sm:$0xff]
    %v2078 = vld [vmem:[%s1828 + $0x7c8] sm:$0xff]
    %v2079 = vld [vmem:[%s1828 + $0x7d0] sm:$0xff]
    %v2080 = vld [vmem:[%s1828 + $0x7d8] sm:$0xff]
    %v2081 = vld [vmem:[%s1828 + $0x7e0] sm:$0xff]
    %v2082 = vld [vmem:[%s1828 + $0x7e8] sm:$0xff]
    %v2083 = vld [vmem:[%s1828 + $0x7f0] sm:$0xff]
    %v2084 = vld [vmem:[%s1828 + $0x7f8] sm:$0xff]
    %v2086 = vcombine.high %v1827, %v1827
    %v2088 = vunpack.c.l.s4 1983009808
    %v2089 = vunpack.c.0.s8 %v2088
    %v2090 = vlaneseq
    %v2091 = vshrl.u32 %v2090, 7
    %v2092 = vsub.s32 %v2089, %v2091
    %v2093 = vrot.slane %v1827, %v2092
    %v2095 = vunpack.c.l.s4 1983009808
    %v2096 = vunpack.c.0.s8 %v2095
    %v2097 = vlaneseq
    %v2098 = vshrl.u32 %v2097, 7
    %v2099 = vsub.s32 %v2096, %v2098
    %v2100 = vrot.slane %v2086, %v2099
    %v2101 = vcombine.high %v2093, %v2093
    %v2102 = vcombine.high %v2100, %v2100
    %2107 = vmatprep.subr.mxu0 %v1890
    %2108 = vmatpush1.msra.mxu0 %v1889
    %2109 = vmatprep.subr.mxu0 %v1886
    %2110 = vmatpush1.msra.mxu0 %v1885
    %2111 = vmatprep.subr.mxu0 %v1882
    %2112 = vmatpush1.msra.mxu0 %v1881
    %2113 = vmatprep.subr.mxu0 %v1878
    %2114 = vmatpush1.msra.mxu0 %v1877
    %2115 = vmatprep.subr.mxu0 %v1874
    %2116 = vmatpush1.msra.mxu0 %v1873
    %2117 = vmatprep.subr.mxu0 %v1870
    %2118 = vmatpush1.msra.mxu0 %v1869
    %2119 = vmatprep.subr.mxu0 %v1866
    %2120 = vmatpush1.msra.mxu0 %v1865
    %2121 = vmatprep.subr.mxu0 %v1862
    %2122 = vmatpush1.msra.mxu0 %v1861
    %2123 = vmatprep.subr.mxu0 %v1858
    %2124 = vmatpush1.msra.mxu0 %v1857
    %2125 = vmatprep.subr.mxu0 %v1854
    %2126 = vmatpush1.msra.mxu0 %v1853
    %2127 = vmatprep.subr.mxu0 %v1850
    %2128 = vmatpush1.msra.mxu0 %v1849
    %2129 = vmatprep.subr.mxu0 %v1846
    %2130 = vmatpush1.msra.mxu0 %v1845
    %2131 = vmatprep.subr.mxu0 %v1842
    %2132 = vmatpush1.msra.mxu0 %v1841
    %2133 = vmatprep.subr.mxu0 %v1838
    %2134 = vmatpush1.msra.mxu0 %v1837
    %2135 = vmatprep.subr.mxu0 %v1834
    %2136 = vmatpush1.msra.mxu0 %v1833
    %2137 = vmatprep.subr.mxu0 %v1830
    %2138 = vmatpush1.msra.mxu0 %v1829
    %2139 = vmatprep.subr.mxu0 %v1954
    %2140 = vmatpush2.msra.mxu0 %v1953
    %2141 = vmatprep.subr.mxu0 %v1950
    %2142 = vmatpush2.msra.mxu0 %v1949
    %2143 = vmatprep.subr.mxu0 %v1946
    %2144 = vmatpush2.msra.mxu0 %v1945
    %2145 = vmatprep.subr.mxu0 %v1942
    %2146 = vmatpush2.msra.mxu0 %v1941
    %2147 = vmatprep.subr.mxu0 %v1938
    %2148 = vmatpush2.msra.mxu0 %v1937
    %2149 = vmatprep.subr.mxu0 %v1934
    %2150 = vmatpush2.msra.mxu0 %v1933
    %2151 = vmatprep.subr.mxu0 %v1930
    %2152 = vmatpush2.msra.mxu0 %v1929
    %2153 = vmatprep.subr.mxu0 %v1926
    %2154 = vmatpush2.msra.mxu0 %v1925
    %2155 = vmatprep.subr.mxu0 %v1922
    %2156 = vmatpush2.msra.mxu0 %v1921
    %2157 = vmatprep.subr.mxu0 %v1918
    %2158 = vmatpush2.msra.mxu0 %v1917
    %2159 = vmatprep.subr.mxu0 %v1914
    %2160 = vmatpush2.msra.mxu0 %v1913
    %2161 = vmatprep.subr.mxu0 %v1910
    %2162 = vmatpush2.msra.mxu0 %v1909
    %2163 = vmatprep.subr.mxu0 %v1906
    %2164 = vmatpush2.msra.mxu0 %v1905
    %2165 = vmatprep.subr.mxu0 %v1902
    %2166 = vmatpush2.msra.mxu0 %v1901
    %2167 = vmatprep.subr.mxu0 %v1898
    %2168 = vmatpush2.msra.mxu0 %v1897
    %2169 = vmatprep.subr.mxu0 %v1894
    %2170 = vmatpush2.msra.mxu0 %v1893
    %2171 = vmatprep.mubr.f32.mxu0 %v2101
    %2172 = vmatmul.mubr.f32.gmra.mxu0 %v2093
    %v2173 = vpop.f32.mrf.mxu0
    %v2174 = vadd.f32 0.0, %v2173
    %v2175 = vpop.f32.mrf.mxu0
    %v2176 = vadd.f32 0.0, %v2175
    %2177 = vdwg.mxu0
    %2178 = vmatprep.subr.mxu0 %v2018
    %2179 = vmatpush1.msra.mxu0 %v2017
    %2180 = vmatprep.subr.mxu0 %v2014
    %2181 = vmatpush1.msra.mxu0 %v2013
    %2182 = vmatprep.subr.mxu0 %v2010
    %2183 = vmatpush1.msra.mxu0 %v2009
    %2184 = vmatprep.subr.mxu0 %v2006
    %2185 = vmatpush1.msra.mxu0 %v2005
    %2186 = vmatprep.subr.mxu0 %v2002
    %2187 = vmatpush1.msra.mxu0 %v2001
    %2188 = vmatprep.subr.mxu0 %v1998
    %2189 = vmatpush1.msra.mxu0 %v1997
    %2190 = vmatprep.subr.mxu0 %v1994
    %2191 = vmatpush1.msra.mxu0 %v1993
    %2192 = vmatprep.subr.mxu0 %v1990
    %2193 = vmatpush1.msra.mxu0 %v1989
    %2194 = vmatprep.subr.mxu0 %v1986
    %2195 = vmatpush1.msra.mxu0 %v1985
    %2196 = vmatprep.subr.mxu0 %v1982
    %2197 = vmatpush1.msra.mxu0 %v1981
    %2198 = vmatprep.subr.mxu0 %v1978
    %2199 = vmatpush1.msra.mxu0 %v1977
    %2200 = vmatprep.subr.mxu0 %v1974
    %2201 = vmatpush1.msra.mxu0 %v1973
    %2202 = vmatprep.subr.mxu0 %v1970
    %2203 = vmatpush1.msra.mxu0 %v1969
    %2204 = vmatprep.subr.mxu0 %v1966
    %2205 = vmatpush1.msra.mxu0 %v1965
    %2206 = vmatprep.subr.mxu0 %v1962
    %2207 = vmatpush1.msra.mxu0 %v1961
    %2208 = vmatprep.subr.mxu0 %v1958
    %2209 = vmatpush1.msra.mxu0 %v1957
    %2210 = vmatprep.subr.mxu0 %v2082
    %2211 = vmatpush2.msra.mxu0 %v2081
    %2212 = vmatprep.subr.mxu0 %v2078
    %2213 = vmatpush2.msra.mxu0 %v2077
    %2214 = vmatprep.subr.mxu0 %v2074
    %2215 = vmatpush2.msra.mxu0 %v2073
    %2216 = vmatprep.subr.mxu0 %v2070
    %2217 = vmatpush2.msra.mxu0 %v2069
    %2218 = vmatprep.subr.mxu0 %v2066
    %2219 = vmatpush2.msra.mxu0 %v2065
    %2220 = vmatprep.subr.mxu0 %v2062
    %2221 = vmatpush2.msra.mxu0 %v2061
    %2222 = vmatprep.subr.mxu0 %v2058
    %2223 = vmatpush2.msra.mxu0 %v2057
    %2224 = vmatprep.subr.mxu0 %v2054
    %2225 = vmatpush2.msra.mxu0 %v2053
    %2226 = vmatprep.subr.mxu0 %v2050
    %2227 = vmatpush2.msra.mxu0 %v2049
    %2228 = vmatprep.subr.mxu0 %v2046
    %2229 = vmatpush2.msra.mxu0 %v2045
    %2230 = vmatprep.subr.mxu0 %v2042
    %2231 = vmatpush2.msra.mxu0 %v2041
    %2232 = vmatprep.subr.mxu0 %v2038
    %2233 = vmatpush2.msra.mxu0 %v2037
    %2234 = vmatprep.subr.mxu0 %v2034
    %2235 = vmatpush2.msra.mxu0 %v2033
    %2236 = vmatprep.subr.mxu0 %v2030
    %2237 = vmatpush2.msra.mxu0 %v2029
    %2238 = vmatprep.subr.mxu0 %v2026
    %2239 = vmatpush2.msra.mxu0 %v2025
    %2240 = vmatprep.subr.mxu0 %v2022
    %2241 = vmatpush2.msra.mxu0 %v2021
    %2242 = vmatprep.mubr.f32.mxu0 %v2102
    %2243 = vmatmul.mubr.f32.gmra.mxu0 %v2100
    %v2244 = vpop.f32.mrf.mxu0
    %v2245 = vadd.f32 %v2174, %v2244
    %v2246 = vpop.f32.mrf.mxu0
    %v2247 = vadd.f32 %v2176, %v2246
    %2248 = vdwg.mxu0
    %2249 = vmatprep.subr.mxu0 %v1892
    %2250 = vmatpush1.msra.mxu0 %v1891
    %2251 = vmatprep.subr.mxu0 %v1888
    %2252 = vmatpush1.msra.mxu0 %v1887
    %2253 = vmatprep.subr.mxu0 %v1884
    %2254 = vmatpush1.msra.mxu0 %v1883
    %2255 = vmatprep.subr.mxu0 %v1880
    %2256 = vmatpush1.msra.mxu0 %v1879
    %2257 = vmatprep.subr.mxu0 %v1876
    %2258 = vmatpush1.msra.mxu0 %v1875
    %2259 = vmatprep.subr.mxu0 %v1872
    %2260 = vmatpush1.msra.mxu0 %v1871
    %2261 = vmatprep.subr.mxu0 %v1868
    %2262 = vmatpush1.msra.mxu0 %v1867
    %2263 = vmatprep.subr.mxu0 %v1864
    %2264 = vmatpush1.msra.mxu0 %v1863
    %2265 = vmatprep.subr.mxu0 %v1860
    %2266 = vmatpush1.msra.mxu0 %v1859
    %2267 = vmatprep.subr.mxu0 %v1856
    %2268 = vmatpush1.msra.mxu0 %v1855
    %2269 = vmatprep.subr.mxu0 %v1852
    %2270 = vmatpush1.msra.mxu0 %v1851
    %2271 = vmatprep.subr.mxu0 %v1848
    %2272 = vmatpush1.msra.mxu0 %v1847
    %2273 = vmatprep.subr.mxu0 %v1844
    %2274 = vmatpush1.msra.mxu0 %v1843
    %2275 = vmatprep.subr.mxu0 %v1840
    %2276 = vmatpush1.msra.mxu0 %v1839
    %2277 = vmatprep.subr.mxu0 %v1836
    %2278 = vmatpush1.msra.mxu0 %v1835
    %2279 = vmatprep.subr.mxu0 %v1832
    %2280 = vmatpush1.msra.mxu0 %v1831
    %2281 = vmatprep.subr.mxu0 %v1956
    %2282 = vmatpush2.msra.mxu0 %v1955
    %2283 = vmatprep.subr.mxu0 %v1952
    %2284 = vmatpush2.msra.mxu0 %v1951
    %2285 = vmatprep.subr.mxu0 %v1948
    %2286 = vmatpush2.msra.mxu0 %v1947
    %2287 = vmatprep.subr.mxu0 %v1944
    %2288 = vmatpush2.msra.mxu0 %v1943
    %2289 = vmatprep.subr.mxu0 %v1940
    %2290 = vmatpush2.msra.mxu0 %v1939
    %2291 = vmatprep.subr.mxu0 %v1936
    %2292 = vmatpush2.msra.mxu0 %v1935
    %2293 = vmatprep.subr.mxu0 %v1932
    %2294 = vmatpush2.msra.mxu0 %v1931
    %2295 = vmatprep.subr.mxu0 %v1928
    %2296 = vmatpush2.msra.mxu0 %v1927
    %2297 = vmatprep.subr.mxu0 %v1924
    %2298 = vmatpush2.msra.mxu0 %v1923
    %2299 = vmatprep.subr.mxu0 %v1920
    %2300 = vmatpush2.msra.mxu0 %v1919
    %2301 = vmatprep.subr.mxu0 %v1916
    %2302 = vmatpush2.msra.mxu0 %v1915
    %2303 = vmatprep.subr.mxu0 %v1912
    %2304 = vmatpush2.msra.mxu0 %v1911
    %2305 = vmatprep.subr.mxu0 %v1908
    %2306 = vmatpush2.msra.mxu0 %v1907
    %2307 = vmatprep.subr.mxu0 %v1904
    %2308 = vmatpush2.msra.mxu0 %v1903
    %2309 = vmatprep.subr.mxu0 %v1900
    %2310 = vmatpush2.msra.mxu0 %v1899
    %2311 = vmatprep.subr.mxu0 %v1896
    %2312 = vmatpush2.msra.mxu0 %v1895
    %2313 = vmatprep.mubr.f32.mxu0 %v2101
    %2314 = vmatmul.mubr.f32.gmra.mxu0 %v2093
    %v2315 = vpop.f32.mrf.mxu0
    %v2316 = vadd.f32 0.0, %v2315
    %v2317 = vpop.f32.mrf.mxu0
    %v2318 = vadd.f32 0.0, %v2317
    %2319 = vdwg.mxu0
    %2320 = vmatprep.subr.mxu0 %v2020
    %2321 = vmatpush1.msra.mxu0 %v2019
    %2322 = vmatprep.subr.mxu0 %v2016
    %2323 = vmatpush1.msra.mxu0 %v2015
    %2324 = vmatprep.subr.mxu0 %v2012
    %2325 = vmatpush1.msra.mxu0 %v2011
    %2326 = vmatprep.subr.mxu0 %v2008
    %2327 = vmatpush1.msra.mxu0 %v2007
    %2328 = vmatprep.subr.mxu0 %v2004
    %2329 = vmatpush1.msra.mxu0 %v2003
    %2330 = vmatprep.subr.mxu0 %v2000
    %2331 = vmatpush1.msra.mxu0 %v1999
    %2332 = vmatprep.subr.mxu0 %v1996
    %2333 = vmatpush1.msra.mxu0 %v1995
    %2334 = vmatprep.subr.mxu0 %v1992
    %2335 = vmatpush1.msra.mxu0 %v1991
    %2336 = vmatprep.subr.mxu0 %v1988
    %2337 = vmatpush1.msra.mxu0 %v1987
    %2338 = vmatprep.subr.mxu0 %v1984
    %2339 = vmatpush1.msra.mxu0 %v1983
    %2340 = vmatprep.subr.mxu0 %v1980
    %2341 = vmatpush1.msra.mxu0 %v1979
    %2342 = vmatprep.subr.mxu0 %v1976
    %2343 = vmatpush1.msra.mxu0 %v1975
    %2344 = vmatprep.subr.mxu0 %v1972
    %2345 = vmatpush1.msra.mxu0 %v1971
    %2346 = vmatprep.subr.mxu0 %v1968
    %2347 = vmatpush1.msra.mxu0 %v1967
    %2348 = vmatprep.subr.mxu0 %v1964
    %2349 = vmatpush1.msra.mxu0 %v1963
    %2350 = vmatprep.subr.mxu0 %v1960
    %2351 = vmatpush1.msra.mxu0 %v1959
    %2352 = vmatprep.subr.mxu0 %v2084
    %2353 = vmatpush2.msra.mxu0 %v2083
    %2354 = vmatprep.subr.mxu0 %v2080
    %2355 = vmatpush2.msra.mxu0 %v2079
    %2356 = vmatprep.subr.mxu0 %v2076
    %2357 = vmatpush2.msra.mxu0 %v2075
    %2358 = vmatprep.subr.mxu0 %v2072
    %2359 = vmatpush2.msra.mxu0 %v2071
    %2360 = vmatprep.subr.mxu0 %v2068
    %2361 = vmatpush2.msra.mxu0 %v2067
    %2362 = vmatprep.subr.mxu0 %v2064
    %2363 = vmatpush2.msra.mxu0 %v2063
    %2364 = vmatprep.subr.mxu0 %v2060
    %2365 = vmatpush2.msra.mxu0 %v2059
    %2366 = vmatprep.subr.mxu0 %v2056
    %2367 = vmatpush2.msra.mxu0 %v2055
    %2368 = vmatprep.subr.mxu0 %v2052
    %2369 = vmatpush2.msra.mxu0 %v2051
    %2370 = vmatprep.subr.mxu0 %v2048
    %2371 = vmatpush2.msra.mxu0 %v2047
    %2372 = vmatprep.subr.mxu0 %v2044
    %2373 = vmatpush2.msra.mxu0 %v2043
    %2374 = vmatprep.subr.mxu0 %v2040
    %2375 = vmatpush2.msra.mxu0 %v2039
    %2376 = vmatprep.subr.mxu0 %v2036
    %2377 = vmatpush2.msra.mxu0 %v2035
    %2378 = vmatprep.subr.mxu0 %v2032
    %2379 = vmatpush2.msra.mxu0 %v2031
    %2380 = vmatprep.subr.mxu0 %v2028
    %2381 = vmatpush2.msra.mxu0 %v2027
    %2382 = vmatprep.subr.mxu0 %v2024
    %2383 = vmatpush2.msra.mxu0 %v2023
    %2384 = vmatprep.mubr.f32.mxu0 %v2102
    %2385 = vmatmul.mubr.f32.gmra.mxu0 %v2100
    %v2386 = vpop.f32.mrf.mxu0
    %v2387 = vadd.f32 %v2316, %v2386
    %v2388 = vpop.f32.mrf.mxu0
    %v2389 = vadd.f32 %v2318, %v2388
    %2390 = vdwg.mxu0
    %v2391 = vadd.f32 %v1821, %v2245
    %v2392 = vadd.f32 %v1822, %v2247
    %v2393 = vadd.f32 %v1823, %v2387
    %v2394 = vadd.f32 %v1824, %v2389
    %s2395 = sld [smem:[#allocation14]]
    %v2396 = vstv %s2395
    %v2397 = vadd.f32 %v2391, %v2396
    %v2398 = vadd.f32 %v2392, %v2396
    %v2399 = vadd.f32 %v2393, %v2396
    %v2400 = vadd.f32 %v2394, %v2396
    %v2401 = vmax.f32 %v2397, 0.0
    %v2402 = vmax.f32 %v2398, 0.0
    %v2403 = vmax.f32 %v2399, 0.0
    %v2404 = vmax.f32 %v2400, 0.0
    %v2405 = vld [vmem:[%s2] sm:$0xff]
    %v2406 = vld [vmem:[%s2 + $0x8] sm:$0xff]
    %v2407 = vld [vmem:[%s2 + $0x10] sm:$0xff]
    %v2408 = vld [vmem:[%s2 + $0x18] sm:$0xff]
    %v2409 = vld [vmem:[%s2 + $0x20] sm:$0xff]
    %v2410 = vld [vmem:[%s2 + $0x28] sm:$0xff]
    %v2411 = vld [vmem:[%s2 + $0x30] sm:$0xff]
    %v2412 = vld [vmem:[%s2 + $0x38] sm:$0xff]
    %v2413 = vld [vmem:[%s2 + $0x40] sm:$0xff]
    %v2414 = vld [vmem:[%s2 + $0x48] sm:$0xff]
    %v2415 = vld [vmem:[%s2 + $0x50] sm:$0xff]
    %v2416 = vld [vmem:[%s2 + $0x58] sm:$0xff]
    %v2417 = vld [vmem:[%s2 + $0x60] sm:$0xff]
    %v2418 = vld [vmem:[%s2 + $0x68] sm:$0xff]
    %v2419 = vld [vmem:[%s2 + $0x70] sm:$0xff]
    %v2420 = vld [vmem:[%s2 + $0x78] sm:$0xff]
    %v2421 = vld [vmem:[%s2 + $0x80] sm:$0xff]
    %v2422 = vld [vmem:[%s2 + $0x88] sm:$0xff]
    %v2423 = vld [vmem:[%s2 + $0x90] sm:$0xff]
    %v2424 = vld [vmem:[%s2 + $0x98] sm:$0xff]
    %v2425 = vld [vmem:[%s2 + $0xa0] sm:$0xff]
    %v2426 = vld [vmem:[%s2 + $0xa8] sm:$0xff]
    %v2427 = vld [vmem:[%s2 + $0xb0] sm:$0xff]
    %v2428 = vld [vmem:[%s2 + $0xb8] sm:$0xff]
    %v2429 = vld [vmem:[%s2 + $0xc0] sm:$0xff]
    %v2430 = vld [vmem:[%s2 + $0xc8] sm:$0xff]
    %v2431 = vld [vmem:[%s2 + $0xd0] sm:$0xff]
    %v2432 = vld [vmem:[%s2 + $0xd8] sm:$0xff]
    %v2433 = vld [vmem:[%s2 + $0xe0] sm:$0xff]
    %v2434 = vld [vmem:[%s2 + $0xe8] sm:$0xff]
    %v2435 = vld [vmem:[%s2 + $0xf0] sm:$0xff]
    %v2436 = vld [vmem:[%s2 + $0xf8] sm:$0xff]
    %v2437 = vld [vmem:[%s2 + $0x100] sm:$0xff]
    %v2438 = vld [vmem:[%s2 + $0x108] sm:$0xff]
    %v2439 = vld [vmem:[%s2 + $0x110] sm:$0xff]
    %v2440 = vld [vmem:[%s2 + $0x118] sm:$0xff]
    %v2441 = vld [vmem:[%s2 + $0x120] sm:$0xff]
    %v2442 = vld [vmem:[%s2 + $0x128] sm:$0xff]
    %v2443 = vld [vmem:[%s2 + $0x130] sm:$0xff]
    %v2444 = vld [vmem:[%s2 + $0x138] sm:$0xff]
    %v2445 = vld [vmem:[%s2 + $0x140] sm:$0xff]
    %v2446 = vld [vmem:[%s2 + $0x148] sm:$0xff]
    %v2447 = vld [vmem:[%s2 + $0x150] sm:$0xff]
    %v2448 = vld [vmem:[%s2 + $0x158] sm:$0xff]
    %v2449 = vld [vmem:[%s2 + $0x160] sm:$0xff]
    %v2450 = vld [vmem:[%s2 + $0x168] sm:$0xff]
    %v2451 = vld [vmem:[%s2 + $0x170] sm:$0xff]
    %v2452 = vld [vmem:[%s2 + $0x178] sm:$0xff]
    %v2453 = vld [vmem:[%s2 + $0x180] sm:$0xff]
    %v2454 = vld [vmem:[%s2 + $0x188] sm:$0xff]
    %v2455 = vld [vmem:[%s2 + $0x190] sm:$0xff]
    %v2456 = vld [vmem:[%s2 + $0x198] sm:$0xff]
    %v2457 = vld [vmem:[%s2 + $0x1a0] sm:$0xff]
    %v2458 = vld [vmem:[%s2 + $0x1a8] sm:$0xff]
    %v2459 = vld [vmem:[%s2 + $0x1b0] sm:$0xff]
    %v2460 = vld [vmem:[%s2 + $0x1b8] sm:$0xff]
    %v2461 = vld [vmem:[%s2 + $0x1c0] sm:$0xff]
    %v2462 = vld [vmem:[%s2 + $0x1c8] sm:$0xff]
    %v2463 = vld [vmem:[%s2 + $0x1d0] sm:$0xff]
    %v2464 = vld [vmem:[%s2 + $0x1d8] sm:$0xff]
    %v2465 = vld [vmem:[%s2 + $0x1e0] sm:$0xff]
    %v2466 = vld [vmem:[%s2 + $0x1e8] sm:$0xff]
    %v2467 = vld [vmem:[%s2 + $0x1f0] sm:$0xff]
    %v2468 = vld [vmem:[%s2 + $0x1f8] sm:$0xff]
    %s2469 = sld [smem:[#allocation14 + $0x1]]
    %v2470 = vstv %s2469
    %2471 = vmatprep.subr.mxu0 0.0
    %2472 = vmatpush1.msra.mxu0 %v2420
    %2473 = vmatprep.subr.mxu0 0.0
    %2474 = vmatpush1.msra.mxu0 %v2419
    %2475 = vmatprep.subr.mxu0 0.0
    %2476 = vmatpush1.msra.mxu0 %v2418
    %2477 = vmatprep.subr.mxu0 0.0
    %2478 = vmatpush1.msra.mxu0 %v2417
    %2479 = vmatprep.subr.mxu0 0.0
    %2480 = vmatpush1.msra.mxu0 %v2416
    %2481 = vmatprep.subr.mxu0 0.0
    %2482 = vmatpush1.msra.mxu0 %v2415
    %2483 = vmatprep.subr.mxu0 0.0
    %2484 = vmatpush1.msra.mxu0 %v2414
    %2485 = vmatprep.subr.mxu0 0.0
    %2486 = vmatpush1.msra.mxu0 %v2413
    %2487 = vmatprep.subr.mxu0 0.0
    %2488 = vmatpush1.msra.mxu0 %v2412
    %2489 = vmatprep.subr.mxu0 0.0
    %2490 = vmatpush1.msra.mxu0 %v2411
    %2491 = vmatprep.subr.mxu0 0.0
    %2492 = vmatpush1.msra.mxu0 %v2410
    %2493 = vmatprep.subr.mxu0 0.0
    %2494 = vmatpush1.msra.mxu0 %v2409
    %2495 = vmatprep.subr.mxu0 0.0
    %2496 = vmatpush1.msra.mxu0 %v2408
    %2497 = vmatprep.subr.mxu0 0.0
    %2498 = vmatpush1.msra.mxu0 %v2407
    %2499 = vmatprep.subr.mxu0 0.0
    %2500 = vmatpush1.msra.mxu0 %v2406
    %2501 = vmatprep.subr.mxu0 0.0
    %2502 = vmatpush1.msra.mxu0 %v2405
    %2503 = vmatprep.subr.mxu0 0.0
    %2504 = vmatpush2.msra.mxu0 %v2436
    %2505 = vmatprep.subr.mxu0 0.0
    %2506 = vmatpush2.msra.mxu0 %v2435
    %2507 = vmatprep.subr.mxu0 0.0
    %2508 = vmatpush2.msra.mxu0 %v2434
    %2509 = vmatprep.subr.mxu0 0.0
    %2510 = vmatpush2.msra.mxu0 %v2433
    %2511 = vmatprep.subr.mxu0 0.0
    %2512 = vmatpush2.msra.mxu0 %v2432
    %2513 = vmatprep.subr.mxu0 0.0
    %2514 = vmatpush2.msra.mxu0 %v2431
    %2515 = vmatprep.subr.mxu0 0.0
    %2516 = vmatpush2.msra.mxu0 %v2430
    %2517 = vmatprep.subr.mxu0 0.0
    %2518 = vmatpush2.msra.mxu0 %v2429
    %2519 = vmatprep.subr.mxu0 0.0
    %2520 = vmatpush2.msra.mxu0 %v2428
    %2521 = vmatprep.subr.mxu0 0.0
    %2522 = vmatpush2.msra.mxu0 %v2427
    %2523 = vmatprep.subr.mxu0 0.0
    %2524 = vmatpush2.msra.mxu0 %v2426
    %2525 = vmatprep.subr.mxu0 0.0
    %2526 = vmatpush2.msra.mxu0 %v2425
    %2527 = vmatprep.subr.mxu0 0.0
    %2528 = vmatpush2.msra.mxu0 %v2424
    %2529 = vmatprep.subr.mxu0 0.0
    %2530 = vmatpush2.msra.mxu0 %v2423
    %2531 = vmatprep.subr.mxu0 0.0
    %2532 = vmatpush2.msra.mxu0 %v2422
    %2533 = vmatprep.subr.mxu0 0.0
    %2534 = vmatpush2.msra.mxu0 %v2421
    %2535 = vmatprep.mubr.f32.mxu0 %v2402
    %2536 = vmatmul.mubr.f32.gmra.mxu0 %v2401
    %v2537 = vpop.f32.mrf.mxu0
    %v2538 = vadd.f32 %v2470, %v2537
    %v2539 = vpop.f32.mrf.mxu0
    %2540 = vdwg.mxu0
    %2541 = vmatprep.subr.mxu0 0.0
    %2542 = vmatpush1.msra.mxu0 %v2452
    %2543 = vmatprep.subr.mxu0 0.0
    %2544 = vmatpush1.msra.mxu0 %v2451
    %2545 = vmatprep.subr.mxu0 0.0
    %2546 = vmatpush1.msra.mxu0 %v2450
    %2547 = vmatprep.subr.mxu0 0.0
    %2548 = vmatpush1.msra.mxu0 %v2449
    %2549 = vmatprep.subr.mxu0 0.0
    %2550 = vmatpush1.msra.mxu0 %v2448
    %2551 = vmatprep.subr.mxu0 0.0
    %2552 = vmatpush1.msra.mxu0 %v2447
    %2553 = vmatprep.subr.mxu0 0.0
    %2554 = vmatpush1.msra.mxu0 %v2446
    %2555 = vmatprep.subr.mxu0 0.0
    %2556 = vmatpush1.msra.mxu0 %v2445
    %2557 = vmatprep.subr.mxu0 0.0
    %2558 = vmatpush1.msra.mxu0 %v2444
    %2559 = vmatprep.subr.mxu0 0.0
    %2560 = vmatpush1.msra.mxu0 %v2443
    %2561 = vmatprep.subr.mxu0 0.0
    %2562 = vmatpush1.msra.mxu0 %v2442
    %2563 = vmatprep.subr.mxu0 0.0
    %2564 = vmatpush1.msra.mxu0 %v2441
    %2565 = vmatprep.subr.mxu0 0.0
    %2566 = vmatpush1.msra.mxu0 %v2440
    %2567 = vmatprep.subr.mxu0 0.0
    %2568 = vmatpush1.msra.mxu0 %v2439
    %2569 = vmatprep.subr.mxu0 0.0
    %2570 = vmatpush1.msra.mxu0 %v2438
    %2571 = vmatprep.subr.mxu0 0.0
    %2572 = vmatpush1.msra.mxu0 %v2437
    %2573 = vmatprep.subr.mxu0 0.0
    %2574 = vmatpush2.msra.mxu0 %v2468
    %2575 = vmatprep.subr.mxu0 0.0
    %2576 = vmatpush2.msra.mxu0 %v2467
    %2577 = vmatprep.subr.mxu0 0.0
    %2578 = vmatpush2.msra.mxu0 %v2466
    %2579 = vmatprep.subr.mxu0 0.0
    %2580 = vmatpush2.msra.mxu0 %v2465
    %2581 = vmatprep.subr.mxu0 0.0
    %2582 = vmatpush2.msra.mxu0 %v2464
    %2583 = vmatprep.subr.mxu0 0.0
    %2584 = vmatpush2.msra.mxu0 %v2463
    %2585 = vmatprep.subr.mxu0 0.0
    %2586 = vmatpush2.msra.mxu0 %v2462
    %2587 = vmatprep.subr.mxu0 0.0
    %2588 = vmatpush2.msra.mxu0 %v2461
    %2589 = vmatprep.subr.mxu0 0.0
    %2590 = vmatpush2.msra.mxu0 %v2460
    %2591 = vmatprep.subr.mxu0 0.0
    %2592 = vmatpush2.msra.mxu0 %v2459
    %2593 = vmatprep.subr.mxu0 0.0
    %2594 = vmatpush2.msra.mxu0 %v2458
    %2595 = vmatprep.subr.mxu0 0.0
    %2596 = vmatpush2.msra.mxu0 %v2457
    %2597 = vmatprep.subr.mxu0 0.0
    %2598 = vmatpush2.msra.mxu0 %v2456
    %2599 = vmatprep.subr.mxu0 0.0
    %2600 = vmatpush2.msra.mxu0 %v2455
    %2601 = vmatprep.subr.mxu0 0.0
    %2602 = vmatpush2.msra.mxu0 %v2454
    %2603 = vmatprep.subr.mxu0 0.0
    %2604 = vmatpush2.msra.mxu0 %v2453
    %2605 = vmatprep.mubr.f32.mxu0 %v2404
    %2606 = vmatmul.mubr.f32.gmra.mxu0 %v2403
    %v2607 = vpop.f32.mrf.mxu0
    %v2608 = vadd.f32 %v2538, %v2607
    %v2609 = vpop.f32.mrf.mxu0
    %2610 = vdwg.mxu0
    %v2611 = vmax.f32 %v2608, 0.0
    %v2612 = vld [vmem:[%s3] sm:$0xff]
    %v2613 = vld [vmem:[%s3 + $0x8] sm:$0xff]
    %v2614 = vld [vmem:[%s3 + $0x10] sm:$0xff]
    %v2615 = vld [vmem:[%s3 + $0x18] sm:$0xff]
    %v2616 = vld [vmem:[%s3 + $0x20] sm:$0xff]
    %v2617 = vld [vmem:[%s3 + $0x28] sm:$0xff]
    %v2618 = vld [vmem:[%s3 + $0x30] sm:$0xff]
    %v2619 = vld [vmem:[%s3 + $0x38] sm:$0xff]
    %v2620 = vld [vmem:[#allocation8] sm:$0x1]
    %v2622 = vlaneseq
    %v2623 = vshrl.u32 %v2622, 7
    %v2624 = vsub.s32 0, %v2623
    %v2625 = vrot.slane %v2620, %v2624
    %vm2627 = vcmask 523264
    %v2629 = vsel %vm2627, %v2611, 0
    %2631 = vmatprep.subr.mxu0 0.0
    %2632 = vmatpush1.msra.mxu0 0.0
    %2633 = vmatprep.subr.mxu0 0.0
    %2634 = vmatpush1.msra.mxu0 0.0
    %2635 = vmatprep.subr.mxu0 0.0
    %2636 = vmatpush1.msra.mxu0 0.0
    %2637 = vmatprep.subr.mxu0 0.0
    %2638 = vmatpush1.msra.mxu0 0.0
    %2639 = vmatprep.subr.mxu0 0.0
    %2640 = vmatpush1.msra.mxu0 0.0
    %2641 = vmatprep.subr.mxu0 0.0
    %2642 = vmatpush1.msra.mxu0 0.0
    %2643 = vmatprep.subr.mxu0 0.0
    %2644 = vmatpush1.msra.mxu0 0.0
    %2645 = vmatprep.subr.mxu0 0.0
    %2646 = vmatpush1.msra.mxu0 0.0
    %2647 = vmatprep.subr.mxu0 0.0
    %2648 = vmatpush1.msra.mxu0 %v2619
    %2649 = vmatprep.subr.mxu0 0.0
    %2650 = vmatpush1.msra.mxu0 %v2618
    %2651 = vmatprep.subr.mxu0 0.0
    %2652 = vmatpush1.msra.mxu0 %v2617
    %2653 = vmatprep.subr.mxu0 0.0
    %2654 = vmatpush1.msra.mxu0 %v2616
    %2655 = vmatprep.subr.mxu0 0.0
    %2656 = vmatpush1.msra.mxu0 %v2615
    %2657 = vmatprep.subr.mxu0 0.0
    %2658 = vmatpush1.msra.mxu0 %v2614
    %2659 = vmatprep.subr.mxu0 0.0
    %2660 = vmatpush1.msra.mxu0 %v2613
    %2661 = vmatprep.subr.mxu0 0.0
    %2662 = vmatpush1.msra.mxu0 %v2612
    %2663 = vmatprep.subr.mxu0 0.0
    %2664 = vmatpush2.msra.mxu0 0.0
    %2665 = vmatprep.subr.mxu0 0.0
    %2666 = vmatpush2.msra.mxu0 0.0
    %2667 = vmatprep.subr.mxu0 0.0
    %2668 = vmatpush2.msra.mxu0 0.0
    %2669 = vmatprep.subr.mxu0 0.0
    %2670 = vmatpush2.msra.mxu0 0.0
    %2671 = vmatprep.subr.mxu0 0.0
    %2672 = vmatpush2.msra.mxu0 0.0
    %2673 = vmatprep.subr.mxu0 0.0
    %2674 = vmatpush2.msra.mxu0 0.0
    %2675 = vmatprep.subr.mxu0 0.0
    %2676 = vmatpush2.msra.mxu0 0.0
    %2677 = vmatprep.subr.mxu0 0.0
    %2678 = vmatpush2.msra.mxu0 0.0
    %2679 = vmatprep.subr.mxu0 0.0
    %2680 = vmatpush2.msra.mxu0 0.0
    %2681 = vmatprep.subr.mxu0 0.0
    %2682 = vmatpush2.msra.mxu0 0.0
    %2683 = vmatprep.subr.mxu0 0.0
    %2684 = vmatpush2.msra.mxu0 0.0
    %2685 = vmatprep.subr.mxu0 0.0
    %2686 = vmatpush2.msra.mxu0 0.0
    %2687 = vmatprep.subr.mxu0 0.0
    %2688 = vmatpush2.msra.mxu0 0.0
    %2689 = vmatprep.subr.mxu0 0.0
    %2690 = vmatpush2.msra.mxu0 0.0
    %2691 = vmatprep.subr.mxu0 0.0
    %2692 = vmatpush2.msra.mxu0 0.0
    %2693 = vmatprep.subr.mxu0 0.0
    %2694 = vmatpush2.msra.mxu0 0.0
    %2695 = vmatprep.mubr.f32.mxu0 0.0
    %2696 = vmatmul.mubr.f32.gmra.mxu0 %v2629
    %v2697 = vpop.f32.mrf.mxu0
    %v2698 = vadd.f32 %v2625, %v2697
    %v2699 = vpop.f32.mrf.mxu0
    %2700 = vdwg.mxu0
    %v2701 = vld [vmem:[#allocation9] sm:$0xff]
    %v2702 = vld [vmem:[#allocation9 + $0x8] sm:$0xff]
    %v2703 = vld [vmem:[#allocation9 + $0x10] sm:$0xff]
    %v2704 = vld [vmem:[#allocation9 + $0x18] sm:$0xff]
    %v2705 = vld [vmem:[#allocation11] sm:$0x1]
    %v2707 = vlaneseq
    %v2708 = vshrl.u32 %v2707, 7
    %v2709 = vsub.s32 0, %v2708
    %v2710 = vrot.slane %v2705, %v2709
    %vm2712 = vcmask 261120
    %v2714 = vsel %vm2712, %v2698, 0
    %2716 = vmatprep.subr.mxu0 0.0
    %2717 = vmatpush1.msra.mxu0 0.0
    %2718 = vmatprep.subr.mxu0 0.0
    %2719 = vmatpush1.msra.mxu0 0.0
    %2720 = vmatprep.subr.mxu0 0.0
    %2721 = vmatpush1.msra.mxu0 0.0
    %2722 = vmatprep.subr.mxu0 0.0
    %2723 = vmatpush1.msra.mxu0 0.0
    %2724 = vmatprep.subr.mxu0 0.0
    %2725 = vmatpush1.msra.mxu0 0.0
    %2726 = vmatprep.subr.mxu0 0.0
    %2727 = vmatpush1.msra.mxu0 0.0
    %2728 = vmatprep.subr.mxu0 0.0
    %2729 = vmatpush1.msra.mxu0 0.0
    %2730 = vmatprep.subr.mxu0 0.0
    %2731 = vmatpush1.msra.mxu0 0.0
    %2732 = vmatprep.subr.mxu0 0.0
    %2733 = vmatpush1.msra.mxu0 0.0
    %2734 = vmatprep.subr.mxu0 0.0
    %2735 = vmatpush1.msra.mxu0 0.0
    %2736 = vmatprep.subr.mxu0 0.0
    %2737 = vmatpush1.msra.mxu0 0.0
    %2738 = vmatprep.subr.mxu0 0.0
    %2739 = vmatpush1.msra.mxu0 0.0
    %2740 = vmatprep.subr.mxu0 0.0
    %2741 = vmatpush1.msra.mxu0 %v2704
    %2742 = vmatprep.subr.mxu0 0.0
    %2743 = vmatpush1.msra.mxu0 %v2703
    %2744 = vmatprep.subr.mxu0 0.0
    %2745 = vmatpush1.msra.mxu0 %v2702
    %2746 = vmatprep.subr.mxu0 0.0
    %2747 = vmatpush1.msra.mxu0 %v2701
    %2748 = vmatprep.subr.mxu0 0.0
    %2749 = vmatpush2.msra.mxu0 0.0
    %2750 = vmatprep.subr.mxu0 0.0
    %2751 = vmatpush2.msra.mxu0 0.0
    %2752 = vmatprep.subr.mxu0 0.0
    %2753 = vmatpush2.msra.mxu0 0.0
    %2754 = vmatprep.subr.mxu0 0.0
    %2755 = vmatpush2.msra.mxu0 0.0
    %2756 = vmatprep.subr.mxu0 0.0
    %2757 = vmatpush2.msra.mxu0 0.0
    %2758 = vmatprep.subr.mxu0 0.0
    %2759 = vmatpush2.msra.mxu0 0.0
    %2760 = vmatprep.subr.mxu0 0.0
    %2761 = vmatpush2.msra.mxu0 0.0
    %2762 = vmatprep.subr.mxu0 0.0
    %2763 = vmatpush2.msra.mxu0 0.0
    %2764 = vmatprep.subr.mxu0 0.0
    %2765 = vmatpush2.msra.mxu0 0.0
    %2766 = vmatprep.subr.mxu0 0.0
    %2767 = vmatpush2.msra.mxu0 0.0
    %2768 = vmatprep.subr.mxu0 0.0
    %2769 = vmatpush2.msra.mxu0 0.0
    %2770 = vmatprep.subr.mxu0 0.0
    %2771 = vmatpush2.msra.mxu0 0.0
    %2772 = vmatprep.subr.mxu0 0.0
    %2773 = vmatpush2.msra.mxu0 0.0
    %2774 = vmatprep.subr.mxu0 0.0
    %2775 = vmatpush2.msra.mxu0 0.0
    %2776 = vmatprep.subr.mxu0 0.0
    %2777 = vmatpush2.msra.mxu0 0.0
    %2778 = vmatprep.subr.mxu0 0.0
    %2779 = vmatpush2.msra.mxu0 0.0
    %2780 = vmatprep.mubr.f32.mxu0 0.0
    %2781 = vmatmul.mubr.f32.gmra.mxu0 %v2714
    %v2782 = vpop.f32.mrf.mxu0
    %v2783 = vadd.f32 %v2710, %v2782
    %v2784 = vpop.f32.mrf.mxu0
    %2785 = vdwg.mxu0
    %v2786 = vmax.f32 %v2783, 0.0
    %v2787 = vld [vmem:[%s7] sm:$0xff]
    %v2788 = vld [vmem:[%s7 + $0x8] sm:$0xff]
    %v2789 = vld [vmem:[%s7 + $0x10] sm:$0xff]
    %v2790 = vld [vmem:[%s7 + $0x18] sm:$0xff]
    %v2791 = vld [vmem:[%s7 + $0x20] sm:$0xff]
    %v2792 = vld [vmem:[%s7 + $0x28] sm:$0xff]
    %v2793 = vld [vmem:[%s7 + $0x30] sm:$0xff]
    %v2794 = vld [vmem:[%s7 + $0x38] sm:$0xff]
    %v2795 = vld [vmem:[#allocation12] sm:$0x1]
    %v2797 = vlaneseq
    %v2798 = vshrl.u32 %v2797, 7
    %v2799 = vsub.s32 0, %v2798
    %v2800 = vrot.slane %v2795, %v2799
    %v2803 = vsel %vm2627, %v2786, 0
    %2805 = vmatprep.subr.mxu0 0.0
    %2806 = vmatpush1.msra.mxu0 0.0
    %2807 = vmatprep.subr.mxu0 0.0
    %2808 = vmatpush1.msra.mxu0 0.0
    %2809 = vmatprep.subr.mxu0 0.0
    %2810 = vmatpush1.msra.mxu0 0.0
    %2811 = vmatprep.subr.mxu0 0.0
    %2812 = vmatpush1.msra.mxu0 0.0
    %2813 = vmatprep.subr.mxu0 0.0
    %2814 = vmatpush1.msra.mxu0 0.0
    %2815 = vmatprep.subr.mxu0 0.0
    %2816 = vmatpush1.msra.mxu0 0.0
    %2817 = vmatprep.subr.mxu0 0.0
    %2818 = vmatpush1.msra.mxu0 0.0
    %2819 = vmatprep.subr.mxu0 0.0
    %2820 = vmatpush1.msra.mxu0 0.0
    %2821 = vmatprep.subr.mxu0 0.0
    %2822 = vmatpush1.msra.mxu0 %v2794
    %2823 = vmatprep.subr.mxu0 0.0
    %2824 = vmatpush1.msra.mxu0 %v2793
    %2825 = vmatprep.subr.mxu0 0.0
    %2826 = vmatpush1.msra.mxu0 %v2792
    %2827 = vmatprep.subr.mxu0 0.0
    %2828 = vmatpush1.msra.mxu0 %v2791
    %2829 = vmatprep.subr.mxu0 0.0
    %2830 = vmatpush1.msra.mxu0 %v2790
    %2831 = vmatprep.subr.mxu0 0.0
    %2832 = vmatpush1.msra.mxu0 %v2789
    %2833 = vmatprep.subr.mxu0 0.0
    %2834 = vmatpush1.msra.mxu0 %v2788
    %2835 = vmatprep.subr.mxu0 0.0
    %2836 = vmatpush1.msra.mxu0 %v2787
    %2837 = vmatprep.subr.mxu0 0.0
    %2838 = vmatpush2.msra.mxu0 0.0
    %2839 = vmatprep.subr.mxu0 0.0
    %2840 = vmatpush2.msra.mxu0 0.0
    %2841 = vmatprep.subr.mxu0 0.0
    %2842 = vmatpush2.msra.mxu0 0.0
    %2843 = vmatprep.subr.mxu0 0.0
    %2844 = vmatpush2.msra.mxu0 0.0
    %2845 = vmatprep.subr.mxu0 0.0
    %2846 = vmatpush2.msra.mxu0 0.0
    %2847 = vmatprep.subr.mxu0 0.0
    %2848 = vmatpush2.msra.mxu0 0.0
    %2849 = vmatprep.subr.mxu0 0.0
    %2850 = vmatpush2.msra.mxu0 0.0
    %2851 = vmatprep.subr.mxu0 0.0
    %2852 = vmatpush2.msra.mxu0 0.0
    %2853 = vmatprep.subr.mxu0 0.0
    %2854 = vmatpush2.msra.mxu0 0.0
    %2855 = vmatprep.subr.mxu0 0.0
    %2856 = vmatpush2.msra.mxu0 0.0
    %2857 = vmatprep.subr.mxu0 0.0
    %2858 = vmatpush2.msra.mxu0 0.0
    %2859 = vmatprep.subr.mxu0 0.0
    %2860 = vmatpush2.msra.mxu0 0.0
    %2861 = vmatprep.subr.mxu0 0.0
    %2862 = vmatpush2.msra.mxu0 0.0
    %2863 = vmatprep.subr.mxu0 0.0
    %2864 = vmatpush2.msra.mxu0 0.0
    %2865 = vmatprep.subr.mxu0 0.0
    %2866 = vmatpush2.msra.mxu0 0.0
    %2867 = vmatprep.subr.mxu0 0.0
    %2868 = vmatpush2.msra.mxu0 0.0
    %2869 = vmatprep.mubr.f32.mxu0 0.0
    %2870 = vmatmul.mubr.f32.gmra.mxu0 %v2803
    %v2871 = vpop.f32.mrf.mxu0
    %v2872 = vadd.f32 %v2800, %v2871
    %v2873 = vpop.f32.mrf.mxu0
    %2874 = vdwg.mxu0
    %vm2875 = vcmask 58368
    %2876 = vst.msk [vmem:[#allocation15] sm:$0x3] %vm2875, %v2872
    %2878 = vrot.lane.b32.xlu0 %v2872, 120
    %v2879 = vpop.permute.xlu0 %2878
    %vm2881 = vcmask 1024
    %2882 = vst.msk [vmem:[%s11] sm:$0x3] %vm2881, %v2879
    // Predicated region
    $region70: #{actor_forward.1} parent=1 // pred_check
      _
    $region71: #{actor_forward.1} parent=1 // pred_check_branch
      %2884 = sbr.rel (0) target = $region73
    $region72: #{actor_forward.1} parent=1 // pred_region
      %s2886 = ssub.s32 32, 32
      %2887 = vsyncadd [#allocation4], %s2886
      %s2889 = sshll.u32 [#allocation15], 4
      %s2890 = int_to_ptr.vmem [resolvable:$true] %s2889
      %2892 = dma.vmem_to_hbm [thread:$0]  %s2890, 32, %s10, [#allocation4]
    $region73: #{actor_forward.1} parent=1 // pred_fallthru
      _
    // Predicated region
    $region74: #{actor_forward.1} parent=1 // pred_check
      _
    $region75: #{actor_forward.1} parent=1 // pred_check_branch
      %2894 = sbr.rel (0) target = $region77
    $region76: #{actor_forward.1} parent=1 // pred_region
      _
    $region77: #{actor_forward.1} parent=1 // pred_fallthru
      _
    // Predicated region
    $region78: #{actor_forward.1} parent=1 // pred_check
      _
    $region79: #{actor_forward.1} parent=1 // pred_check_branch
      %2896 = sbr.rel (0) target = $region81
    $region80: #{actor_forward.1} parent=1 // pred_region
      %2897 = dma.done [#allocation4], 32
    $region81: #{actor_forward.1} parent=1 // pred_fallthru
      _
    // Predicated region
    $region82: #{actor_forward.1} parent=1 // pred_check
      _
    $region83: #{actor_forward.1} parent=1 // pred_check_branch
      %2899 = sbr.rel (0) target = $region85
    $region84: #{actor_forward.1} parent=1 // pred_region
      _
    $region85: #{actor_forward.1} parent=1 // pred_fallthru
      _
    %2900 = vsyncpa [#allocation3], 1
    %2901 = vsyncpa [#allocation7], 1
    %2902 = vsyncpa [#allocation10], 1
    %2903 = vsyncpa [#allocation13], 1
    %2904 = vsyncpa [#allocation4], 1
    %2905 = vsyncpa [#allocation5], 1

</llo_original>
